<compile_context>
chip_gen: v5e
topology: v5e:2x2
jax: 0.10.0
libtpu: 0.0.40
codegen_flags: <defaults>
</compile_context>

<pallas_src>
import numpy as np
import ml_dtypes
import jax
import jax.numpy as jnp
from jax.experimental import pallas as pl
from jax.experimental.pallas import tpu as pltpu

BN_EPS = 1e-5
_WROW_ALIGN = 16   # bf16 sublane packing: start each weight-slab segment on a boundary


# ------------------------------ small helpers ------------------------------- #

def _full_spec(shape):
    """Whole-array BlockSpec (no grid): block == full array, index (0,...,0)."""
    zeros = (0,) * len(shape)
    return pl.BlockSpec(shape, lambda: zeros)


def _align(n, a=_WROW_ALIGN):
    return ((n + a - 1) // a) * a


def _parity_extent(k, pad, n_half, n_out):
    """Offsets / extent of the parity-split (space-to-depth) padded scratch."""
    offs = [0, 0]
    for t in range(k):
        d = t - pad
        offs[d % 2] = max(offs[d % 2], -(d // 2))
    ext = max(offs[0] + n_half, offs[1] + n_half)
    for t in range(k):
        d = t - pad
        ext = max(ext, offs[d % 2] + (d // 2) + n_out)
    return offs, ext


# ---------------------------- fused block kernel ---------------------------- #

def _make_block_kernel(cfg):
    N, H, W = cfg["nhw"]
    C0, C1, C2, C3 = cfg["chans"]
    k2, s2, p2 = cfg["conv2"]
    Ho, Wo = cfg["out_hw"]
    offs_h, offs_w = cfg["parity_offs"]
    has_proj = cfg["has_proj"]
    ow1, ow2, ow3, owr = cfg["w_offsets"]
    M_out = N * Ho * Wo
    H2, W2 = H // 2, W // 2
    K2 = k2 * k2 * C1

    # row indices into the packed f32 vector slab (see _pack_block_slabs)
    G1, BE1, B1, G2, BE2, B2, G3, BE3, B3, BR = range(10)

    def bn_relu(x, gamma, beta):
        # BatchNorm2d in training mode (biased batch variance) + ReLU; f32 VPU math.
        m = x.shape[0]
        mean = jnp.sum(x, axis=0, keepdims=True) * (1.0 / m)
        cen = x - mean
        var = jnp.sum(cen * cen, axis=0, keepdims=True) * (1.0 / m)
        return jnp.maximum(cen * jax.lax.rsqrt(var + BN_EPS) * gamma + beta, 0.0)

    def kernel(x_ref, w_ref, v_ref, o_ref, pad_ref, col_ref):
        x = x_ref[...]                      # (M_in, C0) f32
        ws = w_ref[...]                     # packed bf16 conv weights
        vs = v_ref[...]                     # packed f32 gamma/beta/bias rows

        def vec(row, c):                    # (1, c) slice of the vector slab
            return vs[row:row + 1, 0:c]

        def mxu(a, row0, cin, cout, brow):  # bf16 MXU matmul + f32 bias (f32 accumulate)
            w = ws[row0:row0 + cin, 0:cout]
            return jnp.dot(a.astype(jnp.bfloat16), w,
                           preferred_element_type=jnp.float32) + vec(brow, cout)

        # ---- layer 1: BN -> ReLU -> 1x1 conv (one MXU matmul) ----
        a1 = bn_relu(x, vec(G1, C0), vec(BE1, C0))
        z1 = mxu(a1, ow1, C0, C1, B1)

        # ---- layer 2: BN -> ReLU ----
        a2 = bn_relu(z1, vec(G2, C1), vec(BE2, C1))

        # ---- layer 2 conv: im2col slab in VMEM -> ONE MXU matmul (K = k2*k2*C1) ----
        def zero_strip(n0, n1, h0, h1, w0, w1):     # static-extent halo memset
            if n1 > n0 and h1 > h0 and w1 > w0:
                pad_ref[n0:n1, h0:h1, w0:w1, :] = jnp.zeros(
                    (n1 - n0, h1 - h0, w1 - w0, C1), jnp.float32)

        if s2 == 1:
            Hp, Wp = H + 2 * p2, W + 2 * p2
            if p2 > 0:                               # zero only the halo frame
                zero_strip(0, N, 0, p2, 0, Wp)
                zero_strip(0, N, p2 + H, Hp, 0, Wp)
                zero_strip(0, N, p2, p2 + H, 0, p2)
                zero_strip(0, N, p2, p2 + H, p2 + W, Wp)
            pad_ref[:, p2:p2 + H, p2:p2 + W, :] = a2.reshape(N, H, W, C1)
        else:
            # rows of x / a2 are pre-ordered (parity_h, parity_w, n, h//2, w//2)
            plane_rows = N * H2 * W2
            EH, EW = pad_ref.shape[1], pad_ref.shape[2]
            for rh in range(2):
                for rw in range(2):
                    q = rh * 2 + rw
                    oh, ow = offs_h[rh], offs_w[rw]
                    zero_strip(q * N, (q + 1) * N, 0, oh, 0, EW)
                    zero_strip(q * N, (q + 1) * N, oh + H2, EH, 0, EW)
                    zero_strip(q * N, (q + 1) * N, oh, oh + H2, 0, ow)
                    zero_strip(q * N, (q + 1) * N, oh, oh + H2, ow + W2, EW)
                    plane = a2[q * plane_rows:(q + 1) * plane_rows, :]
                    pad_ref[q * N:(q + 1) * N, oh:oh + H2, ow:ow + W2, :] = (
                        plane.reshape(N, H2, W2, C1))

        for i in range(k2):
            for j in range(k2):
                if s2 == 1:
                    tap = pad_ref[:, i:i + Ho, j:j + Wo, :]
                else:
                    di, dj = i - p2, j - p2
                    rh, rw = di % 2, dj % 2
                    q = rh * 2 + rw
                    ai = di // 2 + offs_h[rh]
                    bj = dj // 2 + offs_w[rw]
                    tap = pad_ref[q * N:(q + 1) * N, ai:ai + Ho, bj:bj + Wo, :]
                t = i * k2 + j
                col_ref[:, t * C1:(t + 1) * C1] = tap.reshape(M_out, C1)
        z2 = mxu(col_ref[...], ow2, K2, C2, B2)

        # ---- layer 3: BN -> ReLU -> 1x1 conv ----
        a3 = bn_relu(z2, vec(G3, C2), vec(BE3, C2))
        out = mxu(a3, ow3, C2, C3, B3)

        # ---- residual branch on the raw (un-normalized) input ----
        res_in = x if s2 == 1 else x[0:M_out, :]   # parity-(0,0) plane == x[:, ::2, ::2, :]
        if has_proj:
            out = out + mxu(res_in, owr, C0, C3, BR)
        else:
            out = out + res_in

        # TODO(synk): lane-dense (multiple-of-128 minor) store for tiny C3; already
        #             dense once production C3 >= 128.
        o_ref[...] = out.astype(o_ref.dtype)

    return kernel


# ------------------------------ block wrapper ------------------------------- #

def residual_block_forward(x_nhwc, p):
    N, H, W, C0 = x_nhwc.shape
    (k1, s1, p1), (k2, s2, p2), (k3, s3, p3) = p["specs"]
    # Supported bottleneck pattern (matches the reference configuration).
    assert (k1, s1, p1) == (1, 1, 0), "TODO(synk): general first conv not fused"
    assert (k3, s3, p3) == (1, 1, 0), "TODO(synk): general last conv not fused"
    assert s2 in (1, 2), "TODO(synk): middle conv stride > 2 not fused"
    assert C0 == p["chans"][0]

    _, C1, C2, C3 = p["chans"]
    Ho = (H + 2 * p2 - k2) // s2 + 1
    Wo = (W + 2 * p2 - k2) // s2 + 1
    has_proj = p["residual"] is not None
    if has_proj:
        assert p["residual"]["stride"] == s2
    else:
        assert C0 == C3 and Ho == H and Wo == W

    if s2 == 2:
        assert H % 2 == 0 and W % 2 == 0
        H2, W2 = H // 2, W // 2
        assert Ho == H2 and Wo == W2
        offs_h, EH = _parity_extent(k2, p2, H2, Ho)
        offs_w, EW = _parity_extent(k2, p2, W2, Wo)
        scratch_shape = (4 * N, EH, EW, C1)
        # Space-to-depth: rows ordered (parity_h, parity_w, n, h//2, w//2) so the
        # kernel only needs contiguous VMEM slices.  Only block 0 is strided in
        # this module, so this touches the external input once (under jit).
        x_rows = (x_nhwc.reshape(N, H2, 2, W2, 2, C0)
                  .transpose(2, 4, 0, 1, 3, 5)
                  .reshape(N * H * W, C0))
        parity_offs = (offs_h, offs_w)
    else:
        scratch_shape = (N, H + 2 * p2, W + 2 * p2, C1)
        x_rows = x_nhwc.reshape(N * H * W, C0)
        parity_offs = (None, None)

    cfg = dict(nhw=(N, H, W), chans=(C0, C1, C2, C3), conv2=(k2, s2, p2),
               out_hw=(Ho, Wo), parity_offs=parity_offs, has_proj=has_proj,
               w_offsets=p["w_offsets"])
    kernel = _make_block_kernel(cfg)

    inputs = [x_rows, p["wslab"], p["vslab"]]
    out_rows = pl.pallas_call(
        kernel,
        out_shape=jax.ShapeDtypeStruct((N * Ho * Wo, C3), x_nhwc.dtype),
        in_specs=[_full_spec(a.shape) for a in inputs],
        out_specs=_full_spec((N * Ho * Wo, C3)),
        scratch_shapes=[pltpu.VMEM(scratch_shape, jnp.float32),
                        pltpu.VMEM((N * Ho * Wo, k2 * k2 * C1), jnp.float32)],
    )(*inputs)
    return out_rows.reshape(N, Ho, Wo, C3)


def multi_residual_forward(x_nhwc, block_params):
    y = x_nhwc
    for p in block_params:
        y = residual_block_forward(y, p)
    return y


# --------------------------- parameter creation ----------------------------- #

def _pack_block_slabs(p):
    """Pack all per-block parameters into two slabs so the kernel needs only 3
    input DMAs (x, bf16 weight slab, f32 vector slab) instead of ~14 tiny ones."""
    C0, C1, C2, C3 = p["chans"]
    L = p["layers"]
    has_proj = p["residual"] is not None

    # --- bf16 weight slab: [w1 | w2 (im2col-flat) | w3 | wr], segments 16-aligned ---
    Cw = max(C1, C2, C3)
    mats = [np.asarray(L[0]["w"]).astype(np.float32),
            np.asarray(L[1]["w"]).astype(np.float32),
            np.asarray(L[2]["w"]).astype(np.float32)]
    if has_proj:
        mats.append(np.asarray(p["residual"]["w"]).astype(np.float32))
    offs, r = [], 0
    for m in mats:
        offs.append(r)
        r = _align(r + m.shape[0])
    total = offs[-1] + mats[-1].shape[0]
    wslab = np.zeros((total, Cw), np.float32)
    for o, m in zip(offs, mats):
        wslab[o:o + m.shape[0], :m.shape[1]] = m          # bf16 -> f32 is exact
    p["wslab"] = jnp.asarray(wslab, jnp.bfloat16)
    p["w_offsets"] = tuple(offs) if has_proj else tuple(offs) + (0,)

    # --- f32 vector slab: gamma/beta/bias rows (+ residual bias), zero-padded lanes ---
    Cv = max(C0, C1, C2, C3)
    vecs = []
    for lp in L:
        vecs += [lp["gamma"], lp["beta"], lp["b"]]
    if has_proj:
        vecs.append(p["residual"]["b"])
    vslab = np.zeros((len(vecs), Cv), np.float32)
    for i, v in enumerate(vecs):
        v = np.asarray(v).astype(np.float32).reshape(-1)
        vslab[i, :v.shape[0]] = v
    p["vslab"] = jnp.asarray(vslab, jnp.float32)


def init_block_params(key, in_c, out_cs, strides, kernels, paddings):
    chans = [in_c] + list(out_cs)
    keys = jax.random.split(key, 8)
    layers = []
    for i in range(3):
        cin, cout, k = chans[i], chans[i + 1], kernels[i]
        wk, bk = jax.random.split(keys[i])
        bound = 1.0 / np.sqrt(cin * k * k)
        layers.append(dict(
            gamma=jnp.ones((1, cin), jnp.float32),                 # PyTorch BN defaults
            beta=jnp.zeros((1, cin), jnp.float32),
            # conv weight stored once in flattened im2col layout (k*k*cin, cout), bf16
            w=jax.random.uniform(wk, (k * k * cin, cout), jnp.float32,
                                 -bound, bound).astype(jnp.bfloat16),
            b=jax.random.uniform(bk, (1, cout), jnp.float32, -bound, bound),
        ))
    out_c = out_cs[-1]
    if in_c != out_c:
        bound = 1.0 / np.sqrt(in_c)
        residual = dict(
            w=jax.random.uniform(keys[6], (in_c, out_c), jnp.float32,
                                 -bound, bound).astype(jnp.bfloat16),
            b=jax.random.uniform(keys[7], (1, out_c), jnp.float32, -bound, bound),
            stride=int(np.prod(strides)),
        )
    else:
        residual = None
    p = dict(layers=layers, chans=tuple(chans),
             specs=list(zip(kernels, strides, paddings)), residual=residual)
    _pack_block_slabs(p)
    return p


def init_multi_residual(key, count, in_c, out_cs, strides, kernels, paddings):
    blocks = []
    keys = jax.random.split(key, count)
    strides = list(strides)
    for n in range(count):
        blocks.append(init_block_params(keys[n], in_c, out_cs, strides, kernels, paddings))
        if n == 0:
            strides = [1] * len(strides)
            in_c = out_cs[-1]
    return blocks


# -------------------------- NumPy float64 reference ------------------------- #

def _bf16_round(a):
    """Emulate the kernel's bf16 MXU-operand rounding."""
    return np.asarray(a).astype(ml_dtypes.bfloat16).astype(np.float64)


def _ref_bn_relu(x, gamma, beta):
    mean = x.mean(axis=(0, 1, 2), keepdims=True)
    var = x.var(axis=(0, 1, 2), keepdims=True)                     # biased (training mode)
    y = (x - mean) / np.sqrt(var + BN_EPS) * gamma.reshape(1, 1, 1, -1) \
        + beta.reshape(1, 1, 1, -1)
    return np.maximum(y, 0.0)


def _ref_conv(x, w, b, k, stride, pad):
    # The stored weights are already bf16-valued; round the activation to bf16
    # (as the kernel does right before each MXU matmul) and accumulate in f64.
    n, h, wd, cin = x.shape
    w4 = np.asarray(w).astype(np.float64).reshape(k, k, cin, -1)
    cout = w4.shape[-1]
    xp = np.pad(_bf16_round(x), ((0, 0), (pad, pad), (pad, pad), (0, 0)))
    ho = (h + 2 * pad - k) // stride + 1
    wo = (wd + 2 * pad - k) // stride + 1
    out = np.zeros((n, ho, wo, cout), np.float64)
    for i in range(k):
        for j in range(k):
            patch = xp[:, i:i + stride * (ho - 1) + 1:stride,
                       j:j + stride * (wo - 1) + 1:stride, :]
            out += patch @ w4[i, j]
    return out + np.asarray(b).astype(np.float64).reshape(1, 1, 1, -1)


def _ref_block(x, p):
    y = x
    for li in range(3):
        k, s, pad = p["specs"][li]
        lp = p["layers"][li]
        y = _ref_bn_relu(y, np.asarray(lp["gamma"]).astype(np.float64),
                         np.asarray(lp["beta"]).astype(np.float64))
        y = _ref_conv(y, lp["w"], lp["b"], k, s, pad)
    if p["residual"] is not None:
        r = _ref_conv(x, p["residual"]["w"], p["residual"]["b"],
                      1, p["residual"]["stride"], 0)
    else:
        r = x
    return y + r


# ---------------------------------- main ------------------------------------ #

if __name__ == "__main__":
    key = jax.random.PRNGKey(0)
    pkey, xkey = jax.random.split(key)

    # MultiResidualBlock(count=2, in_channel_size=4, out_channel_sizes=[4,4,8],
    #                    strides=[1,2,1], kernels=[1,3,1], paddings=[0,1,0])
    count = 2
    in_channel_size = 4
    out_channel_sizes = [4, 4, 8]
    strides = [1, 2, 1]
    kernels = [1, 3, 1]
    paddings = [0, 1, 0]

    params = init_multi_residual(pkey, count, in_channel_size, out_channel_sizes,
                                 strides, kernels, paddings)

    # PyTorch-style NCHW input
    x_nchw = jax.random.normal(xkey, (2, 4, 16, 16), jnp.float32)
    x_nhwc = jnp.transpose(x_nchw, (0, 2, 3, 1))                   # NCHW -> NHWC

    # jit the whole block stack so the pallas_calls and the (single) input
    # space-to-depth relayout are compiled and scheduled together.
    fwd = jax.jit(lambda xx: multi_residual_forward(xx, params))
    y_nhwc = fwd(x_nhwc)
    jax.block_until_ready(y_nhwc)

    # float64 NumPy reference of the forward pass (bf16-operand-matched).
    y_ref = np.asarray(x_nhwc, np.float64)
    for bp in params:
        y_ref = _ref_block(y_ref, bp)
    err = float(np.max(np.abs(np.asarray(y_nhwc, np.float64) - y_ref)))
    # bf16 MXU operands (matched in the reference) bound agreement to ~1e-3 scale;
    # an indexing / layout bug would produce O(1) errors.
    assert err < 1e-2, f"forward mismatch vs reference: max abs err = {err}"

    y_nchw = jnp.transpose(y_nhwc, (0, 3, 1, 2))                   # back to NCHW
    jax.block_until_ready(y_nchw)
    assert y_nchw.shape == (2, 8, 8, 8), y_nchw.shape
    print("KERNEL_OK")
</pallas_src>

<mosaic_0001>
module attributes {stable_mosaic.version = 11 : i64} {
  func.func @kernel(%arg0: memref<512x4xf32, #tpu.memory_space<vmem>>, %arg1: memref<84x8xbf16, #tpu.memory_space<vmem>>, %arg2: memref<10x8xf32, #tpu.memory_space<vmem>>, %arg3: memref<128x8xf32, #tpu.memory_space<vmem>>, %arg4: memref<8x9x9x4xf32, #tpu.memory_space<vmem>>, %arg5: memref<128x36xf32, #tpu.memory_space<vmem>>) attributes {dimension_semantics = [], scalar_prefetch = 0 : i64, scratch_operands = 2 : i64, tpu.core_type = #tpu.core_type<tc>} {
    %c0 = arith.constant 0 : index
    %c0_0 = arith.constant 0 : index
    %0 = vector.load %arg0[%c0, %c0_0] : memref<512x4xf32, #tpu.memory_space<vmem>>, vector<512x4xf32>
    %c0_1 = arith.constant 0 : index
    %c0_2 = arith.constant 0 : index
    %1 = vector.load %arg1[%c0_1, %c0_2] : memref<84x8xbf16, #tpu.memory_space<vmem>>, vector<84x8xbf16>
    %c0_3 = arith.constant 0 : index
    %c0_4 = arith.constant 0 : index
    %2 = vector.load %arg2[%c0_3, %c0_4] : memref<10x8xf32, #tpu.memory_space<vmem>>, vector<10x8xf32>
    %3 = vector.extract_strided_slice %2 {offsets = [0, 0], sizes = [1, 4], strides = [1, 1]} : vector<10x8xf32> to vector<1x4xf32>
    %4 = vector.extract_strided_slice %2 {offsets = [1, 0], sizes = [1, 4], strides = [1, 1]} : vector<10x8xf32> to vector<1x4xf32>
    %cst = arith.constant dense<0.000000e+00> : vector<4xf32>
    %5 = vector.multi_reduction <add>, %0, %cst [0] : vector<512x4xf32> to vector<4xf32>
    %6 = vector.shape_cast %5 : vector<4xf32> to vector<1x4xf32>
    %cst_5 = arith.constant 0.001953125 : f32
    %7 = vector.broadcast %cst_5 : f32 to vector<1x4xf32>
    %8 = arith.mulf %6, %7 : vector<1x4xf32>
    %9 = vector.broadcast %8 : vector<1x4xf32> to vector<512x4xf32>
    %10 = arith.subf %0, %9 : vector<512x4xf32>
    %11 = arith.mulf %10, %10 : vector<512x4xf32>
    %cst_6 = arith.constant dense<0.000000e+00> : vector<4xf32>
    %12 = vector.multi_reduction <add>, %11, %cst_6 [0] : vector<512x4xf32> to vector<4xf32>
    %13 = vector.shape_cast %12 : vector<4xf32> to vector<1x4xf32>
    %cst_7 = arith.constant 0.001953125 : f32
    %14 = vector.broadcast %cst_7 : f32 to vector<1x4xf32>
    %15 = arith.mulf %13, %14 : vector<1x4xf32>
    %cst_8 = arith.constant 9.99999974E-6 : f32
    %16 = vector.broadcast %cst_8 : f32 to vector<1x4xf32>
    %17 = arith.addf %15, %16 : vector<1x4xf32>
    %18 = math.rsqrt %17 : vector<1x4xf32>
    %19 = vector.broadcast %18 : vector<1x4xf32> to vector<512x4xf32>
    %20 = arith.mulf %10, %19 : vector<512x4xf32>
    %21 = vector.broadcast %3 : vector<1x4xf32> to vector<512x4xf32>
    %22 = arith.mulf %20, %21 : vector<512x4xf32>
    %23 = vector.broadcast %4 : vector<1x4xf32> to vector<512x4xf32>
    %24 = arith.addf %22, %23 : vector<512x4xf32>
    %cst_9 = arith.constant 0.000000e+00 : f32
    %25 = vector.broadcast %cst_9 : f32 to vector<512x4xf32>
    %26 = arith.maximumf %24, %25 : vector<512x4xf32>
    %27 = vector.extract_strided_slice %1 {offsets = [0, 0], sizes = [4, 4], strides = [1, 1]} : vector<84x8xbf16> to vector<4x4xbf16>
    %28 = arith.truncf %26 : vector<512x4xf32> to vector<512x4xbf16>
    %cst_10 = arith.constant dense<0.000000e+00> : vector<512x4xf32>
    %29 = tpu.matmul %28, %27, %cst_10 {dimension_numbers = #tpu.dot_dimension_numbers<[1], [0], [0], [1], [0, 0, 1, 1], [], []>} : vector<512x4xbf16>, vector<4x4xbf16>, vector<512x4xf32> -> vector<512x4xf32>
    %30 = vector.extract_strided_slice %2 {offsets = [2, 0], sizes = [1, 4], strides = [1, 1]} : vector<10x8xf32> to vector<1x4xf32>
    %31 = vector.broadcast %30 : vector<1x4xf32> to vector<512x4xf32>
    %32 = arith.addf %29, %31 : vector<512x4xf32>
    %33 = vector.extract_strided_slice %2 {offsets = [3, 0], sizes = [1, 4], strides = [1, 1]} : vector<10x8xf32> to vector<1x4xf32>
    %34 = vector.extract_strided_slice %2 {offsets = [4, 0], sizes = [1, 4], strides = [1, 1]} : vector<10x8xf32> to vector<1x4xf32>
    %cst_11 = arith.constant dense<0.000000e+00> : vector<4xf32>
    %35 = vector.multi_reduction <add>, %32, %cst_11 [0] : vector<512x4xf32> to vector<4xf32>
    %36 = vector.shape_cast %35 : vector<4xf32> to vector<1x4xf32>
    %cst_12 = arith.constant 0.001953125 : f32
    %37 = vector.broadcast %cst_12 : f32 to vector<1x4xf32>
    %38 = arith.mulf %36, %37 : vector<1x4xf32>
    %39 = vector.broadcast %38 : vector<1x4xf32> to vector<512x4xf32>
    %40 = arith.subf %32, %39 : vector<512x4xf32>
    %41 = arith.mulf %40, %40 : vector<512x4xf32>
    %cst_13 = arith.constant dense<0.000000e+00> : vector<4xf32>
    %42 = vector.multi_reduction <add>, %41, %cst_13 [0] : vector<512x4xf32> to vector<4xf32>
    %43 = vector.shape_cast %42 : vector<4xf32> to vector<1x4xf32>
    %cst_14 = arith.constant 0.001953125 : f32
    %44 = vector.broadcast %cst_14 : f32 to vector<1x4xf32>
    %45 = arith.mulf %43, %44 : vector<1x4xf32>
    %cst_15 = arith.constant 9.99999974E-6 : f32
    %46 = vector.broadcast %cst_15 : f32 to vector<1x4xf32>
    %47 = arith.addf %45, %46 : vector<1x4xf32>
    %48 = math.rsqrt %47 : vector<1x4xf32>
    %49 = vector.broadcast %48 : vector<1x4xf32> to vector<512x4xf32>
    %50 = arith.mulf %40, %49 : vector<512x4xf32>
    %51 = vector.broadcast %33 : vector<1x4xf32> to vector<512x4xf32>
    %52 = arith.mulf %50, %51 : vector<512x4xf32>
    %53 = vector.broadcast %34 : vector<1x4xf32> to vector<512x4xf32>
    %54 = arith.addf %52, %53 : vector<512x4xf32>
    %cst_16 = arith.constant 0.000000e+00 : f32
    %55 = vector.broadcast %cst_16 : f32 to vector<512x4xf32>
    %56 = arith.maximumf %54, %55 : vector<512x4xf32>
    %cst_17 = arith.constant 0.000000e+00 : f32
    %57 = vector.broadcast %cst_17 : f32 to vector<2x1x9x4xf32>
    %c0_18 = arith.constant 0 : index
    %c8 = arith.constant 8 : index
    %c0_19 = arith.constant 0 : index
    %c0_20 = arith.constant 0 : index
    %58 = vector.load %arg4[%c0_18, %c8, %c0_19, %c0_20] : memref<8x9x9x4xf32, #tpu.memory_space<vmem>>, vector<2x1x9x4xf32>
    tpu.vector_store %arg4[%c0_18, %c8, %c0_19, %c0_20], %57 {strides = array<i32>} : memref<8x9x9x4xf32, #tpu.memory_space<vmem>>, vector<2x1x9x4xf32>,
    %cst_21 = arith.constant 0.000000e+00 : f32
    %59 = vector.broadcast %cst_21 : f32 to vector<2x8x1x4xf32>
    %c0_22 = arith.constant 0 : index
    %c0_23 = arith.constant 0 : index
    %c8_24 = arith.constant 8 : index
    %c0_25 = arith.constant 0 : index
    %60 = vector.load %arg4[%c0_22, %c0_23, %c8_24, %c0_25] : memref<8x9x9x4xf32, #tpu.memory_space<vmem>>, vector<2x8x1x4xf32>
    tpu.vector_store %arg4[%c0_22, %c0_23, %c8_24, %c0_25], %59 {strides = array<i32>} : memref<8x9x9x4xf32, #tpu.memory_space<vmem>>, vector<2x8x1x4xf32>,
    %61 = vector.extract_strided_slice %56 {offsets = [0, 0], sizes = [128, 4], strides = [1, 1]} : vector<512x4xf32> to vector<128x4xf32>
    %62 = vector.shape_cast %61 : vector<128x4xf32> to vector<2x8x8x4xf32>
    %c0_26 = arith.constant 0 : index
    %c0_27 = arith.constant 0 : index
    %c0_28 = arith.constant 0 : index
    %c0_29 = arith.constant 0 : index
    %63 = vector.load %arg4[%c0_26, %c0_27, %c0_28, %c0_29] : memref<8x9x9x4xf32, #tpu.memory_space<vmem>>, vector<2x8x8x4xf32>
    tpu.vector_store %arg4[%c0_26, %c0_27, %c0_28, %c0_29], %62 {strides = array<i32>} : memref<8x9x9x4xf32, #tpu.memory_space<vmem>>, vector<2x8x8x4xf32>,
    %cst_30 = arith.constant 0.000000e+00 : f32
    %64 = vector.broadcast %cst_30 : f32 to vector<2x1x9x4xf32>
    %c2 = arith.constant 2 : index
    %c8_31 = arith.constant 8 : index
    %c0_32 = arith.constant 0 : index
    %c0_33 = arith.constant 0 : index
    %65 = vector.load %arg4[%c2, %c8_31, %c0_32, %c0_33] : memref<8x9x9x4xf32, #tpu.memory_space<vmem>>, vector<2x1x9x4xf32>
    tpu.vector_store %arg4[%c2, %c8_31, %c0_32, %c0_33], %64 {strides = array<i32>} : memref<8x9x9x4xf32, #tpu.memory_space<vmem>>, vector<2x1x9x4xf32>,
    %cst_34 = arith.constant 0.000000e+00 : f32
    %66 = vector.broadcast %cst_34 : f32 to vector<2x8x1x4xf32>
    %c2_35 = arith.constant 2 : index
    %c0_36 = arith.constant 0 : index
    %c0_37 = arith.constant 0 : index
    %c0_38 = arith.constant 0 : index
    %67 = vector.load %arg4[%c2_35, %c0_36, %c0_37, %c0_38] : memref<8x9x9x4xf32, #tpu.memory_space<vmem>>, vector<2x8x1x4xf32>
    tpu.vector_store %arg4[%c2_35, %c0_36, %c0_37, %c0_38], %66 {strides = array<i32>} : memref<8x9x9x4xf32, #tpu.memory_space<vmem>>, vector<2x8x1x4xf32>,
    %68 = vector.extract_strided_slice %56 {offsets = [128, 0], sizes = [128, 4], strides = [1, 1]} : vector<512x4xf32> to vector<128x4xf32>
    %69 = vector.shape_cast %68 : vector<128x4xf32> to vector<2x8x8x4xf32>
    %c2_39 = arith.constant 2 : index
    %c0_40 = arith.constant 0 : index
    %c1 = arith.constant 1 : index
    %c0_41 = arith.constant 0 : index
    %70 = vector.load %arg4[%c2_39, %c0_40, %c1, %c0_41] : memref<8x9x9x4xf32, #tpu.memory_space<vmem>>, vector<2x8x8x4xf32>
    tpu.vector_store %arg4[%c2_39, %c0_40, %c1, %c0_41], %69 {strides = array<i32>} : memref<8x9x9x4xf32, #tpu.memory_space<vmem>>, vector<2x8x8x4xf32>,
    %cst_42 = arith.constant 0.000000e+00 : f32
    %71 = vector.broadcast %cst_42 : f32 to vector<2x1x9x4xf32>
    %c4 = arith.constant 4 : index
    %c0_43 = arith.constant 0 : index
    %c0_44 = arith.constant 0 : index
    %c0_45 = arith.constant 0 : index
    %72 = vector.load %arg4[%c4, %c0_43, %c0_44, %c0_45] : memref<8x9x9x4xf32, #tpu.memory_space<vmem>>, vector<2x1x9x4xf32>
    tpu.vector_store %arg4[%c4, %c0_43, %c0_44, %c0_45], %71 {strides = array<i32>} : memref<8x9x9x4xf32, #tpu.memory_space<vmem>>, vector<2x1x9x4xf32>,
    %cst_46 = arith.constant 0.000000e+00 : f32
    %73 = vector.broadcast %cst_46 : f32 to vector<2x8x1x4xf32>
    %c4_47 = arith.constant 4 : index
    %c1_48 = arith.constant 1 : index
    %c8_49 = arith.constant 8 : index
    %c0_50 = arith.constant 0 : index
    %74 = vector.load %arg4[%c4_47, %c1_48, %c8_49, %c0_50] : memref<8x9x9x4xf32, #tpu.memory_space<vmem>>, vector<2x8x1x4xf32>
    tpu.vector_store %arg4[%c4_47, %c1_48, %c8_49, %c0_50], %73 {strides = array<i32>} : memref<8x9x9x4xf32, #tpu.memory_space<vmem>>, vector<2x8x1x4xf32>,
    %75 = vector.extract_strided_slice %56 {offsets = [256, 0], sizes = [128, 4], strides = [1, 1]} : vector<512x4xf32> to vector<128x4xf32>
    %76 = vector.shape_cast %75 : vector<128x4xf32> to vector<2x8x8x4xf32>
    %c4_51 = arith.constant 4 : index
    %c1_52 = arith.constant 1 : index
    %c0_53 = arith.constant 0 : index
    %c0_54 = arith.constant 0 : index
    %77 = vector.load %arg4[%c4_51, %c1_52, %c0_53, %c0_54] : memref<8x9x9x4xf32, #tpu.memory_space<vmem>>, vector<2x8x8x4xf32>
    tpu.vector_store %arg4[%c4_51, %c1_52, %c0_53, %c0_54], %76 {strides = array<i32>} : memref<8x9x9x4xf32, #tpu.memory_space<vmem>>, vector<2x8x8x4xf32>,
    %cst_55 = arith.constant 0.000000e+00 : f32
    %78 = vector.broadcast %cst_55 : f32 to vector<2x1x9x4xf32>
    %c6 = arith.constant 6 : index
    %c0_56 = arith.constant 0 : index
    %c0_57 = arith.constant 0 : index
    %c0_58 = arith.constant 0 : index
    %79 = vector.load %arg4[%c6, %c0_56, %c0_57, %c0_58] : memref<8x9x9x4xf32, #tpu.memory_space<vmem>>, vector<2x1x9x4xf32>
    tpu.vector_store %arg4[%c6, %c0_56, %c0_57, %c0_58], %78 {strides = array<i32>} : memref<8x9x9x4xf32, #tpu.memory_space<vmem>>, vector<2x1x9x4xf32>,
    %cst_59 = arith.constant 0.000000e+00 : f32
    %80 = vector.broadcast %cst_59 : f32 to vector<2x8x1x4xf32>
    %c6_60 = arith.constant 6 : index
    %c1_61 = arith.constant 1 : index
    %c0_62 = arith.constant 0 : index
    %c0_63 = arith.constant 0 : index
    %81 = vector.load %arg4[%c6_60, %c1_61, %c0_62, %c0_63] : memref<8x9x9x4xf32, #tpu.memory_space<vmem>>, vector<2x8x1x4xf32>
    tpu.vector_store %arg4[%c6_60, %c1_61, %c0_62, %c0_63], %80 {strides = array<i32>} : memref<8x9x9x4xf32, #tpu.memory_space<vmem>>, vector<2x8x1x4xf32>,
    %82 = vector.extract_strided_slice %56 {offsets = [384, 0], sizes = [128, 4], strides = [1, 1]} : vector<512x4xf32> to vector<128x4xf32>
    %83 = vector.shape_cast %82 : vector<128x4xf32> to vector<2x8x8x4xf32>
    %c6_64 = arith.constant 6 : index
    %c1_65 = arith.constant 1 : index
    %c1_66 = arith.constant 1 : index
    %c0_67 = arith.constant 0 : index
    %84 = vector.load %arg4[%c6_64, %c1_65, %c1_66, %c0_67] : memref<8x9x9x4xf32, #tpu.memory_space<vmem>>, vector<2x8x8x4xf32>
    tpu.vector_store %arg4[%c6_64, %c1_65, %c1_66, %c0_67], %83 {strides = array<i32>} : memref<8x9x9x4xf32, #tpu.memory_space<vmem>>, vector<2x8x8x4xf32>,
    %c6_68 = arith.constant 6 : index
    %c0_69 = arith.constant 0 : index
    %c0_70 = arith.constant 0 : index
    %c0_71 = arith.constant 0 : index
    %85 = vector.load %arg4[%c6_68, %c0_69, %c0_70, %c0_71] : memref<8x9x9x4xf32, #tpu.memory_space<vmem>>, vector<2x8x8x4xf32>
    %86 = vector.shape_cast %85 : vector<2x8x8x4xf32> to vector<128x4xf32>
    %c0_72 = arith.constant 0 : index
    %c0_73 = arith.constant 0 : index
    %87 = vector.load %arg5[%c0_72, %c0_73] : memref<128x36xf32, #tpu.memory_space<vmem>>, vector<128x4xf32>
    tpu.vector_store %arg5[%c0_72, %c0_73], %86 {strides = array<i32>} : memref<128x36xf32, #tpu.memory_space<vmem>>, vector<128x4xf32>,
    %c4_74 = arith.constant 4 : index
    %c0_75 = arith.constant 0 : index
    %c0_76 = arith.constant 0 : index
    %c0_77 = arith.constant 0 : index
    %88 = vector.load %arg4[%c4_74, %c0_75, %c0_76, %c0_77] : memref<8x9x9x4xf32, #tpu.memory_space<vmem>>, vector<2x8x8x4xf32>
    %89 = vector.shape_cast %88 : vector<2x8x8x4xf32> to vector<128x4xf32>
    %c0_78 = arith.constant 0 : index
    %c4_79 = arith.constant 4 : index
    %90 = vector.load %arg5[%c0_78, %c4_79] : memref<128x36xf32, #tpu.memory_space<vmem>>, vector<128x4xf32>
    tpu.vector_store %arg5[%c0_78, %c4_79], %89 {strides = array<i32>} : memref<128x36xf32, #tpu.memory_space<vmem>>, vector<128x4xf32>,
    %c6_80 = arith.constant 6 : index
    %c0_81 = arith.constant 0 : index
    %c1_82 = arith.constant 1 : index
    %c0_83 = arith.constant 0 : index
    %91 = vector.load %arg4[%c6_80, %c0_81, %c1_82, %c0_83] : memref<8x9x9x4xf32, #tpu.memory_space<vmem>>, vector<2x8x8x4xf32>
    %92 = vector.shape_cast %91 : vector<2x8x8x4xf32> to vector<128x4xf32>
    %c0_84 = arith.constant 0 : index
    %c8_85 = arith.constant 8 : index
    %93 = vector.load %arg5[%c0_84, %c8_85] : memref<128x36xf32, #tpu.memory_space<vmem>>, vector<128x4xf32>
    tpu.vector_store %arg5[%c0_84, %c8_85], %92 {strides = array<i32>} : memref<128x36xf32, #tpu.memory_space<vmem>>, vector<128x4xf32>,
    %c2_86 = arith.constant 2 : index
    %c0_87 = arith.constant 0 : index
    %c0_88 = arith.constant 0 : index
    %c0_89 = arith.constant 0 : index
    %94 = vector.load %arg4[%c2_86, %c0_87, %c0_88, %c0_89] : memref<8x9x9x4xf32, #tpu.memory_space<vmem>>, vector<2x8x8x4xf32>
    %95 = vector.shape_cast %94 : vector<2x8x8x4xf32> to vector<128x4xf32>
    %c0_90 = arith.constant 0 : index
    %c12 = arith.constant 12 : index
    %96 = vector.load %arg5[%c0_90, %c12] : memref<128x36xf32, #tpu.memory_space<vmem>>, vector<128x4xf32>
    tpu.vector_store %arg5[%c0_90, %c12], %95 {strides = array<i32>} : memref<128x36xf32, #tpu.memory_space<vmem>>, vector<128x4xf32>,
    %c0_91 = arith.constant 0 : index
    %c0_92 = arith.constant 0 : index
    %c0_93 = arith.constant 0 : index
    %c0_94 = arith.constant 0 : index
    %97 = vector.load %arg4[%c0_91, %c0_92, %c0_93, %c0_94] : memref<8x9x9x4xf32, #tpu.memory_space<vmem>>, vector<2x8x8x4xf32>
    %98 = vector.shape_cast %97 : vector<2x8x8x4xf32> to vector<128x4xf32>
    %c0_95 = arith.constant 0 : index
    %c16 = arith.constant 16 : index
    %99 = vector.load %arg5[%c0_95, %c16] : memref<128x36xf32, #tpu.memory_space<vmem>>, vector<128x4xf32>
    tpu.vector_store %arg5[%c0_95, %c16], %98 {strides = array<i32>} : memref<128x36xf32, #tpu.memory_space<vmem>>, vector<128x4xf32>,
    %c2_96 = arith.constant 2 : index
    %c0_97 = arith.constant 0 : index
    %c1_98 = arith.constant 1 : index
    %c0_99 = arith.constant 0 : index
    %100 = vector.load %arg4[%c2_96, %c0_97, %c1_98, %c0_99] : memref<8x9x9x4xf32, #tpu.memory_space<vmem>>, vector<2x8x8x4xf32>
    %101 = vector.shape_cast %100 : vector<2x8x8x4xf32> to vector<128x4xf32>
    %c0_100 = arith.constant 0 : index
    %c20 = arith.constant 20 : index
    %102 = vector.load %arg5[%c0_100, %c20] : memref<128x36xf32, #tpu.memory_space<vmem>>, vector<128x4xf32>
    tpu.vector_store %arg5[%c0_100, %c20], %101 {strides = array<i32>} : memref<128x36xf32, #tpu.memory_space<vmem>>, vector<128x4xf32>,
    %c6_101 = arith.constant 6 : index
    %c1_102 = arith.constant 1 : index
    %c0_103 = arith.constant 0 : index
    %c0_104 = arith.constant 0 : index
    %103 = vector.load %arg4[%c6_101, %c1_102, %c0_103, %c0_104] : memref<8x9x9x4xf32, #tpu.memory_space<vmem>>, vector<2x8x8x4xf32>
    %104 = vector.shape_cast %103 : vector<2x8x8x4xf32> to vector<128x4xf32>
    %c0_105 = arith.constant 0 : index
    %c24 = arith.constant 24 : index
    %105 = vector.load %arg5[%c0_105, %c24] : memref<128x36xf32, #tpu.memory_space<vmem>>, vector<128x4xf32>
    tpu.vector_store %arg5[%c0_105, %c24], %104 {strides = array<i32>} : memref<128x36xf32, #tpu.memory_space<vmem>>, vector<128x4xf32>,
    %c4_106 = arith.constant 4 : index
    %c1_107 = arith.constant 1 : index
    %c0_108 = arith.constant 0 : index
    %c0_109 = arith.constant 0 : index
    %106 = vector.load %arg4[%c4_106, %c1_107, %c0_108, %c0_109] : memref<8x9x9x4xf32, #tpu.memory_space<vmem>>, vector<2x8x8x4xf32>
    %107 = vector.shape_cast %106 : vector<2x8x8x4xf32> to vector<128x4xf32>
    %c0_110 = arith.constant 0 : index
    %c28 = arith.constant 28 : index
    %108 = vector.load %arg5[%c0_110, %c28] : memref<128x36xf32, #tpu.memory_space<vmem>>, vector<128x4xf32>
    tpu.vector_store %arg5[%c0_110, %c28], %107 {strides = array<i32>} : memref<128x36xf32, #tpu.memory_space<vmem>>, vector<128x4xf32>,
    %c6_111 = arith.constant 6 : index
    %c1_112 = arith.constant 1 : index
    %c1_113 = arith.constant 1 : index
    %c0_114 = arith.constant 0 : index
    %109 = vector.load %arg4[%c6_111, %c1_112, %c1_113, %c0_114] : memref<8x9x9x4xf32, #tpu.memory_space<vmem>>, vector<2x8x8x4xf32>
    %110 = vector.shape_cast %109 : vector<2x8x8x4xf32> to vector<128x4xf32>
    %c0_115 = arith.constant 0 : index
    %c32 = arith.constant 32 : index
    %111 = vector.load %arg5[%c0_115, %c32] : memref<128x36xf32, #tpu.memory_space<vmem>>, vector<128x4xf32>
    tpu.vector_store %arg5[%c0_115, %c32], %110 {strides = array<i32>} : memref<128x36xf32, #tpu.memory_space<vmem>>, vector<128x4xf32>,
    %c0_116 = arith.constant 0 : index
    %c0_117 = arith.constant 0 : index
    %112 = vector.load %arg5[%c0_116, %c0_117] : memref<128x36xf32, #tpu.memory_space<vmem>>, vector<128x36xf32>
    %113 = vector.extract_strided_slice %1 {offsets = [16, 0], sizes = [36, 4], strides = [1, 1]} : vector<84x8xbf16> to vector<36x4xbf16>
    %114 = arith.truncf %112 : vector<128x36xf32> to vector<128x36xbf16>
    %cst_118 = arith.constant dense<0.000000e+00> : vector<128x4xf32>
    %115 = tpu.matmul %114, %113, %cst_118 {dimension_numbers = #tpu.dot_dimension_numbers<[1], [0], [0], [1], [0, 0, 1, 1], [], []>} : vector<128x36xbf16>, vector<36x4xbf16>, vector<128x4xf32> -> vector<128x4xf32>
    %116 = vector.extract_strided_slice %2 {offsets = [5, 0], sizes = [1, 4], strides = [1, 1]} : vector<10x8xf32> to vector<1x4xf32>
    %117 = vector.broadcast %116 : vector<1x4xf32> to vector<128x4xf32>
    %118 = arith.addf %115, %117 : vector<128x4xf32>
    %119 = vector.extract_strided_slice %2 {offsets = [6, 0], sizes = [1, 4], strides = [1, 1]} : vector<10x8xf32> to vector<1x4xf32>
    %120 = vector.extract_strided_slice %2 {offsets = [7, 0], sizes = [1, 4], strides = [1, 1]} : vector<10x8xf32> to vector<1x4xf32>
    %cst_119 = arith.constant dense<0.000000e+00> : vector<4xf32>
    %121 = vector.multi_reduction <add>, %118, %cst_119 [0] : vector<128x4xf32> to vector<4xf32>
    %122 = vector.shape_cast %121 : vector<4xf32> to vector<1x4xf32>
    %cst_120 = arith.constant 7.812500e-03 : f32
    %123 = vector.broadcast %cst_120 : f32 to vector<1x4xf32>
    %124 = arith.mulf %122, %123 : vector<1x4xf32>
    %125 = vector.broadcast %124 : vector<1x4xf32> to vector<128x4xf32>
    %126 = arith.subf %118, %125 : vector<128x4xf32>
    %127 = arith.mulf %126, %126 : vector<128x4xf32>
    %cst_121 = arith.constant dense<0.000000e+00> : vector<4xf32>
    %128 = vector.multi_reduction <add>, %127, %cst_121 [0] : vector<128x4xf32> to vector<4xf32>
    %129 = vector.shape_cast %128 : vector<4xf32> to vector<1x4xf32>
    %cst_122 = arith.constant 7.812500e-03 : f32
    %130 = vector.broadcast %cst_122 : f32 to vector<1x4xf32>
    %131 = arith.mulf %129, %130 : vector<1x4xf32>
    %cst_123 = arith.constant 9.99999974E-6 : f32
    %132 = vector.broadcast %cst_123 : f32 to vector<1x4xf32>
    %133 = arith.addf %131, %132 : vector<1x4xf32>
    %134 = math.rsqrt %133 : vector<1x4xf32>
    %135 = vector.broadcast %134 : vector<1x4xf32> to vector<128x4xf32>
    %136 = arith.mulf %126, %135 : vector<128x4xf32>
    %137 = vector.broadcast %119 : vector<1x4xf32> to vector<128x4xf32>
    %138 = arith.mulf %136, %137 : vector<128x4xf32>
    %139 = vector.broadcast %120 : vector<1x4xf32> to vector<128x4xf32>
    %140 = arith.addf %138, %139 : vector<128x4xf32>
    %cst_124 = arith.constant 0.000000e+00 : f32
    %141 = vector.broadcast %cst_124 : f32 to vector<128x4xf32>
    %142 = arith.maximumf %140, %141 : vector<128x4xf32>
    %143 = vector.extract_strided_slice %1 {offsets = [64, 0], sizes = [4, 8], strides = [1, 1]} : vector<84x8xbf16> to vector<4x8xbf16>
    %144 = arith.truncf %142 : vector<128x4xf32> to vector<128x4xbf16>
    %cst_125 = arith.constant dense<0.000000e+00> : vector<128x8xf32>
    %145 = tpu.matmul %144, %143, %cst_125 {dimension_numbers = #tpu.dot_dimension_numbers<[1], [0], [0], [1], [0, 0, 1, 1], [], []>} : vector<128x4xbf16>, vector<4x8xbf16>, vector<128x8xf32> -> vector<128x8xf32>
    %146 = vector.extract_strided_slice %2 {offsets = [8, 0], sizes = [1, 8], strides = [1, 1]} : vector<10x8xf32> to vector<1x8xf32>
    %147 = vector.broadcast %146 : vector<1x8xf32> to vector<128x8xf32>
    %148 = arith.addf %145, %147 : vector<128x8xf32>
    %149 = vector.extract_strided_slice %0 {offsets = [0, 0], sizes = [128, 4], strides = [1, 1]} : vector<512x4xf32> to vector<128x4xf32>
    %150 = vector.extract_strided_slice %1 {offsets = [80, 0], sizes = [4, 8], strides = [1, 1]} : vector<84x8xbf16> to vector<4x8xbf16>
    %151 = arith.truncf %149 : vector<128x4xf32> to vector<128x4xbf16>
    %cst_126 = arith.constant dense<0.000000e+00> : vector<128x8xf32>
    %152 = tpu.matmul %151, %150, %cst_126 {dimension_numbers = #tpu.dot_dimension_numbers<[1], [0], [0], [1], [0, 0, 1, 1], [], []>} : vector<128x4xbf16>, vector<4x8xbf16>, vector<128x8xf32> -> vector<128x8xf32>
    %153 = vector.extract_strided_slice %2 {offsets = [9, 0], sizes = [1, 8], strides = [1, 1]} : vector<10x8xf32> to vector<1x8xf32>
    %154 = vector.broadcast %153 : vector<1x8xf32> to vector<128x8xf32>
    %155 = arith.addf %152, %154 : vector<128x8xf32>
    %156 = arith.addf %148, %155 : vector<128x8xf32>
    %c0_127 = arith.constant 0 : index
    %c0_128 = arith.constant 0 : index
    %157 = vector.load %arg3[%c0_127, %c0_128] : memref<128x8xf32, #tpu.memory_space<vmem>>, vector<128x8xf32>
    tpu.vector_store %arg3[%c0_127, %c0_128], %156 {strides = array<i32>} : memref<128x8xf32, #tpu.memory_space<vmem>>, vector<128x8xf32>,
    return
  }
}

module attributes {stable_mosaic.version = 11 : i64} {
  func.func @kernel(%arg0: memref<128x8xf32, #tpu.memory_space<vmem>>, %arg1: memref<68x8xbf16, #tpu.memory_space<vmem>>, %arg2: memref<9x8xf32, #tpu.memory_space<vmem>>, %arg3: memref<128x8xf32, #tpu.memory_space<vmem>>, %arg4: memref<2x10x10x4xf32, #tpu.memory_space<vmem>>, %arg5: memref<128x36xf32, #tpu.memory_space<vmem>>) attributes {dimension_semantics = [], scalar_prefetch = 0 : i64, scratch_operands = 2 : i64, tpu.core_type = #tpu.core_type<tc>} {
    %c0 = arith.constant 0 : index
    %c0_0 = arith.constant 0 : index
    %0 = vector.load %arg0[%c0, %c0_0] : memref<128x8xf32, #tpu.memory_space<vmem>>, vector<128x8xf32>
    %c0_1 = arith.constant 0 : index
    %c0_2 = arith.constant 0 : index
    %1 = vector.load %arg1[%c0_1, %c0_2] : memref<68x8xbf16, #tpu.memory_space<vmem>>, vector<68x8xbf16>
    %c0_3 = arith.constant 0 : index
    %c0_4 = arith.constant 0 : index
    %2 = vector.load %arg2[%c0_3, %c0_4] : memref<9x8xf32, #tpu.memory_space<vmem>>, vector<9x8xf32>
    %3 = vector.extract_strided_slice %2 {offsets = [0, 0], sizes = [1, 8], strides = [1, 1]} : vector<9x8xf32> to vector<1x8xf32>
    %4 = vector.extract_strided_slice %2 {offsets = [1, 0], sizes = [1, 8], strides = [1, 1]} : vector<9x8xf32> to vector<1x8xf32>
    %cst = arith.constant dense<0.000000e+00> : vector<8xf32>
    %5 = vector.multi_reduction <add>, %0, %cst [0] : vector<128x8xf32> to vector<8xf32>
    %6 = vector.shape_cast %5 : vector<8xf32> to vector<1x8xf32>
    %cst_5 = arith.constant 7.812500e-03 : f32
    %7 = vector.broadcast %cst_5 : f32 to vector<1x8xf32>
    %8 = arith.mulf %6, %7 : vector<1x8xf32>
    %9 = vector.broadcast %8 : vector<1x8xf32> to vector<128x8xf32>
    %10 = arith.subf %0, %9 : vector<128x8xf32>
    %11 = arith.mulf %10, %10 : vector<128x8xf32>
    %cst_6 = arith.constant dense<0.000000e+00> : vector<8xf32>
    %12 = vector.multi_reduction <add>, %11, %cst_6 [0] : vector<128x8xf32> to vector<8xf32>
    %13 = vector.shape_cast %12 : vector<8xf32> to vector<1x8xf32>
    %cst_7 = arith.constant 7.812500e-03 : f32
    %14 = vector.broadcast %cst_7 : f32 to vector<1x8xf32>
    %15 = arith.mulf %13, %14 : vector<1x8xf32>
    %cst_8 = arith.constant 9.99999974E-6 : f32
    %16 = vector.broadcast %cst_8 : f32 to vector<1x8xf32>
    %17 = arith.addf %15, %16 : vector<1x8xf32>
    %18 = math.rsqrt %17 : vector<1x8xf32>
    %19 = vector.broadcast %18 : vector<1x8xf32> to vector<128x8xf32>
    %20 = arith.mulf %10, %19 : vector<128x8xf32>
    %21 = vector.broadcast %3 : vector<1x8xf32> to vector<128x8xf32>
    %22 = arith.mulf %20, %21 : vector<128x8xf32>
    %23 = vector.broadcast %4 : vector<1x8xf32> to vector<128x8xf32>
    %24 = arith.addf %22, %23 : vector<128x8xf32>
    %cst_9 = arith.constant 0.000000e+00 : f32
    %25 = vector.broadcast %cst_9 : f32 to vector<128x8xf32>
    %26 = arith.maximumf %24, %25 : vector<128x8xf32>
    %27 = vector.extract_strided_slice %1 {offsets = [0, 0], sizes = [8, 4], strides = [1, 1]} : vector<68x8xbf16> to vector<8x4xbf16>
    %28 = arith.truncf %26 : vector<128x8xf32> to vector<128x8xbf16>
    %cst_10 = arith.constant dense<0.000000e+00> : vector<128x4xf32>
    %29 = tpu.matmul %28, %27, %cst_10 {dimension_numbers = #tpu.dot_dimension_numbers<[1], [0], [0], [1], [0, 0, 1, 1], [], []>} : vector<128x8xbf16>, vector<8x4xbf16>, vector<128x4xf32> -> vector<128x4xf32>
    %30 = vector.extract_strided_slice %2 {offsets = [2, 0], sizes = [1, 4], strides = [1, 1]} : vector<9x8xf32> to vector<1x4xf32>
    %31 = vector.broadcast %30 : vector<1x4xf32> to vector<128x4xf32>
    %32 = arith.addf %29, %31 : vector<128x4xf32>
    %33 = vector.extract_strided_slice %2 {offsets = [3, 0], sizes = [1, 4], strides = [1, 1]} : vector<9x8xf32> to vector<1x4xf32>
    %34 = vector.extract_strided_slice %2 {offsets = [4, 0], sizes = [1, 4], strides = [1, 1]} : vector<9x8xf32> to vector<1x4xf32>
    %cst_11 = arith.constant dense<0.000000e+00> : vector<4xf32>
    %35 = vector.multi_reduction <add>, %32, %cst_11 [0] : vector<128x4xf32> to vector<4xf32>
    %36 = vector.shape_cast %35 : vector<4xf32> to vector<1x4xf32>
    %cst_12 = arith.constant 7.812500e-03 : f32
    %37 = vector.broadcast %cst_12 : f32 to vector<1x4xf32>
    %38 = arith.mulf %36, %37 : vector<1x4xf32>
    %39 = vector.broadcast %38 : vector<1x4xf32> to vector<128x4xf32>
    %40 = arith.subf %32, %39 : vector<128x4xf32>
    %41 = arith.mulf %40, %40 : vector<128x4xf32>
    %cst_13 = arith.constant dense<0.000000e+00> : vector<4xf32>
    %42 = vector.multi_reduction <add>, %41, %cst_13 [0] : vector<128x4xf32> to vector<4xf32>
    %43 = vector.shape_cast %42 : vector<4xf32> to vector<1x4xf32>
    %cst_14 = arith.constant 7.812500e-03 : f32
    %44 = vector.broadcast %cst_14 : f32 to vector<1x4xf32>
    %45 = arith.mulf %43, %44 : vector<1x4xf32>
    %cst_15 = arith.constant 9.99999974E-6 : f32
    %46 = vector.broadcast %cst_15 : f32 to vector<1x4xf32>
    %47 = arith.addf %45, %46 : vector<1x4xf32>
    %48 = math.rsqrt %47 : vector<1x4xf32>
    %49 = vector.broadcast %48 : vector<1x4xf32> to vector<128x4xf32>
    %50 = arith.mulf %40, %49 : vector<128x4xf32>
    %51 = vector.broadcast %33 : vector<1x4xf32> to vector<128x4xf32>
    %52 = arith.mulf %50, %51 : vector<128x4xf32>
    %53 = vector.broadcast %34 : vector<1x4xf32> to vector<128x4xf32>
    %54 = arith.addf %52, %53 : vector<128x4xf32>
    %cst_16 = arith.constant 0.000000e+00 : f32
    %55 = vector.broadcast %cst_16 : f32 to vector<128x4xf32>
    %56 = arith.maximumf %54, %55 : vector<128x4xf32>
    %cst_17 = arith.constant 0.000000e+00 : f32
    %57 = vector.broadcast %cst_17 : f32 to vector<2x1x10x4xf32>
    %c0_18 = arith.constant 0 : index
    %c0_19 = arith.constant 0 : index
    %c0_20 = arith.constant 0 : index
    %c0_21 = arith.constant 0 : index
    %58 = vector.load %arg4[%c0_18, %c0_19, %c0_20, %c0_21] : memref<2x10x10x4xf32, #tpu.memory_space<vmem>>, vector<2x1x10x4xf32>
    tpu.vector_store %arg4[%c0_18, %c0_19, %c0_20, %c0_21], %57 {strides = array<i32>} : memref<2x10x10x4xf32, #tpu.memory_space<vmem>>, vector<2x1x10x4xf32>,
    %cst_22 = arith.constant 0.000000e+00 : f32
    %59 = vector.broadcast %cst_22 : f32 to vector<2x1x10x4xf32>
    %c0_23 = arith.constant 0 : index
    %c9 = arith.constant 9 : index
    %c0_24 = arith.constant 0 : index
    %c0_25 = arith.constant 0 : index
    %60 = vector.load %arg4[%c0_23, %c9, %c0_24, %c0_25] : memref<2x10x10x4xf32, #tpu.memory_space<vmem>>, vector<2x1x10x4xf32>
    tpu.vector_store %arg4[%c0_23, %c9, %c0_24, %c0_25], %59 {strides = array<i32>} : memref<2x10x10x4xf32, #tpu.memory_space<vmem>>, vector<2x1x10x4xf32>,
    %cst_26 = arith.constant 0.000000e+00 : f32
    %61 = vector.broadcast %cst_26 : f32 to vector<2x8x1x4xf32>
    %c0_27 = arith.constant 0 : index
    %c1 = arith.constant 1 : index
    %c0_28 = arith.constant 0 : index
    %c0_29 = arith.constant 0 : index
    %62 = vector.load %arg4[%c0_27, %c1, %c0_28, %c0_29] : memref<2x10x10x4xf32, #tpu.memory_space<vmem>>, vector<2x8x1x4xf32>
    tpu.vector_store %arg4[%c0_27, %c1, %c0_28, %c0_29], %61 {strides = array<i32>} : memref<2x10x10x4xf32, #tpu.memory_space<vmem>>, vector<2x8x1x4xf32>,
    %cst_30 = arith.constant 0.000000e+00 : f32
    %63 = vector.broadcast %cst_30 : f32 to vector<2x8x1x4xf32>
    %c0_31 = arith.constant 0 : index
    %c1_32 = arith.constant 1 : index
    %c9_33 = arith.constant 9 : index
    %c0_34 = arith.constant 0 : index
    %64 = vector.load %arg4[%c0_31, %c1_32, %c9_33, %c0_34] : memref<2x10x10x4xf32, #tpu.memory_space<vmem>>, vector<2x8x1x4xf32>
    tpu.vector_store %arg4[%c0_31, %c1_32, %c9_33, %c0_34], %63 {strides = array<i32>} : memref<2x10x10x4xf32, #tpu.memory_space<vmem>>, vector<2x8x1x4xf32>,
    %65 = vector.shape_cast %56 : vector<128x4xf32> to vector<2x8x8x4xf32>
    %c0_35 = arith.constant 0 : index
    %c1_36 = arith.constant 1 : index
    %c1_37 = arith.constant 1 : index
    %c0_38 = arith.constant 0 : index
    %66 = vector.load %arg4[%c0_35, %c1_36, %c1_37, %c0_38] : memref<2x10x10x4xf32, #tpu.memory_space<vmem>>, vector<2x8x8x4xf32>
    tpu.vector_store %arg4[%c0_35, %c1_36, %c1_37, %c0_38], %65 {strides = array<i32>} : memref<2x10x10x4xf32, #tpu.memory_space<vmem>>, vector<2x8x8x4xf32>,
    %c0_39 = arith.constant 0 : index
    %c0_40 = arith.constant 0 : index
    %c0_41 = arith.constant 0 : index
    %c0_42 = arith.constant 0 : index
    %67 = vector.load %arg4[%c0_39, %c0_40, %c0_41, %c0_42] : memref<2x10x10x4xf32, #tpu.memory_space<vmem>>, vector<2x8x8x4xf32>
    %68 = vector.shape_cast %67 : vector<2x8x8x4xf32> to vector<128x4xf32>
    %c0_43 = arith.constant 0 : index
    %c0_44 = arith.constant 0 : index
    %69 = vector.load %arg5[%c0_43, %c0_44] : memref<128x36xf32, #tpu.memory_space<vmem>>, vector<128x4xf32>
    tpu.vector_store %arg5[%c0_43, %c0_44], %68 {strides = array<i32>} : memref<128x36xf32, #tpu.memory_space<vmem>>, vector<128x4xf32>,
    %c0_45 = arith.constant 0 : index
    %c0_46 = arith.constant 0 : index
    %c1_47 = arith.constant 1 : index
    %c0_48 = arith.constant 0 : index
    %70 = vector.load %arg4[%c0_45, %c0_46, %c1_47, %c0_48] : memref<2x10x10x4xf32, #tpu.memory_space<vmem>>, vector<2x8x8x4xf32>
    %71 = vector.shape_cast %70 : vector<2x8x8x4xf32> to vector<128x4xf32>
    %c0_49 = arith.constant 0 : index
    %c4 = arith.constant 4 : index
    %72 = vector.load %arg5[%c0_49, %c4] : memref<128x36xf32, #tpu.memory_space<vmem>>, vector<128x4xf32>
    tpu.vector_store %arg5[%c0_49, %c4], %71 {strides = array<i32>} : memref<128x36xf32, #tpu.memory_space<vmem>>, vector<128x4xf32>,
    %c0_50 = arith.constant 0 : index
    %c0_51 = arith.constant 0 : index
    %c2 = arith.constant 2 : index
    %c0_52 = arith.constant 0 : index
    %73 = vector.load %arg4[%c0_50, %c0_51, %c2, %c0_52] : memref<2x10x10x4xf32, #tpu.memory_space<vmem>>, vector<2x8x8x4xf32>
    %74 = vector.shape_cast %73 : vector<2x8x8x4xf32> to vector<128x4xf32>
    %c0_53 = arith.constant 0 : index
    %c8 = arith.constant 8 : index
    %75 = vector.load %arg5[%c0_53, %c8] : memref<128x36xf32, #tpu.memory_space<vmem>>, vector<128x4xf32>
    tpu.vector_store %arg5[%c0_53, %c8], %74 {strides = array<i32>} : memref<128x36xf32, #tpu.memory_space<vmem>>, vector<128x4xf32>,
    %c0_54 = arith.constant 0 : index
    %c1_55 = arith.constant 1 : index
    %c0_56 = arith.constant 0 : index
    %c0_57 = arith.constant 0 : index
    %76 = vector.load %arg4[%c0_54, %c1_55, %c0_56, %c0_57] : memref<2x10x10x4xf32, #tpu.memory_space<vmem>>, vector<2x8x8x4xf32>
    %77 = vector.shape_cast %76 : vector<2x8x8x4xf32> to vector<128x4xf32>
    %c0_58 = arith.constant 0 : index
    %c12 = arith.constant 12 : index
    %78 = vector.load %arg5[%c0_58, %c12] : memref<128x36xf32, #tpu.memory_space<vmem>>, vector<128x4xf32>
    tpu.vector_store %arg5[%c0_58, %c12], %77 {strides = array<i32>} : memref<128x36xf32, #tpu.memory_space<vmem>>, vector<128x4xf32>,
    %c0_59 = arith.constant 0 : index
    %c1_60 = arith.constant 1 : index
    %c1_61 = arith.constant 1 : index
    %c0_62 = arith.constant 0 : index
    %79 = vector.load %arg4[%c0_59, %c1_60, %c1_61, %c0_62] : memref<2x10x10x4xf32, #tpu.memory_space<vmem>>, vector<2x8x8x4xf32>
    %80 = vector.shape_cast %79 : vector<2x8x8x4xf32> to vector<128x4xf32>
    %c0_63 = arith.constant 0 : index
    %c16 = arith.constant 16 : index
    %81 = vector.load %arg5[%c0_63, %c16] : memref<128x36xf32, #tpu.memory_space<vmem>>, vector<128x4xf32>
    tpu.vector_store %arg5[%c0_63, %c16], %80 {strides = array<i32>} : memref<128x36xf32, #tpu.memory_space<vmem>>, vector<128x4xf32>,
    %c0_64 = arith.constant 0 : index
    %c1_65 = arith.constant 1 : index
    %c2_66 = arith.constant 2 : index
    %c0_67 = arith.constant 0 : index
    %82 = vector.load %arg4[%c0_64, %c1_65, %c2_66, %c0_67] : memref<2x10x10x4xf32, #tpu.memory_space<vmem>>, vector<2x8x8x4xf32>
    %83 = vector.shape_cast %82 : vector<2x8x8x4xf32> to vector<128x4xf32>
    %c0_68 = arith.constant 0 : index
    %c20 = arith.constant 20 : index
    %84 = vector.load %arg5[%c0_68, %c20] : memref<128x36xf32, #tpu.memory_space<vmem>>, vector<128x4xf32>
    tpu.vector_store %arg5[%c0_68, %c20], %83 {strides = array<i32>} : memref<128x36xf32, #tpu.memory_space<vmem>>, vector<128x4xf32>,
    %c0_69 = arith.constant 0 : index
    %c2_70 = arith.constant 2 : index
    %c0_71 = arith.constant 0 : index
    %c0_72 = arith.constant 0 : index
    %85 = vector.load %arg4[%c0_69, %c2_70, %c0_71, %c0_72] : memref<2x10x10x4xf32, #tpu.memory_space<vmem>>, vector<2x8x8x4xf32>
    %86 = vector.shape_cast %85 : vector<2x8x8x4xf32> to vector<128x4xf32>
    %c0_73 = arith.constant 0 : index
    %c24 = arith.constant 24 : index
    %87 = vector.load %arg5[%c0_73, %c24] : memref<128x36xf32, #tpu.memory_space<vmem>>, vector<128x4xf32>
    tpu.vector_store %arg5[%c0_73, %c24], %86 {strides = array<i32>} : memref<128x36xf32, #tpu.memory_space<vmem>>, vector<128x4xf32>,
    %c0_74 = arith.constant 0 : index
    %c2_75 = arith.constant 2 : index
    %c1_76 = arith.constant 1 : index
    %c0_77 = arith.constant 0 : index
    %88 = vector.load %arg4[%c0_74, %c2_75, %c1_76, %c0_77] : memref<2x10x10x4xf32, #tpu.memory_space<vmem>>, vector<2x8x8x4xf32>
    %89 = vector.shape_cast %88 : vector<2x8x8x4xf32> to vector<128x4xf32>
    %c0_78 = arith.constant 0 : index
    %c28 = arith.constant 28 : index
    %90 = vector.load %arg5[%c0_78, %c28] : memref<128x36xf32, #tpu.memory_space<vmem>>, vector<128x4xf32>
    tpu.vector_store %arg5[%c0_78, %c28], %89 {strides = array<i32>} : memref<128x36xf32, #tpu.memory_space<vmem>>, vector<128x4xf32>,
    %c0_79 = arith.constant 0 : index
    %c2_80 = arith.constant 2 : index
    %c2_81 = arith.constant 2 : index
    %c0_82 = arith.constant 0 : index
    %91 = vector.load %arg4[%c0_79, %c2_80, %c2_81, %c0_82] : memref<2x10x10x4xf32, #tpu.memory_space<vmem>>, vector<2x8x8x4xf32>
    %92 = vector.shape_cast %91 : vector<2x8x8x4xf32> to vector<128x4xf32>
    %c0_83 = arith.constant 0 : index
    %c32 = arith.constant 32 : index
    %93 = vector.load %arg5[%c0_83, %c32] : memref<128x36xf32, #tpu.memory_space<vmem>>, vector<128x4xf32>
    tpu.vector_store %arg5[%c0_83, %c32], %92 {strides = array<i32>} : memref<128x36xf32, #tpu.memory_space<vmem>>, vector<128x4xf32>,
    %c0_84 = arith.constant 0 : index
    %c0_85 = arith.constant 0 : index
    %94 = vector.load %arg5[%c0_84, %c0_85] : memref<128x36xf32, #tpu.memory_space<vmem>>, vector<128x36xf32>
    %95 = vector.extract_strided_slice %1 {offsets = [16, 0], sizes = [36, 4], strides = [1, 1]} : vector<68x8xbf16> to vector<36x4xbf16>
    %96 = arith.truncf %94 : vector<128x36xf32> to vector<128x36xbf16>
    %cst_86 = arith.constant dense<0.000000e+00> : vector<128x4xf32>
    %97 = tpu.matmul %96, %95, %cst_86 {dimension_numbers = #tpu.dot_dimension_numbers<[1], [0], [0], [1], [0, 0, 1, 1], [], []>} : vector<128x36xbf16>, vector<36x4xbf16>, vector<128x4xf32> -> vector<128x4xf32>
    %98 = vector.extract_strided_slice %2 {offsets = [5, 0], sizes = [1, 4], strides = [1, 1]} : vector<9x8xf32> to vector<1x4xf32>
    %99 = vector.broadcast %98 : vector<1x4xf32> to vector<128x4xf32>
    %100 = arith.addf %97, %99 : vector<128x4xf32>
    %101 = vector.extract_strided_slice %2 {offsets = [6, 0], sizes = [1, 4], strides = [1, 1]} : vector<9x8xf32> to vector<1x4xf32>
    %102 = vector.extract_strided_slice %2 {offsets = [7, 0], sizes = [1, 4], strides = [1, 1]} : vector<9x8xf32> to vector<1x4xf32>
    %cst_87 = arith.constant dense<0.000000e+00> : vector<4xf32>
    %103 = vector.multi_reduction <add>, %100, %cst_87 [0] : vector<128x4xf32> to vector<4xf32>
    %104 = vector.shape_cast %103 : vector<4xf32> to vector<1x4xf32>
    %cst_88 = arith.constant 7.812500e-03 : f32
    %105 = vector.broadcast %cst_88 : f32 to vector<1x4xf32>
    %106 = arith.mulf %104, %105 : vector<1x4xf32>
    %107 = vector.broadcast %106 : vector<1x4xf32> to vector<128x4xf32>
    %108 = arith.subf %100, %107 : vector<128x4xf32>
    %109 = arith.mulf %108, %108 : vector<128x4xf32>
    %cst_89 = arith.constant dense<0.000000e+00> : vector<4xf32>
    %110 = vector.multi_reduction <add>, %109, %cst_89 [0] : vector<128x4xf32> to vector<4xf32>
    %111 = vector.shape_cast %110 : vector<4xf32> to vector<1x4xf32>
    %cst_90 = arith.constant 7.812500e-03 : f32
    %112 = vector.broadcast %cst_90 : f32 to vector<1x4xf32>
    %113 = arith.mulf %111, %112 : vector<1x4xf32>
    %cst_91 = arith.constant 9.99999974E-6 : f32
    %114 = vector.broadcast %cst_91 : f32 to vector<1x4xf32>
    %115 = arith.addf %113, %114 : vector<1x4xf32>
    %116 = math.rsqrt %115 : vector<1x4xf32>
    %117 = vector.broadcast %116 : vector<1x4xf32> to vector<128x4xf32>
    %118 = arith.mulf %108, %117 : vector<128x4xf32>
    %119 = vector.broadcast %101 : vector<1x4xf32> to vector<128x4xf32>
    %120 = arith.mulf %118, %119 : vector<128x4xf32>
    %121 = vector.broadcast %102 : vector<1x4xf32> to vector<128x4xf32>
    %122 = arith.addf %120, %121 : vector<128x4xf32>
    %cst_92 = arith.constant 0.000000e+00 : f32
    %123 = vector.broadcast %cst_92 : f32 to vector<128x4xf32>
    %124 = arith.maximumf %122, %123 : vector<128x4xf32>
    %125 = vector.extract_strided_slice %1 {offsets = [64, 0], sizes = [4, 8], strides = [1, 1]} : vector<68x8xbf16> to vector<4x8xbf16>
    %126 = arith.truncf %124 : vector<128x4xf32> to vector<128x4xbf16>
    %cst_93 = arith.constant dense<0.000000e+00> : vector<128x8xf32>
    %127 = tpu.matmul %126, %125, %cst_93 {dimension_numbers = #tpu.dot_dimension_numbers<[1], [0], [0], [1], [0, 0, 1, 1], [], []>} : vector<128x4xbf16>, vector<4x8xbf16>, vector<128x8xf32> -> vector<128x8xf32>
    %128 = vector.extract_strided_slice %2 {offsets = [8, 0], sizes = [1, 8], strides = [1, 1]} : vector<9x8xf32> to vector<1x8xf32>
    %129 = vector.broadcast %128 : vector<1x8xf32> to vector<128x8xf32>
    %130 = arith.addf %127, %129 : vector<128x8xf32>
    %131 = arith.addf %130, %0 : vector<128x8xf32>
    %c0_94 = arith.constant 0 : index
    %c0_95 = arith.constant 0 : index
    %132 = vector.load %arg3[%c0_94, %c0_95] : memref<128x8xf32, #tpu.memory_space<vmem>>, vector<128x8xf32>
    tpu.vector_store %arg3[%c0_94, %c0_95], %131 {strides = array<i32>} : memref<128x8xf32, #tpu.memory_space<vmem>>, vector<128x8xf32>,
    return
  }
}

</mosaic_0001>

<llo_original>
// kernel: _lambda_.3
$region0: #{_lambda_.3}
  #allocation0 [shape = 'u32[]', space=smem, size = 0x4, offset = 0x4, fixed_abs, tag = 'smem constant byte address 0x4 - core index']
  #allocation1 [shape = 'u32[72,128]{1,0:T(1,128)}', space=vmem, size = 0x9000, scoped, tag = 'internal scratch']
  #allocation2 [shape = 'f32[2,10,10,4]{3,2,1,0:T(8,128)}', space=vmem, size = 0x28000, scoped, tag = 'scratch operand']
  #allocation3 [shape = 'f32[128,36]{1,0:T(8,128)}', space=vmem, size = 0x10000, scoped, tag = 'scratch operand']
  %s0 = inlined_call_operand.vmem [shape: f32[128,8], index: 0, kind: input, shape index: {}]
  %s1 = inlined_call_operand.vmem [shape: bf16[68,8], index: 1, kind: input, shape index: {}]
  %s2 = inlined_call_operand.vmem [shape: f32[9,8], index: 2, kind: input, shape index: {}]
  %s3 = inlined_call_operand.hbm [shape: f32[128,8], index: 3, kind: output, shape index: {}]
  %s4 = sld [smem:[#allocation0]]
  $region22: #{_lambda_.3} parent=0
    _
  %s6 = ssub.s32 1, %s4
  %s7 = scalar_select 0, %s6, %s4
  $region1: #{_lambda_.3} parent=0
    #allocation4 [shape = 'u8[65536]{0}', space=vmem, size = 0x10000, scoped, tag = 'output window, operand 0, single buffered']
    #allocation5 [shape = 's32[1]{0}', space=sflag, size = 0x4, scoped, tag = 'scoped memory for _lambda_.3']
    %8 = vsyncpa [#allocation5], 0
    // Predicated region
    $region2: #{_lambda_.3} parent=1 // pred_check
      _
    $region3: #{_lambda_.3} parent=1 // pred_check_branch
      %10 = sbr.rel (0) target = $region5
    $region4: #{_lambda_.3} parent=1 // pred_region
      _
    $region5: #{_lambda_.3} parent=1 // pred_fallthru
      _
    // Predicated region
    $region6: #{_lambda_.3} parent=1 // pred_check
      _
    $region7: #{_lambda_.3} parent=1 // pred_check_branch
      %12 = sbr.rel (0) target = $region9
    $region8: #{_lambda_.3} parent=1 // pred_region
      _
    $region9: #{_lambda_.3} parent=1 // pred_fallthru
      _
    // Predicated region
    $region10: #{_lambda_.3} parent=1 // pred_check
      _
    $region11: #{_lambda_.3} parent=1 // pred_check_branch
      %14 = sbr.rel (0) target = $region13
    $region12: #{_lambda_.3} parent=1 // pred_region
      _
    $region13: #{_lambda_.3} parent=1 // pred_fallthru
      _
    %v16 = vld [vmem:[%s0] sm:$0xff]
    %v17 = vld [vmem:[%s0 + $0x8] sm:$0xff]
    %v18 = vld [vmem:[%s0 + $0x10] sm:$0xff]
    %v19 = vld [vmem:[%s0 + $0x18] sm:$0xff]
    %v20 = vld [vmem:[%s0 + $0x20] sm:$0xff]
    %v21 = vld [vmem:[%s0 + $0x28] sm:$0xff]
    %v22 = vld [vmem:[%s0 + $0x30] sm:$0xff]
    %v23 = vld [vmem:[%s0 + $0x38] sm:$0xff]
    %v24 = vld [vmem:[%s0 + $0x40] sm:$0xff]
    %v25 = vld [vmem:[%s0 + $0x48] sm:$0xff]
    %v26 = vld [vmem:[%s0 + $0x50] sm:$0xff]
    %v27 = vld [vmem:[%s0 + $0x58] sm:$0xff]
    %v28 = vld [vmem:[%s0 + $0x60] sm:$0xff]
    %v29 = vld [vmem:[%s0 + $0x68] sm:$0xff]
    %v30 = vld [vmem:[%s0 + $0x70] sm:$0xff]
    %v31 = vld [vmem:[%s0 + $0x78] sm:$0xff]
    %v32 = vld [vmem:[%s1] sm:$0xf]
    %v33 = vld [vmem:[%s1 + $0x8] sm:$0xf]
    %v34 = vld [vmem:[%s1 + $0xc] sm:$0xf]
    %v35 = vld [vmem:[%s1 + $0x10] sm:$0xf]
    %v36 = vld [vmem:[%s1 + $0x14] sm:$0xf]
    %v37 = vld [vmem:[%s1 + $0x18] sm:$0xf]
    %v38 = vld [vmem:[%s1 + $0x20] sm:$0x3]
    %v39 = vld [vmem:[%s2] sm:$0xff]
    %v40 = vld [vmem:[%s2 + $0x8] sm:$0x1]
    %vm41 = vcmask 64512
    %v42 = vsel %vm41, %v16, 0.0
    %v43 = vsel %vm41, %v17, 0.0
    %v44 = vadd.f32 %v42, %v43
    %v45 = vsel %vm41, %v18, 0.0
    %v46 = vadd.f32 %v44, %v45
    %v47 = vsel %vm41, %v19, 0.0
    %v48 = vadd.f32 %v46, %v47
    %v49 = vsel %vm41, %v20, 0.0
    %v50 = vadd.f32 %v48, %v49
    %v51 = vsel %vm41, %v21, 0.0
    %v52 = vadd.f32 %v50, %v51
    %v53 = vsel %vm41, %v22, 0.0
    %v54 = vadd.f32 %v52, %v53
    %v55 = vsel %vm41, %v23, 0.0
    %v56 = vadd.f32 %v54, %v55
    %v57 = vsel %vm41, %v24, 0.0
    %v58 = vadd.f32 %v56, %v57
    %v59 = vsel %vm41, %v25, 0.0
    %v60 = vadd.f32 %v58, %v59
    %v61 = vsel %vm41, %v26, 0.0
    %v62 = vadd.f32 %v60, %v61
    %v63 = vsel %vm41, %v27, 0.0
    %v64 = vadd.f32 %v62, %v63
    %v65 = vsel %vm41, %v28, 0.0
    %v66 = vadd.f32 %v64, %v65
    %v67 = vsel %vm41, %v29, 0.0
    %v68 = vadd.f32 %v66, %v67
    %v69 = vsel %vm41, %v30, 0.0
    %v70 = vadd.f32 %v68, %v69
    %v71 = vsel %vm41, %v31, 0.0
    %v72 = vadd.f32 %v70, %v71
    %v73 = vrot.slane %v72, 4
    %v74 = vadd.f32 %v72, %v73
    %v75 = vrot.slane %v74, 2
    %v76 = vadd.f32 %v74, %v75
    %v77 = vrot.slane %v76, 1
    %v78 = vadd.f32 %v76, %v77
    %v79 = vmul.f32 %v78, 0.0078125
    %v80 = vsub.f32 %v16, %v79
    %v81 = vsub.f32 %v17, %v79
    %v82 = vsub.f32 %v18, %v79
    %v83 = vsub.f32 %v19, %v79
    %v84 = vsub.f32 %v20, %v79
    %v85 = vsub.f32 %v21, %v79
    %v86 = vsub.f32 %v22, %v79
    %v87 = vsub.f32 %v23, %v79
    %v88 = vsub.f32 %v24, %v79
    %v89 = vsub.f32 %v25, %v79
    %v90 = vsub.f32 %v26, %v79
    %v91 = vsub.f32 %v27, %v79
    %v92 = vsub.f32 %v28, %v79
    %v93 = vsub.f32 %v29, %v79
    %v94 = vsub.f32 %v30, %v79
    %v95 = vsub.f32 %v31, %v79
    %v96 = vmul.f32 %v80, %v80
    %v97 = vmul.f32 %v81, %v81
    %v98 = vmul.f32 %v82, %v82
    %v99 = vmul.f32 %v83, %v83
    %v100 = vmul.f32 %v84, %v84
    %v101 = vmul.f32 %v85, %v85
    %v102 = vmul.f32 %v86, %v86
    %v103 = vmul.f32 %v87, %v87
    %v104 = vmul.f32 %v88, %v88
    %v105 = vmul.f32 %v89, %v89
    %v106 = vmul.f32 %v90, %v90
    %v107 = vmul.f32 %v91, %v91
    %v108 = vmul.f32 %v92, %v92
    %v109 = vmul.f32 %v93, %v93
    %v110 = vmul.f32 %v94, %v94
    %v111 = vmul.f32 %v95, %v95
    %v112 = vsel %vm41, %v96, 0.0
    %v113 = vsel %vm41, %v97, 0.0
    %v114 = vadd.f32 %v112, %v113
    %v115 = vsel %vm41, %v98, 0.0
    %v116 = vadd.f32 %v114, %v115
    %v117 = vsel %vm41, %v99, 0.0
    %v118 = vadd.f32 %v116, %v117
    %v119 = vsel %vm41, %v100, 0.0
    %v120 = vadd.f32 %v118, %v119
    %v121 = vsel %vm41, %v101, 0.0
    %v122 = vadd.f32 %v120, %v121
    %v123 = vsel %vm41, %v102, 0.0
    %v124 = vadd.f32 %v122, %v123
    %v125 = vsel %vm41, %v103, 0.0
    %v126 = vadd.f32 %v124, %v125
    %v127 = vsel %vm41, %v104, 0.0
    %v128 = vadd.f32 %v126, %v127
    %v129 = vsel %vm41, %v105, 0.0
    %v130 = vadd.f32 %v128, %v129
    %v131 = vsel %vm41, %v106, 0.0
    %v132 = vadd.f32 %v130, %v131
    %v133 = vsel %vm41, %v107, 0.0
    %v134 = vadd.f32 %v132, %v133
    %v135 = vsel %vm41, %v108, 0.0
    %v136 = vadd.f32 %v134, %v135
    %v137 = vsel %vm41, %v109, 0.0
    %v138 = vadd.f32 %v136, %v137
    %v139 = vsel %vm41, %v110, 0.0
    %v140 = vadd.f32 %v138, %v139
    %v141 = vsel %vm41, %v111, 0.0
    %v142 = vadd.f32 %v140, %v141
    %v143 = vrot.slane %v142, 4
    %v144 = vadd.f32 %v142, %v143
    %v145 = vrot.slane %v144, 2
    %v146 = vadd.f32 %v144, %v145
    %v147 = vrot.slane %v146, 1
    %v148 = vadd.f32 %v146, %v147
    %v149 = vmul.f32 %v148, 0.0078125
    %v150 = vadd.f32 %v149, 1e-05
    %v151 = vrsqrt.pop %v150
    %v152 = vmul.f32 %v151, %v150
    %v153 = vmul.f32 %v152, %v151
    %v154 = vmul.f32 0.5, %v153
    %v155 = vsub.f32 1.5, %v154
    %v156 = vmul.f32 %v151, %v155
    %vm157 = vweird.f32 %v150
    %vm158 = vweird.f32 %v151
    %vm159 = vmor %vm157, %vm158
    %v160 = vsel %vm159, %v151, %v156
    %v161 = vmul.f32 %v80, %v160
    %v162 = vmul.f32 %v81, %v160
    %v163 = vmul.f32 %v82, %v160
    %v164 = vmul.f32 %v83, %v160
    %v165 = vmul.f32 %v84, %v160
    %v166 = vmul.f32 %v85, %v160
    %v167 = vmul.f32 %v86, %v160
    %v168 = vmul.f32 %v87, %v160
    %v169 = vmul.f32 %v88, %v160
    %v170 = vmul.f32 %v89, %v160
    %v171 = vmul.f32 %v90, %v160
    %v172 = vmul.f32 %v91, %v160
    %v173 = vmul.f32 %v92, %v160
    %v174 = vmul.f32 %v93, %v160
    %v175 = vmul.f32 %v94, %v160
    %v176 = vmul.f32 %v95, %v160
    %v177 = vperm.slane %v39, 0
    %v178 = vmul.f32 %v161, %v177
    %v179 = vmul.f32 %v162, %v177
    %v180 = vmul.f32 %v163, %v177
    %v181 = vmul.f32 %v164, %v177
    %v182 = vmul.f32 %v165, %v177
    %v183 = vmul.f32 %v166, %v177
    %v184 = vmul.f32 %v167, %v177
    %v185 = vmul.f32 %v168, %v177
    %v186 = vmul.f32 %v169, %v177
    %v187 = vmul.f32 %v170, %v177
    %v188 = vmul.f32 %v171, %v177
    %v189 = vmul.f32 %v172, %v177
    %v190 = vmul.f32 %v173, %v177
    %v191 = vmul.f32 %v174, %v177
    %v192 = vmul.f32 %v175, %v177
    %v193 = vmul.f32 %v176, %v177
    %v194 = vperm.slane %v39, 1
    %v195 = vadd.f32 %v178, %v194
    %v196 = vadd.f32 %v179, %v194
    %v197 = vadd.f32 %v180, %v194
    %v198 = vadd.f32 %v181, %v194
    %v199 = vadd.f32 %v182, %v194
    %v200 = vadd.f32 %v183, %v194
    %v201 = vadd.f32 %v184, %v194
    %v202 = vadd.f32 %v185, %v194
    %v203 = vadd.f32 %v186, %v194
    %v204 = vadd.f32 %v187, %v194
    %v205 = vadd.f32 %v188, %v194
    %v206 = vadd.f32 %v189, %v194
    %v207 = vadd.f32 %v190, %v194
    %v208 = vadd.f32 %v191, %v194
    %v209 = vadd.f32 %v192, %v194
    %v210 = vadd.f32 %v193, %v194
    %v211 = vmax.f32 %v195, 0.0
    %v212 = vmax.f32 %v196, 0.0
    %v213 = vmax.f32 %v197, 0.0
    %v214 = vmax.f32 %v198, 0.0
    %v215 = vmax.f32 %v199, 0.0
    %v216 = vmax.f32 %v200, 0.0
    %v217 = vmax.f32 %v201, 0.0
    %v218 = vmax.f32 %v202, 0.0
    %v219 = vmax.f32 %v203, 0.0
    %v220 = vmax.f32 %v204, 0.0
    %v221 = vmax.f32 %v205, 0.0
    %v222 = vmax.f32 %v206, 0.0
    %v223 = vmax.f32 %v207, 0.0
    %v224 = vmax.f32 %v208, 0.0
    %v225 = vmax.f32 %v209, 0.0
    %v226 = vmax.f32 %v210, 0.0
    %v227 = vpack.c.bf16 %v212, %v211
    %v228 = vpack.c.bf16 %v214, %v213
    %v229 = vpack.c.bf16 %v216, %v215
    %v230 = vpack.c.bf16 %v218, %v217
    %v231 = vpack.c.bf16 %v220, %v219
    %v232 = vpack.c.bf16 %v222, %v221
    %v233 = vpack.c.bf16 %v224, %v223
    %v234 = vpack.c.bf16 %v226, %v225
    %v235 = vperm.slane %v39, 2
    %v237 = vsel %vm41, %v227, 0
    %v240 = vsel %vm41, %v228, 0
    %v243 = vsel %vm41, %v229, 0
    %v246 = vsel %vm41, %v230, 0
    %v249 = vsel %vm41, %v231, 0
    %v252 = vsel %vm41, %v232, 0
    %v255 = vsel %vm41, %v233, 0
    %v258 = vsel %vm41, %v234, 0
    %vm260 = vcmask 1043456
    %v262 = vsel %vm260, %v32, 0
    %264 = vmatpush.bf16.msra.mxu0 0
    %265 = vmatpush.bf16.msra.mxu0 0
    %266 = vmatpush.bf16.msra.mxu0 0
    %267 = vmatpush.bf16.msra.mxu0 0
    %268 = vmatpush.bf16.msra.mxu0 0
    %269 = vmatpush.bf16.msra.mxu0 0
    %270 = vmatpush.bf16.msra.mxu0 0
    %271 = vmatpush.bf16.msra.mxu0 %v262
    %272 = vmatmul.bf16.gmra.mxu0 %v237
    %v273 = vpop.f32.mrf.mxu0
    %v274 = vadd.f32 %v235, %v273
    %v275 = vpop.f32.mrf.mxu0
    %v276 = vadd.f32 %v235, %v275
    %277 = vmatmul.bf16.gmra.mxu0 %v240
    %v278 = vpop.f32.mrf.mxu0
    %v279 = vadd.f32 %v235, %v278
    %v280 = vpop.f32.mrf.mxu0
    %v281 = vadd.f32 %v235, %v280
    %282 = vmatmul.bf16.gmra.mxu0 %v243
    %v283 = vpop.f32.mrf.mxu0
    %v284 = vadd.f32 %v235, %v283
    %v285 = vpop.f32.mrf.mxu0
    %v286 = vadd.f32 %v235, %v285
    %287 = vmatmul.bf16.gmra.mxu0 %v246
    %v288 = vpop.f32.mrf.mxu0
    %v289 = vadd.f32 %v235, %v288
    %v290 = vpop.f32.mrf.mxu0
    %v291 = vadd.f32 %v235, %v290
    %292 = vmatmul.bf16.gmra.mxu0 %v249
    %v293 = vpop.f32.mrf.mxu0
    %v294 = vadd.f32 %v235, %v293
    %v295 = vpop.f32.mrf.mxu0
    %v296 = vadd.f32 %v235, %v295
    %297 = vmatmul.bf16.gmra.mxu0 %v252
    %v298 = vpop.f32.mrf.mxu0
    %v299 = vadd.f32 %v235, %v298
    %v300 = vpop.f32.mrf.mxu0
    %v301 = vadd.f32 %v235, %v300
    %302 = vmatmul.bf16.gmra.mxu0 %v255
    %v303 = vpop.f32.mrf.mxu0
    %v304 = vadd.f32 %v235, %v303
    %v305 = vpop.f32.mrf.mxu0
    %v306 = vadd.f32 %v235, %v305
    %307 = vmatmul.bf16.gmra.mxu0 %v258
    %v308 = vpop.f32.mrf.mxu0
    %v309 = vadd.f32 %v235, %v308
    %v310 = vpop.f32.mrf.mxu0
    %v311 = vadd.f32 %v235, %v310
    %312 = vdwg.mxu0
    %vm313 = vcmask 31744
    %v314 = vsel %vm313, %v274, 0.0
    %v315 = vsel %vm313, %v276, 0.0
    %v316 = vadd.f32 %v314, %v315
    %v317 = vsel %vm313, %v279, 0.0
    %v318 = vadd.f32 %v316, %v317
    %v319 = vsel %vm313, %v281, 0.0
    %v320 = vadd.f32 %v318, %v319
    %v321 = vsel %vm313, %v284, 0.0
    %v322 = vadd.f32 %v320, %v321
    %v323 = vsel %vm313, %v286, 0.0
    %v324 = vadd.f32 %v322, %v323
    %v325 = vsel %vm313, %v289, 0.0
    %v326 = vadd.f32 %v324, %v325
    %v327 = vsel %vm313, %v291, 0.0
    %v328 = vadd.f32 %v326, %v327
    %v329 = vsel %vm313, %v294, 0.0
    %v330 = vadd.f32 %v328, %v329
    %v331 = vsel %vm313, %v296, 0.0
    %v332 = vadd.f32 %v330, %v331
    %v333 = vsel %vm313, %v299, 0.0
    %v334 = vadd.f32 %v332, %v333
    %v335 = vsel %vm313, %v301, 0.0
    %v336 = vadd.f32 %v334, %v335
    %v337 = vsel %vm313, %v304, 0.0
    %v338 = vadd.f32 %v336, %v337
    %v339 = vsel %vm313, %v306, 0.0
    %v340 = vadd.f32 %v338, %v339
    %v341 = vsel %vm313, %v309, 0.0
    %v342 = vadd.f32 %v340, %v341
    %v343 = vsel %vm313, %v311, 0.0
    %v344 = vadd.f32 %v342, %v343
    %v345 = vrot.slane %v344, 4
    %v346 = vadd.f32 %v344, %v345
    %v347 = vrot.slane %v346, 2
    %v348 = vadd.f32 %v346, %v347
    %v349 = vrot.slane %v348, 1
    %v350 = vadd.f32 %v348, %v349
    %v351 = vmul.f32 %v350, 0.0078125
    %v352 = vsub.f32 %v274, %v351
    %v353 = vsub.f32 %v276, %v351
    %v354 = vsub.f32 %v279, %v351
    %v355 = vsub.f32 %v281, %v351
    %v356 = vsub.f32 %v284, %v351
    %v357 = vsub.f32 %v286, %v351
    %v358 = vsub.f32 %v289, %v351
    %v359 = vsub.f32 %v291, %v351
    %v360 = vsub.f32 %v294, %v351
    %v361 = vsub.f32 %v296, %v351
    %v362 = vsub.f32 %v299, %v351
    %v363 = vsub.f32 %v301, %v351
    %v364 = vsub.f32 %v304, %v351
    %v365 = vsub.f32 %v306, %v351
    %v366 = vsub.f32 %v309, %v351
    %v367 = vsub.f32 %v311, %v351
    %v368 = vmul.f32 %v352, %v352
    %v369 = vmul.f32 %v353, %v353
    %v370 = vmul.f32 %v354, %v354
    %v371 = vmul.f32 %v355, %v355
    %v372 = vmul.f32 %v356, %v356
    %v373 = vmul.f32 %v357, %v357
    %v374 = vmul.f32 %v358, %v358
    %v375 = vmul.f32 %v359, %v359
    %v376 = vmul.f32 %v360, %v360
    %v377 = vmul.f32 %v361, %v361
    %v378 = vmul.f32 %v362, %v362
    %v379 = vmul.f32 %v363, %v363
    %v380 = vmul.f32 %v364, %v364
    %v381 = vmul.f32 %v365, %v365
    %v382 = vmul.f32 %v366, %v366
    %v383 = vmul.f32 %v367, %v367
    %v384 = vsel %vm313, %v368, 0.0
    %v385 = vsel %vm313, %v369, 0.0
    %v386 = vadd.f32 %v384, %v385
    %v387 = vsel %vm313, %v370, 0.0
    %v388 = vadd.f32 %v386, %v387
    %v389 = vsel %vm313, %v371, 0.0
    %v390 = vadd.f32 %v388, %v389
    %v391 = vsel %vm313, %v372, 0.0
    %v392 = vadd.f32 %v390, %v391
    %v393 = vsel %vm313, %v373, 0.0
    %v394 = vadd.f32 %v392, %v393
    %v395 = vsel %vm313, %v374, 0.0
    %v396 = vadd.f32 %v394, %v395
    %v397 = vsel %vm313, %v375, 0.0
    %v398 = vadd.f32 %v396, %v397
    %v399 = vsel %vm313, %v376, 0.0
    %v400 = vadd.f32 %v398, %v399
    %v401 = vsel %vm313, %v377, 0.0
    %v402 = vadd.f32 %v400, %v401
    %v403 = vsel %vm313, %v378, 0.0
    %v404 = vadd.f32 %v402, %v403
    %v405 = vsel %vm313, %v379, 0.0
    %v406 = vadd.f32 %v404, %v405
    %v407 = vsel %vm313, %v380, 0.0
    %v408 = vadd.f32 %v406, %v407
    %v409 = vsel %vm313, %v381, 0.0
    %v410 = vadd.f32 %v408, %v409
    %v411 = vsel %vm313, %v382, 0.0
    %v412 = vadd.f32 %v410, %v411
    %v413 = vsel %vm313, %v383, 0.0
    %v414 = vadd.f32 %v412, %v413
    %v415 = vrot.slane %v414, 4
    %v416 = vadd.f32 %v414, %v415
    %v417 = vrot.slane %v416, 2
    %v418 = vadd.f32 %v416, %v417
    %v419 = vrot.slane %v418, 1
    %v420 = vadd.f32 %v418, %v419
    %v421 = vmul.f32 %v420, 0.0078125
    %v422 = vadd.f32 %v421, 1e-05
    %v423 = vrsqrt.pop %v422
    %v424 = vmul.f32 %v423, %v422
    %v425 = vmul.f32 %v424, %v423
    %v426 = vmul.f32 0.5, %v425
    %v427 = vsub.f32 1.5, %v426
    %v428 = vmul.f32 %v423, %v427
    %vm429 = vweird.f32 %v422
    %vm430 = vweird.f32 %v423
    %vm431 = vmor %vm429, %vm430
    %v432 = vsel %vm431, %v423, %v428
    %v433 = vmul.f32 %v352, %v432
    %v434 = vmul.f32 %v353, %v432
    %v435 = vmul.f32 %v354, %v432
    %v436 = vmul.f32 %v355, %v432
    %v437 = vmul.f32 %v356, %v432
    %v438 = vmul.f32 %v357, %v432
    %v439 = vmul.f32 %v358, %v432
    %v440 = vmul.f32 %v359, %v432
    %v441 = vmul.f32 %v360, %v432
    %v442 = vmul.f32 %v361, %v432
    %v443 = vmul.f32 %v362, %v432
    %v444 = vmul.f32 %v363, %v432
    %v445 = vmul.f32 %v364, %v432
    %v446 = vmul.f32 %v365, %v432
    %v447 = vmul.f32 %v366, %v432
    %v448 = vmul.f32 %v367, %v432
    %v449 = vperm.slane %v39, 3
    %v450 = vmul.f32 %v433, %v449
    %v451 = vmul.f32 %v434, %v449
    %v452 = vmul.f32 %v435, %v449
    %v453 = vmul.f32 %v436, %v449
    %v454 = vmul.f32 %v437, %v449
    %v455 = vmul.f32 %v438, %v449
    %v456 = vmul.f32 %v439, %v449
    %v457 = vmul.f32 %v440, %v449
    %v458 = vmul.f32 %v441, %v449
    %v459 = vmul.f32 %v442, %v449
    %v460 = vmul.f32 %v443, %v449
    %v461 = vmul.f32 %v444, %v449
    %v462 = vmul.f32 %v445, %v449
    %v463 = vmul.f32 %v446, %v449
    %v464 = vmul.f32 %v447, %v449
    %v465 = vmul.f32 %v448, %v449
    %v466 = vperm.slane %v39, 4
    %v467 = vadd.f32 %v450, %v466
    %v468 = vadd.f32 %v451, %v466
    %v469 = vadd.f32 %v452, %v466
    %v470 = vadd.f32 %v453, %v466
    %v471 = vadd.f32 %v454, %v466
    %v472 = vadd.f32 %v455, %v466
    %v473 = vadd.f32 %v456, %v466
    %v474 = vadd.f32 %v457, %v466
    %v475 = vadd.f32 %v458, %v466
    %v476 = vadd.f32 %v459, %v466
    %v477 = vadd.f32 %v460, %v466
    %v478 = vadd.f32 %v461, %v466
    %v479 = vadd.f32 %v462, %v466
    %v480 = vadd.f32 %v463, %v466
    %v481 = vadd.f32 %v464, %v466
    %v482 = vadd.f32 %v465, %v466
    %v483 = vmax.f32 %v467, 0.0
    %v484 = vmax.f32 %v468, 0.0
    %v485 = vmax.f32 %v469, 0.0
    %v486 = vmax.f32 %v470, 0.0
    %v487 = vmax.f32 %v471, 0.0
    %v488 = vmax.f32 %v472, 0.0
    %v489 = vmax.f32 %v473, 0.0
    %v490 = vmax.f32 %v474, 0.0
    %v491 = vmax.f32 %v475, 0.0
    %v492 = vmax.f32 %v476, 0.0
    %v493 = vmax.f32 %v477, 0.0
    %v494 = vmax.f32 %v478, 0.0
    %v495 = vmax.f32 %v479, 0.0
    %v496 = vmax.f32 %v480, 0.0
    %v497 = vmax.f32 %v481, 0.0
    %v498 = vmax.f32 %v482, 0.0
    %499 = vst.msk [vmem:[#allocation2] sm:$0xff] %vm313, 0.0
    %vm500 = vcmask 25600
    %501 = vst.msk [vmem:[#allocation2 + $0x8] sm:$0x3] %vm500, 0.0
    %502 = vst.msk [vmem:[#allocation2 + $0xa0] sm:$0xff] %vm313, 0.0
    %503 = vst.msk [vmem:[#allocation2 + $0xa8] sm:$0x3] %vm500, 0.0
    %s504 = scalar_lea.vmem [#allocation2], 144
    %505 = vst.msk [vmem:[%s504] sm:$0xff] %vm313, 0.0
    %506 = vst.msk [vmem:[%s504 + $0x8] sm:$0x3] %vm500, 0.0
    %507 = vst.msk [vmem:[%s504 + $0xa0] sm:$0xff] %vm313, 0.0
    %508 = vst.msk [vmem:[%s504 + $0xa8] sm:$0x3] %vm500, 0.0
    %s509 = scalar_lea.vmem [#allocation2], 16
    %vm510 = vcmask 24576
    %511 = vst.msk [vmem:[%s509] sm:$0x1] %vm510, 0.0
    %512 = vst.msk [vmem:[%s509 + $0x10] sm:$0x1] %vm510, 0.0
    %513 = vst.msk [vmem:[%s509 + $0x20] sm:$0x1] %vm510, 0.0
    %514 = vst.msk [vmem:[%s509 + $0x30] sm:$0x1] %vm510, 0.0
    %515 = vst.msk [vmem:[%s509 + $0x40] sm:$0x1] %vm510, 0.0
    %516 = vst.msk [vmem:[%s509 + $0x50] sm:$0x1] %vm510, 0.0
    %517 = vst.msk [vmem:[%s509 + $0x60] sm:$0x1] %vm510, 0.0
    %518 = vst.msk [vmem:[%s509 + $0x70] sm:$0x1] %vm510, 0.0
    %519 = vst.msk [vmem:[%s509 + $0xa0] sm:$0x1] %vm510, 0.0
    %520 = vst.msk [vmem:[%s509 + $0xb0] sm:$0x1] %vm510, 0.0
    %521 = vst.msk [vmem:[%s509 + $0xc0] sm:$0x1] %vm510, 0.0
    %522 = vst.msk [vmem:[%s509 + $0xd0] sm:$0x1] %vm510, 0.0
    %523 = vst.msk [vmem:[%s509 + $0xe0] sm:$0x1] %vm510, 0.0
    %524 = vst.msk [vmem:[%s509 + $0xf0] sm:$0x1] %vm510, 0.0
    %525 = vst.msk [vmem:[%s509 + $0x100] sm:$0x1] %vm510, 0.0
    %526 = vst.msk [vmem:[%s509 + $0x110] sm:$0x1] %vm510, 0.0
    %527 = vst.msk [vmem:[%s509 + $0x9] sm:$0x1] %vm510, 0.0
    %528 = vst.msk [vmem:[%s509 + $0x19] sm:$0x1] %vm510, 0.0
    %529 = vst.msk [vmem:[%s509 + $0x29] sm:$0x1] %vm510, 0.0
    %530 = vst.msk [vmem:[%s509 + $0x39] sm:$0x1] %vm510, 0.0
    %531 = vst.msk [vmem:[%s509 + $0x49] sm:$0x1] %vm510, 0.0
    %532 = vst.msk [vmem:[%s509 + $0x59] sm:$0x1] %vm510, 0.0
    %533 = vst.msk [vmem:[%s509 + $0x69] sm:$0x1] %vm510, 0.0
    %534 = vst.msk [vmem:[%s509 + $0x79] sm:$0x1] %vm510, 0.0
    %535 = vst.msk [vmem:[%s509 + $0xa9] sm:$0x1] %vm510, 0.0
    %536 = vst.msk [vmem:[%s509 + $0xb9] sm:$0x1] %vm510, 0.0
    %537 = vst.msk [vmem:[%s509 + $0xc9] sm:$0x1] %vm510, 0.0
    %538 = vst.msk [vmem:[%s509 + $0xd9] sm:$0x1] %vm510, 0.0
    %539 = vst.msk [vmem:[%s509 + $0xe9] sm:$0x1] %vm510, 0.0
    %540 = vst.msk [vmem:[%s509 + $0xf9] sm:$0x1] %vm510, 0.0
    %541 = vst.msk [vmem:[%s509 + $0x109] sm:$0x1] %vm510, 0.0
    %542 = vst.msk [vmem:[%s509 + $0x119] sm:$0x1] %vm510, 0.0
    %543 = vst.msk [vmem:[%s509 + $0x1] sm:$0xff] %vm313, %v483
    %544 = vst.msk [vmem:[%s509 + $0x11] sm:$0xff] %vm313, %v484
    %545 = vst.msk [vmem:[%s509 + $0x21] sm:$0xff] %vm313, %v485
    %546 = vst.msk [vmem:[%s509 + $0x31] sm:$0xff] %vm313, %v486
    %547 = vst.msk [vmem:[%s509 + $0x41] sm:$0xff] %vm313, %v487
    %548 = vst.msk [vmem:[%s509 + $0x51] sm:$0xff] %vm313, %v488
    %549 = vst.msk [vmem:[%s509 + $0x61] sm:$0xff] %vm313, %v489
    %550 = vst.msk [vmem:[%s509 + $0x71] sm:$0xff] %vm313, %v490
    %551 = vst.msk [vmem:[%s509 + $0xa1] sm:$0xff] %vm313, %v491
    %552 = vst.msk [vmem:[%s509 + $0xb1] sm:$0xff] %vm313, %v492
    %553 = vst.msk [vmem:[%s509 + $0xc1] sm:$0xff] %vm313, %v493
    %554 = vst.msk [vmem:[%s509 + $0xd1] sm:$0xff] %vm313, %v494
    %555 = vst.msk [vmem:[%s509 + $0xe1] sm:$0xff] %vm313, %v495
    %556 = vst.msk [vmem:[%s509 + $0xf1] sm:$0xff] %vm313, %v496
    %557 = vst.msk [vmem:[%s509 + $0x101] sm:$0xff] %vm313, %v497
    %558 = vst.msk [vmem:[%s509 + $0x111] sm:$0xff] %vm313, %v498
    %v559 = vld [vmem:[#allocation2] sm:$0xff]
    %v560 = vld [vmem:[#allocation2 + $0x10] sm:$0xff]
    %v561 = vld [vmem:[#allocation2 + $0x20] sm:$0xff]
    %v562 = vld [vmem:[#allocation2 + $0x30] sm:$0xff]
    %v563 = vld [vmem:[#allocation2 + $0x40] sm:$0xff]
    %v564 = vld [vmem:[#allocation2 + $0x50] sm:$0xff]
    %v565 = vld [vmem:[#allocation2 + $0x60] sm:$0xff]
    %v566 = vld [vmem:[#allocation2 + $0x70] sm:$0xff]
    %v567 = vld [vmem:[#allocation2 + $0xa0] sm:$0xff]
    %v568 = vld [vmem:[#allocation2 + $0xb0] sm:$0xff]
    %v569 = vld [vmem:[#allocation2 + $0xc0] sm:$0xff]
    %v570 = vld [vmem:[#allocation2 + $0xd0] sm:$0xff]
    %v571 = vld [vmem:[#allocation2 + $0xe0] sm:$0xff]
    %v572 = vld [vmem:[#allocation2 + $0xf0] sm:$0xff]
    %v573 = vld [vmem:[#allocation2 + $0x100] sm:$0xff]
    %v574 = vld [vmem:[#allocation2 + $0x110] sm:$0xff]
    %575 = vst.msk [vmem:[#allocation3] sm:$0xff] %vm313, %v559
    %576 = vst.msk [vmem:[#allocation3 + $0x8] sm:$0xff] %vm313, %v560
    %577 = vst.msk [vmem:[#allocation3 + $0x10] sm:$0xff] %vm313, %v561
    %578 = vst.msk [vmem:[#allocation3 + $0x18] sm:$0xff] %vm313, %v562
    %579 = vst.msk [vmem:[#allocation3 + $0x20] sm:$0xff] %vm313, %v563
    %580 = vst.msk [vmem:[#allocation3 + $0x28] sm:$0xff] %vm313, %v564
    %581 = vst.msk [vmem:[#allocation3 + $0x30] sm:$0xff] %vm313, %v565
    %582 = vst.msk [vmem:[#allocation3 + $0x38] sm:$0xff] %vm313, %v566
    %583 = vst.msk [vmem:[#allocation3 + $0x40] sm:$0xff] %vm313, %v567
    %584 = vst.msk [vmem:[#allocation3 + $0x48] sm:$0xff] %vm313, %v568
    %585 = vst.msk [vmem:[#allocation3 + $0x50] sm:$0xff] %vm313, %v569
    %586 = vst.msk [vmem:[#allocation3 + $0x58] sm:$0xff] %vm313, %v570
    %587 = vst.msk [vmem:[#allocation3 + $0x60] sm:$0xff] %vm313, %v571
    %588 = vst.msk [vmem:[#allocation3 + $0x68] sm:$0xff] %vm313, %v572
    %589 = vst.msk [vmem:[#allocation3 + $0x70] sm:$0xff] %vm313, %v573
    %590 = vst.msk [vmem:[#allocation3 + $0x78] sm:$0xff] %vm313, %v574
    %v591 = vld [vmem:[#allocation2 + $0x1] sm:$0xff]
    %v592 = vld [vmem:[#allocation2 + $0x11] sm:$0xff]
    %v593 = vld [vmem:[#allocation2 + $0x21] sm:$0xff]
    %v594 = vld [vmem:[#allocation2 + $0x31] sm:$0xff]
    %v595 = vld [vmem:[#allocation2 + $0x41] sm:$0xff]
    %v596 = vld [vmem:[#allocation2 + $0x51] sm:$0xff]
    %v597 = vld [vmem:[#allocation2 + $0x61] sm:$0xff]
    %v598 = vld [vmem:[#allocation2 + $0x71] sm:$0xff]
    %v599 = vld [vmem:[#allocation2 + $0xa1] sm:$0xff]
    %v600 = vld [vmem:[#allocation2 + $0xb1] sm:$0xff]
    %v601 = vld [vmem:[#allocation2 + $0xc1] sm:$0xff]
    %v602 = vld [vmem:[#allocation2 + $0xd1] sm:$0xff]
    %v603 = vld [vmem:[#allocation2 + $0xe1] sm:$0xff]
    %v604 = vld [vmem:[#allocation2 + $0xf1] sm:$0xff]
    %v605 = vld [vmem:[#allocation2 + $0x101] sm:$0xff]
    %v606 = vld [vmem:[#allocation2 + $0x111] sm:$0xff]
    %623 = vrot.lane.b32.xlu0 %v591, 4
    %v624 = vpop.permute.xlu0 %623
    %625 = vrot.lane.b32.xlu0 %v592, 4
    %v626 = vpop.permute.xlu0 %625
    %627 = vrot.lane.b32.xlu0 %v593, 4
    %v628 = vpop.permute.xlu0 %627
    %629 = vrot.lane.b32.xlu0 %v594, 4
    %v630 = vpop.permute.xlu0 %629
    %631 = vrot.lane.b32.xlu0 %v595, 4
    %v632 = vpop.permute.xlu0 %631
    %633 = vrot.lane.b32.xlu0 %v596, 4
    %v634 = vpop.permute.xlu0 %633
    %635 = vrot.lane.b32.xlu0 %v597, 4
    %v636 = vpop.permute.xlu0 %635
    %637 = vrot.lane.b32.xlu0 %v598, 4
    %v638 = vpop.permute.xlu0 %637
    %639 = vrot.lane.b32.xlu0 %v599, 4
    %v640 = vpop.permute.xlu0 %639
    %641 = vrot.lane.b32.xlu0 %v600, 4
    %v642 = vpop.permute.xlu0 %641
    %643 = vrot.lane.b32.xlu0 %v601, 4
    %v644 = vpop.permute.xlu0 %643
    %645 = vrot.lane.b32.xlu0 %v602, 4
    %v646 = vpop.permute.xlu0 %645
    %647 = vrot.lane.b32.xlu0 %v603, 4
    %v648 = vpop.permute.xlu0 %647
    %649 = vrot.lane.b32.xlu0 %v604, 4
    %v650 = vpop.permute.xlu0 %649
    %651 = vrot.lane.b32.xlu0 %v605, 4
    %v652 = vpop.permute.xlu0 %651
    %653 = vrot.lane.b32.xlu0 %v606, 4
    %v654 = vpop.permute.xlu0 %653
    %vm671 = vcmask 64544
    %672 = vst.msk [vmem:[#allocation3] sm:$0xff] %vm671, %v624
    %673 = vst.msk [vmem:[#allocation3 + $0x8] sm:$0xff] %vm671, %v626
    %674 = vst.msk [vmem:[#allocation3 + $0x10] sm:$0xff] %vm671, %v628
    %675 = vst.msk [vmem:[#allocation3 + $0x18] sm:$0xff] %vm671, %v630
    %676 = vst.msk [vmem:[#allocation3 + $0x20] sm:$0xff] %vm671, %v632
    %677 = vst.msk [vmem:[#allocation3 + $0x28] sm:$0xff] %vm671, %v634
    %678 = vst.msk [vmem:[#allocation3 + $0x30] sm:$0xff] %vm671, %v636
    %679 = vst.msk [vmem:[#allocation3 + $0x38] sm:$0xff] %vm671, %v638
    %680 = vst.msk [vmem:[#allocation3 + $0x40] sm:$0xff] %vm671, %v640
    %681 = vst.msk [vmem:[#allocation3 + $0x48] sm:$0xff] %vm671, %v642
    %682 = vst.msk [vmem:[#allocation3 + $0x50] sm:$0xff] %vm671, %v644
    %683 = vst.msk [vmem:[#allocation3 + $0x58] sm:$0xff] %vm671, %v646
    %684 = vst.msk [vmem:[#allocation3 + $0x60] sm:$0xff] %vm671, %v648
    %685 = vst.msk [vmem:[#allocation3 + $0x68] sm:$0xff] %vm671, %v650
    %686 = vst.msk [vmem:[#allocation3 + $0x70] sm:$0xff] %vm671, %v652
    %687 = vst.msk [vmem:[#allocation3 + $0x78] sm:$0xff] %vm671, %v654
    %v688 = vld [vmem:[#allocation2 + $0x2] sm:$0xff]
    %v689 = vld [vmem:[#allocation2 + $0x12] sm:$0xff]
    %v690 = vld [vmem:[#allocation2 + $0x22] sm:$0xff]
    %v691 = vld [vmem:[#allocation2 + $0x32] sm:$0xff]
    %v692 = vld [vmem:[#allocation2 + $0x42] sm:$0xff]
    %v693 = vld [vmem:[#allocation2 + $0x52] sm:$0xff]
    %v694 = vld [vmem:[#allocation2 + $0x62] sm:$0xff]
    %v695 = vld [vmem:[#allocation2 + $0x72] sm:$0xff]
    %v696 = vld [vmem:[#allocation2 + $0xa2] sm:$0xff]
    %v697 = vld [vmem:[#allocation2 + $0xb2] sm:$0xff]
    %v698 = vld [vmem:[#allocation2 + $0xc2] sm:$0xff]
    %v699 = vld [vmem:[#allocation2 + $0xd2] sm:$0xff]
    %v700 = vld [vmem:[#allocation2 + $0xe2] sm:$0xff]
    %v701 = vld [vmem:[#allocation2 + $0xf2] sm:$0xff]
    %v702 = vld [vmem:[#allocation2 + $0x102] sm:$0xff]
    %v703 = vld [vmem:[#allocation2 + $0x112] sm:$0xff]
    %720 = vrot.lane.b32.xlu0 %v688, 8
    %v721 = vpop.permute.xlu0 %720
    %722 = vrot.lane.b32.xlu0 %v689, 8
    %v723 = vpop.permute.xlu0 %722
    %724 = vrot.lane.b32.xlu0 %v690, 8
    %v725 = vpop.permute.xlu0 %724
    %726 = vrot.lane.b32.xlu0 %v691, 8
    %v727 = vpop.permute.xlu0 %726
    %728 = vrot.lane.b32.xlu0 %v692, 8
    %v729 = vpop.permute.xlu0 %728
    %730 = vrot.lane.b32.xlu0 %v693, 8
    %v731 = vpop.permute.xlu0 %730
    %732 = vrot.lane.b32.xlu0 %v694, 8
    %v733 = vpop.permute.xlu0 %732
    %734 = vrot.lane.b32.xlu0 %v695, 8
    %v735 = vpop.permute.xlu0 %734
    %736 = vrot.lane.b32.xlu0 %v696, 8
    %v737 = vpop.permute.xlu0 %736
    %738 = vrot.lane.b32.xlu0 %v697, 8
    %v739 = vpop.permute.xlu0 %738
    %740 = vrot.lane.b32.xlu0 %v698, 8
    %v741 = vpop.permute.xlu0 %740
    %742 = vrot.lane.b32.xlu0 %v699, 8
    %v743 = vpop.permute.xlu0 %742
    %744 = vrot.lane.b32.xlu0 %v700, 8
    %v745 = vpop.permute.xlu0 %744
    %746 = vrot.lane.b32.xlu0 %v701, 8
    %v747 = vpop.permute.xlu0 %746
    %748 = vrot.lane.b32.xlu0 %v702, 8
    %v749 = vpop.permute.xlu0 %748
    %750 = vrot.lane.b32.xlu0 %v703, 8
    %v751 = vpop.permute.xlu0 %750
    %vm768 = vcmask 97344
    %769 = vst.msk [vmem:[#allocation3] sm:$0xff] %vm768, %v721
    %770 = vst.msk [vmem:[#allocation3 + $0x8] sm:$0xff] %vm768, %v723
    %771 = vst.msk [vmem:[#allocation3 + $0x10] sm:$0xff] %vm768, %v725
    %772 = vst.msk [vmem:[#allocation3 + $0x18] sm:$0xff] %vm768, %v727
    %773 = vst.msk [vmem:[#allocation3 + $0x20] sm:$0xff] %vm768, %v729
    %774 = vst.msk [vmem:[#allocation3 + $0x28] sm:$0xff] %vm768, %v731
    %775 = vst.msk [vmem:[#allocation3 + $0x30] sm:$0xff] %vm768, %v733
    %776 = vst.msk [vmem:[#allocation3 + $0x38] sm:$0xff] %vm768, %v735
    %777 = vst.msk [vmem:[#allocation3 + $0x40] sm:$0xff] %vm768, %v737
    %778 = vst.msk [vmem:[#allocation3 + $0x48] sm:$0xff] %vm768, %v739
    %779 = vst.msk [vmem:[#allocation3 + $0x50] sm:$0xff] %vm768, %v741
    %780 = vst.msk [vmem:[#allocation3 + $0x58] sm:$0xff] %vm768, %v743
    %781 = vst.msk [vmem:[#allocation3 + $0x60] sm:$0xff] %vm768, %v745
    %782 = vst.msk [vmem:[#allocation3 + $0x68] sm:$0xff] %vm768, %v747
    %783 = vst.msk [vmem:[#allocation3 + $0x70] sm:$0xff] %vm768, %v749
    %784 = vst.msk [vmem:[#allocation3 + $0x78] sm:$0xff] %vm768, %v751
    %v785 = vld [vmem:[%s509] sm:$0xff]
    %v786 = vld [vmem:[%s509 + $0x10] sm:$0xff]
    %v787 = vld [vmem:[%s509 + $0x20] sm:$0xff]
    %v788 = vld [vmem:[%s509 + $0x30] sm:$0xff]
    %v789 = vld [vmem:[%s509 + $0x40] sm:$0xff]
    %v790 = vld [vmem:[%s509 + $0x50] sm:$0xff]
    %v791 = vld [vmem:[%s509 + $0x60] sm:$0xff]
    %v792 = vld [vmem:[%s509 + $0x70] sm:$0xff]
    %v793 = vld [vmem:[%s509 + $0xa0] sm:$0xff]
    %v794 = vld [vmem:[%s509 + $0xb0] sm:$0xff]
    %v795 = vld [vmem:[%s509 + $0xc0] sm:$0xff]
    %v796 = vld [vmem:[%s509 + $0xd0] sm:$0xff]
    %v797 = vld [vmem:[%s509 + $0xe0] sm:$0xff]
    %v798 = vld [vmem:[%s509 + $0xf0] sm:$0xff]
    %v799 = vld [vmem:[%s509 + $0x100] sm:$0xff]
    %v800 = vld [vmem:[%s509 + $0x110] sm:$0xff]
    %817 = vrot.lane.b32.xlu0 %v785, 12
    %v818 = vpop.permute.xlu0 %817
    %819 = vrot.lane.b32.xlu0 %v786, 12
    %v820 = vpop.permute.xlu0 %819
    %821 = vrot.lane.b32.xlu0 %v787, 12
    %v822 = vpop.permute.xlu0 %821
    %823 = vrot.lane.b32.xlu0 %v788, 12
    %v824 = vpop.permute.xlu0 %823
    %825 = vrot.lane.b32.xlu0 %v789, 12
    %v826 = vpop.permute.xlu0 %825
    %827 = vrot.lane.b32.xlu0 %v790, 12
    %v828 = vpop.permute.xlu0 %827
    %829 = vrot.lane.b32.xlu0 %v791, 12
    %v830 = vpop.permute.xlu0 %829
    %831 = vrot.lane.b32.xlu0 %v792, 12
    %v832 = vpop.permute.xlu0 %831
    %833 = vrot.lane.b32.xlu0 %v793, 12
    %v834 = vpop.permute.xlu0 %833
    %835 = vrot.lane.b32.xlu0 %v794, 12
    %v836 = vpop.permute.xlu0 %835
    %837 = vrot.lane.b32.xlu0 %v795, 12
    %v838 = vpop.permute.xlu0 %837
    %839 = vrot.lane.b32.xlu0 %v796, 12
    %v840 = vpop.permute.xlu0 %839
    %841 = vrot.lane.b32.xlu0 %v797, 12
    %v842 = vpop.permute.xlu0 %841
    %843 = vrot.lane.b32.xlu0 %v798, 12
    %v844 = vpop.permute.xlu0 %843
    %845 = vrot.lane.b32.xlu0 %v799, 12
    %v846 = vpop.permute.xlu0 %845
    %847 = vrot.lane.b32.xlu0 %v800, 12
    %v848 = vpop.permute.xlu0 %847
    %vm865 = vcmask 130144
    %866 = vst.msk [vmem:[#allocation3] sm:$0xff] %vm865, %v818
    %867 = vst.msk [vmem:[#allocation3 + $0x8] sm:$0xff] %vm865, %v820
    %868 = vst.msk [vmem:[#allocation3 + $0x10] sm:$0xff] %vm865, %v822
    %869 = vst.msk [vmem:[#allocation3 + $0x18] sm:$0xff] %vm865, %v824
    %870 = vst.msk [vmem:[#allocation3 + $0x20] sm:$0xff] %vm865, %v826
    %871 = vst.msk [vmem:[#allocation3 + $0x28] sm:$0xff] %vm865, %v828
    %872 = vst.msk [vmem:[#allocation3 + $0x30] sm:$0xff] %vm865, %v830
    %873 = vst.msk [vmem:[#allocation3 + $0x38] sm:$0xff] %vm865, %v832
    %874 = vst.msk [vmem:[#allocation3 + $0x40] sm:$0xff] %vm865, %v834
    %875 = vst.msk [vmem:[#allocation3 + $0x48] sm:$0xff] %vm865, %v836
    %876 = vst.msk [vmem:[#allocation3 + $0x50] sm:$0xff] %vm865, %v838
    %877 = vst.msk [vmem:[#allocation3 + $0x58] sm:$0xff] %vm865, %v840
    %878 = vst.msk [vmem:[#allocation3 + $0x60] sm:$0xff] %vm865, %v842
    %879 = vst.msk [vmem:[#allocation3 + $0x68] sm:$0xff] %vm865, %v844
    %880 = vst.msk [vmem:[#allocation3 + $0x70] sm:$0xff] %vm865, %v846
    %881 = vst.msk [vmem:[#allocation3 + $0x78] sm:$0xff] %vm865, %v848
    %v882 = vld [vmem:[%s509 + $0x1] sm:$0xff]
    %v883 = vld [vmem:[%s509 + $0x11] sm:$0xff]
    %v884 = vld [vmem:[%s509 + $0x21] sm:$0xff]
    %v885 = vld [vmem:[%s509 + $0x31] sm:$0xff]
    %v886 = vld [vmem:[%s509 + $0x41] sm:$0xff]
    %v887 = vld [vmem:[%s509 + $0x51] sm:$0xff]
    %v888 = vld [vmem:[%s509 + $0x61] sm:$0xff]
    %v889 = vld [vmem:[%s509 + $0x71] sm:$0xff]
    %v890 = vld [vmem:[%s509 + $0xa1] sm:$0xff]
    %v891 = vld [vmem:[%s509 + $0xb1] sm:$0xff]
    %v892 = vld [vmem:[%s509 + $0xc1] sm:$0xff]
    %v893 = vld [vmem:[%s509 + $0xd1] sm:$0xff]
    %v894 = vld [vmem:[%s509 + $0xe1] sm:$0xff]
    %v895 = vld [vmem:[%s509 + $0xf1] sm:$0xff]
    %v896 = vld [vmem:[%s509 + $0x101] sm:$0xff]
    %v897 = vld [vmem:[%s509 + $0x111] sm:$0xff]
    %914 = vrot.lane.b32.xlu0 %v882, 16
    %v915 = vpop.permute.xlu0 %914
    %916 = vrot.lane.b32.xlu0 %v883, 16
    %v917 = vpop.permute.xlu0 %916
    %918 = vrot.lane.b32.xlu0 %v884, 16
    %v919 = vpop.permute.xlu0 %918
    %920 = vrot.lane.b32.xlu0 %v885, 16
    %v921 = vpop.permute.xlu0 %920
    %922 = vrot.lane.b32.xlu0 %v886, 16
    %v923 = vpop.permute.xlu0 %922
    %924 = vrot.lane.b32.xlu0 %v887, 16
    %v925 = vpop.permute.xlu0 %924
    %926 = vrot.lane.b32.xlu0 %v888, 16
    %v927 = vpop.permute.xlu0 %926
    %928 = vrot.lane.b32.xlu0 %v889, 16
    %v929 = vpop.permute.xlu0 %928
    %930 = vrot.lane.b32.xlu0 %v890, 16
    %v931 = vpop.permute.xlu0 %930
    %932 = vrot.lane.b32.xlu0 %v891, 16
    %v933 = vpop.permute.xlu0 %932
    %934 = vrot.lane.b32.xlu0 %v892, 16
    %v935 = vpop.permute.xlu0 %934
    %936 = vrot.lane.b32.xlu0 %v893, 16
    %v937 = vpop.permute.xlu0 %936
    %938 = vrot.lane.b32.xlu0 %v894, 16
    %v939 = vpop.permute.xlu0 %938
    %940 = vrot.lane.b32.xlu0 %v895, 16
    %v941 = vpop.permute.xlu0 %940
    %942 = vrot.lane.b32.xlu0 %v896, 16
    %v943 = vpop.permute.xlu0 %942
    %944 = vrot.lane.b32.xlu0 %v897, 16
    %v945 = vpop.permute.xlu0 %944
    %vm962 = vcmask 162944
    %963 = vst.msk [vmem:[#allocation3] sm:$0xff] %vm962, %v915
    %964 = vst.msk [vmem:[#allocation3 + $0x8] sm:$0xff] %vm962, %v917
    %965 = vst.msk [vmem:[#allocation3 + $0x10] sm:$0xff] %vm962, %v919
    %966 = vst.msk [vmem:[#allocation3 + $0x18] sm:$0xff] %vm962, %v921
    %967 = vst.msk [vmem:[#allocation3 + $0x20] sm:$0xff] %vm962, %v923
    %968 = vst.msk [vmem:[#allocation3 + $0x28] sm:$0xff] %vm962, %v925
    %969 = vst.msk [vmem:[#allocation3 + $0x30] sm:$0xff] %vm962, %v927
    %970 = vst.msk [vmem:[#allocation3 + $0x38] sm:$0xff] %vm962, %v929
    %971 = vst.msk [vmem:[#allocation3 + $0x40] sm:$0xff] %vm962, %v931
    %972 = vst.msk [vmem:[#allocation3 + $0x48] sm:$0xff] %vm962, %v933
    %973 = vst.msk [vmem:[#allocation3 + $0x50] sm:$0xff] %vm962, %v935
    %974 = vst.msk [vmem:[#allocation3 + $0x58] sm:$0xff] %vm962, %v937
    %975 = vst.msk [vmem:[#allocation3 + $0x60] sm:$0xff] %vm962, %v939
    %976 = vst.msk [vmem:[#allocation3 + $0x68] sm:$0xff] %vm962, %v941
    %977 = vst.msk [vmem:[#allocation3 + $0x70] sm:$0xff] %vm962, %v943
    %978 = vst.msk [vmem:[#allocation3 + $0x78] sm:$0xff] %vm962, %v945
    %v979 = vld [vmem:[%s509 + $0x2] sm:$0xff]
    %v980 = vld [vmem:[%s509 + $0x12] sm:$0xff]
    %v981 = vld [vmem:[%s509 + $0x22] sm:$0xff]
    %v982 = vld [vmem:[%s509 + $0x32] sm:$0xff]
    %v983 = vld [vmem:[%s509 + $0x42] sm:$0xff]
    %v984 = vld [vmem:[%s509 + $0x52] sm:$0xff]
    %v985 = vld [vmem:[%s509 + $0x62] sm:$0xff]
    %v986 = vld [vmem:[%s509 + $0x72] sm:$0xff]
    %v987 = vld [vmem:[%s509 + $0xa2] sm:$0xff]
    %v988 = vld [vmem:[%s509 + $0xb2] sm:$0xff]
    %v989 = vld [vmem:[%s509 + $0xc2] sm:$0xff]
    %v990 = vld [vmem:[%s509 + $0xd2] sm:$0xff]
    %v991 = vld [vmem:[%s509 + $0xe2] sm:$0xff]
    %v992 = vld [vmem:[%s509 + $0xf2] sm:$0xff]
    %v993 = vld [vmem:[%s509 + $0x102] sm:$0xff]
    %v994 = vld [vmem:[%s509 + $0x112] sm:$0xff]
    %1011 = vrot.lane.b32.xlu0 %v979, 20
    %v1012 = vpop.permute.xlu0 %1011
    %1013 = vrot.lane.b32.xlu0 %v980, 20
    %v1014 = vpop.permute.xlu0 %1013
    %1015 = vrot.lane.b32.xlu0 %v981, 20
    %v1016 = vpop.permute.xlu0 %1015
    %1017 = vrot.lane.b32.xlu0 %v982, 20
    %v1018 = vpop.permute.xlu0 %1017
    %1019 = vrot.lane.b32.xlu0 %v983, 20
    %v1020 = vpop.permute.xlu0 %1019
    %1021 = vrot.lane.b32.xlu0 %v984, 20
    %v1022 = vpop.permute.xlu0 %1021
    %1023 = vrot.lane.b32.xlu0 %v985, 20
    %v1024 = vpop.permute.xlu0 %1023
    %1025 = vrot.lane.b32.xlu0 %v986, 20
    %v1026 = vpop.permute.xlu0 %1025
    %1027 = vrot.lane.b32.xlu0 %v987, 20
    %v1028 = vpop.permute.xlu0 %1027
    %1029 = vrot.lane.b32.xlu0 %v988, 20
    %v1030 = vpop.permute.xlu0 %1029
    %1031 = vrot.lane.b32.xlu0 %v989, 20
    %v1032 = vpop.permute.xlu0 %1031
    %1033 = vrot.lane.b32.xlu0 %v990, 20
    %v1034 = vpop.permute.xlu0 %1033
    %1035 = vrot.lane.b32.xlu0 %v991, 20
    %v1036 = vpop.permute.xlu0 %1035
    %1037 = vrot.lane.b32.xlu0 %v992, 20
    %v1038 = vpop.permute.xlu0 %1037
    %1039 = vrot.lane.b32.xlu0 %v993, 20
    %v1040 = vpop.permute.xlu0 %1039
    %1041 = vrot.lane.b32.xlu0 %v994, 20
    %v1042 = vpop.permute.xlu0 %1041
    %vm1059 = vcmask 195744
    %1060 = vst.msk [vmem:[#allocation3] sm:$0xff] %vm1059, %v1012
    %1061 = vst.msk [vmem:[#allocation3 + $0x8] sm:$0xff] %vm1059, %v1014
    %1062 = vst.msk [vmem:[#allocation3 + $0x10] sm:$0xff] %vm1059, %v1016
    %1063 = vst.msk [vmem:[#allocation3 + $0x18] sm:$0xff] %vm1059, %v1018
    %1064 = vst.msk [vmem:[#allocation3 + $0x20] sm:$0xff] %vm1059, %v1020
    %1065 = vst.msk [vmem:[#allocation3 + $0x28] sm:$0xff] %vm1059, %v1022
    %1066 = vst.msk [vmem:[#allocation3 + $0x30] sm:$0xff] %vm1059, %v1024
    %1067 = vst.msk [vmem:[#allocation3 + $0x38] sm:$0xff] %vm1059, %v1026
    %1068 = vst.msk [vmem:[#allocation3 + $0x40] sm:$0xff] %vm1059, %v1028
    %1069 = vst.msk [vmem:[#allocation3 + $0x48] sm:$0xff] %vm1059, %v1030
    %1070 = vst.msk [vmem:[#allocation3 + $0x50] sm:$0xff] %vm1059, %v1032
    %1071 = vst.msk [vmem:[#allocation3 + $0x58] sm:$0xff] %vm1059, %v1034
    %1072 = vst.msk [vmem:[#allocation3 + $0x60] sm:$0xff] %vm1059, %v1036
    %1073 = vst.msk [vmem:[#allocation3 + $0x68] sm:$0xff] %vm1059, %v1038
    %1074 = vst.msk [vmem:[#allocation3 + $0x70] sm:$0xff] %vm1059, %v1040
    %1075 = vst.msk [vmem:[#allocation3 + $0x78] sm:$0xff] %vm1059, %v1042
    %s1076 = scalar_lea.vmem [#allocation2], 32
    %v1077 = vld [vmem:[%s1076] sm:$0xff]
    %v1078 = vld [vmem:[%s1076 + $0x10] sm:$0xff]
    %v1079 = vld [vmem:[%s1076 + $0x20] sm:$0xff]
    %v1080 = vld [vmem:[%s1076 + $0x30] sm:$0xff]
    %v1081 = vld [vmem:[%s1076 + $0x40] sm:$0xff]
    %v1082 = vld [vmem:[%s1076 + $0x50] sm:$0xff]
    %v1083 = vld [vmem:[%s1076 + $0x60] sm:$0xff]
    %v1084 = vld [vmem:[%s1076 + $0x70] sm:$0xff]
    %v1085 = vld [vmem:[%s1076 + $0xa0] sm:$0xff]
    %v1086 = vld [vmem:[%s1076 + $0xb0] sm:$0xff]
    %v1087 = vld [vmem:[%s1076 + $0xc0] sm:$0xff]
    %v1088 = vld [vmem:[%s1076 + $0xd0] sm:$0xff]
    %v1089 = vld [vmem:[%s1076 + $0xe0] sm:$0xff]
    %v1090 = vld [vmem:[%s1076 + $0xf0] sm:$0xff]
    %v1091 = vld [vmem:[%s1076 + $0x100] sm:$0xff]
    %v1092 = vld [vmem:[%s1076 + $0x110] sm:$0xff]
    %1109 = vrot.lane.b32.xlu0 %v1077, 24
    %v1110 = vpop.permute.xlu0 %1109
    %1111 = vrot.lane.b32.xlu0 %v1078, 24
    %v1112 = vpop.permute.xlu0 %1111
    %1113 = vrot.lane.b32.xlu0 %v1079, 24
    %v1114 = vpop.permute.xlu0 %1113
    %1115 = vrot.lane.b32.xlu0 %v1080, 24
    %v1116 = vpop.permute.xlu0 %1115
    %1117 = vrot.lane.b32.xlu0 %v1081, 24
    %v1118 = vpop.permute.xlu0 %1117
    %1119 = vrot.lane.b32.xlu0 %v1082, 24
    %v1120 = vpop.permute.xlu0 %1119
    %1121 = vrot.lane.b32.xlu0 %v1083, 24
    %v1122 = vpop.permute.xlu0 %1121
    %1123 = vrot.lane.b32.xlu0 %v1084, 24
    %v1124 = vpop.permute.xlu0 %1123
    %1125 = vrot.lane.b32.xlu0 %v1085, 24
    %v1126 = vpop.permute.xlu0 %1125
    %1127 = vrot.lane.b32.xlu0 %v1086, 24
    %v1128 = vpop.permute.xlu0 %1127
    %1129 = vrot.lane.b32.xlu0 %v1087, 24
    %v1130 = vpop.permute.xlu0 %1129
    %1131 = vrot.lane.b32.xlu0 %v1088, 24
    %v1132 = vpop.permute.xlu0 %1131
    %1133 = vrot.lane.b32.xlu0 %v1089, 24
    %v1134 = vpop.permute.xlu0 %1133
    %1135 = vrot.lane.b32.xlu0 %v1090, 24
    %v1136 = vpop.permute.xlu0 %1135
    %1137 = vrot.lane.b32.xlu0 %v1091, 24
    %v1138 = vpop.permute.xlu0 %1137
    %1139 = vrot.lane.b32.xlu0 %v1092, 24
    %v1140 = vpop.permute.xlu0 %1139
    %vm1157 = vcmask 228544
    %1158 = vst.msk [vmem:[#allocation3] sm:$0xff] %vm1157, %v1110
    %1159 = vst.msk [vmem:[#allocation3 + $0x8] sm:$0xff] %vm1157, %v1112
    %1160 = vst.msk [vmem:[#allocation3 + $0x10] sm:$0xff] %vm1157, %v1114
    %1161 = vst.msk [vmem:[#allocation3 + $0x18] sm:$0xff] %vm1157, %v1116
    %1162 = vst.msk [vmem:[#allocation3 + $0x20] sm:$0xff] %vm1157, %v1118
    %1163 = vst.msk [vmem:[#allocation3 + $0x28] sm:$0xff] %vm1157, %v1120
    %1164 = vst.msk [vmem:[#allocation3 + $0x30] sm:$0xff] %vm1157, %v1122
    %1165 = vst.msk [vmem:[#allocation3 + $0x38] sm:$0xff] %vm1157, %v1124
    %1166 = vst.msk [vmem:[#allocation3 + $0x40] sm:$0xff] %vm1157, %v1126
    %1167 = vst.msk [vmem:[#allocation3 + $0x48] sm:$0xff] %vm1157, %v1128
    %1168 = vst.msk [vmem:[#allocation3 + $0x50] sm:$0xff] %vm1157, %v1130
    %1169 = vst.msk [vmem:[#allocation3 + $0x58] sm:$0xff] %vm1157, %v1132
    %1170 = vst.msk [vmem:[#allocation3 + $0x60] sm:$0xff] %vm1157, %v1134
    %1171 = vst.msk [vmem:[#allocation3 + $0x68] sm:$0xff] %vm1157, %v1136
    %1172 = vst.msk [vmem:[#allocation3 + $0x70] sm:$0xff] %vm1157, %v1138
    %1173 = vst.msk [vmem:[#allocation3 + $0x78] sm:$0xff] %vm1157, %v1140
    %v1174 = vld [vmem:[%s1076 + $0x1] sm:$0xff]
    %v1175 = vld [vmem:[%s1076 + $0x11] sm:$0xff]
    %v1176 = vld [vmem:[%s1076 + $0x21] sm:$0xff]
    %v1177 = vld [vmem:[%s1076 + $0x31] sm:$0xff]
    %v1178 = vld [vmem:[%s1076 + $0x41] sm:$0xff]
    %v1179 = vld [vmem:[%s1076 + $0x51] sm:$0xff]
    %v1180 = vld [vmem:[%s1076 + $0x61] sm:$0xff]
    %v1181 = vld [vmem:[%s1076 + $0x71] sm:$0xff]
    %v1182 = vld [vmem:[%s1076 + $0xa1] sm:$0xff]
    %v1183 = vld [vmem:[%s1076 + $0xb1] sm:$0xff]
    %v1184 = vld [vmem:[%s1076 + $0xc1] sm:$0xff]
    %v1185 = vld [vmem:[%s1076 + $0xd1] sm:$0xff]
    %v1186 = vld [vmem:[%s1076 + $0xe1] sm:$0xff]
    %v1187 = vld [vmem:[%s1076 + $0xf1] sm:$0xff]
    %v1188 = vld [vmem:[%s1076 + $0x101] sm:$0xff]
    %v1189 = vld [vmem:[%s1076 + $0x111] sm:$0xff]
    %1206 = vrot.lane.b32.xlu0 %v1174, 28
    %v1207 = vpop.permute.xlu0 %1206
    %1208 = vrot.lane.b32.xlu0 %v1175, 28
    %v1209 = vpop.permute.xlu0 %1208
    %1210 = vrot.lane.b32.xlu0 %v1176, 28
    %v1211 = vpop.permute.xlu0 %1210
    %1212 = vrot.lane.b32.xlu0 %v1177, 28
    %v1213 = vpop.permute.xlu0 %1212
    %1214 = vrot.lane.b32.xlu0 %v1178, 28
    %v1215 = vpop.permute.xlu0 %1214
    %1216 = vrot.lane.b32.xlu0 %v1179, 28
    %v1217 = vpop.permute.xlu0 %1216
    %1218 = vrot.lane.b32.xlu0 %v1180, 28
    %v1219 = vpop.permute.xlu0 %1218
    %1220 = vrot.lane.b32.xlu0 %v1181, 28
    %v1221 = vpop.permute.xlu0 %1220
    %1222 = vrot.lane.b32.xlu0 %v1182, 28
    %v1223 = vpop.permute.xlu0 %1222
    %1224 = vrot.lane.b32.xlu0 %v1183, 28
    %v1225 = vpop.permute.xlu0 %1224
    %1226 = vrot.lane.b32.xlu0 %v1184, 28
    %v1227 = vpop.permute.xlu0 %1226
    %1228 = vrot.lane.b32.xlu0 %v1185, 28
    %v1229 = vpop.permute.xlu0 %1228
    %1230 = vrot.lane.b32.xlu0 %v1186, 28
    %v1231 = vpop.permute.xlu0 %1230
    %1232 = vrot.lane.b32.xlu0 %v1187, 28
    %v1233 = vpop.permute.xlu0 %1232
    %1234 = vrot.lane.b32.xlu0 %v1188, 28
    %v1235 = vpop.permute.xlu0 %1234
    %1236 = vrot.lane.b32.xlu0 %v1189, 28
    %v1237 = vpop.permute.xlu0 %1236
    %vm1254 = vcmask 261344
    %1255 = vst.msk [vmem:[#allocation3] sm:$0xff] %vm1254, %v1207
    %1256 = vst.msk [vmem:[#allocation3 + $0x8] sm:$0xff] %vm1254, %v1209
    %1257 = vst.msk [vmem:[#allocation3 + $0x10] sm:$0xff] %vm1254, %v1211
    %1258 = vst.msk [vmem:[#allocation3 + $0x18] sm:$0xff] %vm1254, %v1213
    %1259 = vst.msk [vmem:[#allocation3 + $0x20] sm:$0xff] %vm1254, %v1215
    %1260 = vst.msk [vmem:[#allocation3 + $0x28] sm:$0xff] %vm1254, %v1217
    %1261 = vst.msk [vmem:[#allocation3 + $0x30] sm:$0xff] %vm1254, %v1219
    %1262 = vst.msk [vmem:[#allocation3 + $0x38] sm:$0xff] %vm1254, %v1221
    %1263 = vst.msk [vmem:[#allocation3 + $0x40] sm:$0xff] %vm1254, %v1223
    %1264 = vst.msk [vmem:[#allocation3 + $0x48] sm:$0xff] %vm1254, %v1225
    %1265 = vst.msk [vmem:[#allocation3 + $0x50] sm:$0xff] %vm1254, %v1227
    %1266 = vst.msk [vmem:[#allocation3 + $0x58] sm:$0xff] %vm1254, %v1229
    %1267 = vst.msk [vmem:[#allocation3 + $0x60] sm:$0xff] %vm1254, %v1231
    %1268 = vst.msk [vmem:[#allocation3 + $0x68] sm:$0xff] %vm1254, %v1233
    %1269 = vst.msk [vmem:[#allocation3 + $0x70] sm:$0xff] %vm1254, %v1235
    %1270 = vst.msk [vmem:[#allocation3 + $0x78] sm:$0xff] %vm1254, %v1237
    %v1271 = vld [vmem:[%s1076 + $0x2] sm:$0xff]
    %v1272 = vld [vmem:[%s1076 + $0x12] sm:$0xff]
    %v1273 = vld [vmem:[%s1076 + $0x22] sm:$0xff]
    %v1274 = vld [vmem:[%s1076 + $0x32] sm:$0xff]
    %v1275 = vld [vmem:[%s1076 + $0x42] sm:$0xff]
    %v1276 = vld [vmem:[%s1076 + $0x52] sm:$0xff]
    %v1277 = vld [vmem:[%s1076 + $0x62] sm:$0xff]
    %v1278 = vld [vmem:[%s1076 + $0x72] sm:$0xff]
    %v1279 = vld [vmem:[%s1076 + $0xa2] sm:$0xff]
    %v1280 = vld [vmem:[%s1076 + $0xb2] sm:$0xff]
    %v1281 = vld [vmem:[%s1076 + $0xc2] sm:$0xff]
    %v1282 = vld [vmem:[%s1076 + $0xd2] sm:$0xff]
    %v1283 = vld [vmem:[%s1076 + $0xe2] sm:$0xff]
    %v1284 = vld [vmem:[%s1076 + $0xf2] sm:$0xff]
    %v1285 = vld [vmem:[%s1076 + $0x102] sm:$0xff]
    %v1286 = vld [vmem:[%s1076 + $0x112] sm:$0xff]
    %1303 = vrot.lane.b32.xlu0 %v1271, 32
    %v1304 = vpop.permute.xlu0 %1303
    %1305 = vrot.lane.b32.xlu0 %v1272, 32
    %v1306 = vpop.permute.xlu0 %1305
    %1307 = vrot.lane.b32.xlu0 %v1273, 32
    %v1308 = vpop.permute.xlu0 %1307
    %1309 = vrot.lane.b32.xlu0 %v1274, 32
    %v1310 = vpop.permute.xlu0 %1309
    %1311 = vrot.lane.b32.xlu0 %v1275, 32
    %v1312 = vpop.permute.xlu0 %1311
    %1313 = vrot.lane.b32.xlu0 %v1276, 32
    %v1314 = vpop.permute.xlu0 %1313
    %1315 = vrot.lane.b32.xlu0 %v1277, 32
    %v1316 = vpop.permute.xlu0 %1315
    %1317 = vrot.lane.b32.xlu0 %v1278, 32
    %v1318 = vpop.permute.xlu0 %1317
    %1319 = vrot.lane.b32.xlu0 %v1279, 32
    %v1320 = vpop.permute.xlu0 %1319
    %1321 = vrot.lane.b32.xlu0 %v1280, 32
    %v1322 = vpop.permute.xlu0 %1321
    %1323 = vrot.lane.b32.xlu0 %v1281, 32
    %v1324 = vpop.permute.xlu0 %1323
    %1325 = vrot.lane.b32.xlu0 %v1282, 32
    %v1326 = vpop.permute.xlu0 %1325
    %1327 = vrot.lane.b32.xlu0 %v1283, 32
    %v1328 = vpop.permute.xlu0 %1327
    %1329 = vrot.lane.b32.xlu0 %v1284, 32
    %v1330 = vpop.permute.xlu0 %1329
    %1331 = vrot.lane.b32.xlu0 %v1285, 32
    %v1332 = vpop.permute.xlu0 %1331
    %1333 = vrot.lane.b32.xlu0 %v1286, 32
    %v1334 = vpop.permute.xlu0 %1333
    %vm1351 = vcmask 294144
    %1352 = vst.msk [vmem:[#allocation3] sm:$0xff] %vm1351, %v1304
    %1353 = vst.msk [vmem:[#allocation3 + $0x8] sm:$0xff] %vm1351, %v1306
    %1354 = vst.msk [vmem:[#allocation3 + $0x10] sm:$0xff] %vm1351, %v1308
    %1355 = vst.msk [vmem:[#allocation3 + $0x18] sm:$0xff] %vm1351, %v1310
    %1356 = vst.msk [vmem:[#allocation3 + $0x20] sm:$0xff] %vm1351, %v1312
    %1357 = vst.msk [vmem:[#allocation3 + $0x28] sm:$0xff] %vm1351, %v1314
    %1358 = vst.msk [vmem:[#allocation3 + $0x30] sm:$0xff] %vm1351, %v1316
    %1359 = vst.msk [vmem:[#allocation3 + $0x38] sm:$0xff] %vm1351, %v1318
    %1360 = vst.msk [vmem:[#allocation3 + $0x40] sm:$0xff] %vm1351, %v1320
    %1361 = vst.msk [vmem:[#allocation3 + $0x48] sm:$0xff] %vm1351, %v1322
    %1362 = vst.msk [vmem:[#allocation3 + $0x50] sm:$0xff] %vm1351, %v1324
    %1363 = vst.msk [vmem:[#allocation3 + $0x58] sm:$0xff] %vm1351, %v1326
    %1364 = vst.msk [vmem:[#allocation3 + $0x60] sm:$0xff] %vm1351, %v1328
    %1365 = vst.msk [vmem:[#allocation3 + $0x68] sm:$0xff] %vm1351, %v1330
    %1366 = vst.msk [vmem:[#allocation3 + $0x70] sm:$0xff] %vm1351, %v1332
    %1367 = vst.msk [vmem:[#allocation3 + $0x78] sm:$0xff] %vm1351, %v1334
    %v1368 = vld [vmem:[#allocation3] sm:$0xff]
    %v1369 = vld [vmem:[#allocation3 + $0x8] sm:$0xff]
    %v1370 = vld [vmem:[#allocation3 + $0x10] sm:$0xff]
    %v1371 = vld [vmem:[#allocation3 + $0x18] sm:$0xff]
    %v1372 = vld [vmem:[#allocation3 + $0x20] sm:$0xff]
    %v1373 = vld [vmem:[#allocation3 + $0x28] sm:$0xff]
    %v1374 = vld [vmem:[#allocation3 + $0x30] sm:$0xff]
    %v1375 = vld [vmem:[#allocation3 + $0x38] sm:$0xff]
    %v1376 = vld [vmem:[#allocation3 + $0x40] sm:$0xff]
    %v1377 = vld [vmem:[#allocation3 + $0x48] sm:$0xff]
    %v1378 = vld [vmem:[#allocation3 + $0x50] sm:$0xff]
    %v1379 = vld [vmem:[#allocation3 + $0x58] sm:$0xff]
    %v1380 = vld [vmem:[#allocation3 + $0x60] sm:$0xff]
    %v1381 = vld [vmem:[#allocation3 + $0x68] sm:$0xff]
    %v1382 = vld [vmem:[#allocation3 + $0x70] sm:$0xff]
    %v1383 = vld [vmem:[#allocation3 + $0x78] sm:$0xff]
    %v1384 = vpack.c.bf16 %v1369, %v1368
    %v1385 = vpack.c.bf16 %v1371, %v1370
    %v1386 = vpack.c.bf16 %v1373, %v1372
    %v1387 = vpack.c.bf16 %v1375, %v1374
    %v1388 = vpack.c.bf16 %v1377, %v1376
    %v1389 = vpack.c.bf16 %v1379, %v1378
    %v1390 = vpack.c.bf16 %v1381, %v1380
    %v1391 = vpack.c.bf16 %v1383, %v1382
    %v1392 = vperm.slane %v39, 5
    %v1398 = vunpack.c.l.b16 %v33
    %v1399 = vunpack.c.l.b16 %v34
    %v1400 = vunpack.c.l.b16 %v35
    %v1401 = vunpack.c.l.b16 %v36
    %v1402 = vunpack.c.l.b16 %v37
    %v1403 = vpack.c.b16 %v1399, %v1398
    %v1404 = vpack.c.b16 %v1401, %v1400
    %v1405 = vpack.c.b16 %v1402, %v1402
    %vm1408 = vcmask 293888
    %v1410 = vsel %vm1408, %v1384, 0
    %v1413 = vsel %vm1408, %v1385, 0
    %v1416 = vsel %vm1408, %v1386, 0
    %v1419 = vsel %vm1408, %v1387, 0
    %v1422 = vsel %vm1408, %v1388, 0
    %v1425 = vsel %vm1408, %v1389, 0
    %v1428 = vsel %vm1408, %v1390, 0
    %v1431 = vsel %vm1408, %v1391, 0
    %vm1433 = vcmask 1041408
    %v1435 = vsel %vm1433, %v1405, 0
    %1437 = vmatpush.bf16.msra.mxu0 0
    %1438 = vmatpush.bf16.msra.mxu0 0
    %1439 = vmatpush.bf16.msra.mxu0 0
    %1440 = vmatpush.bf16.msra.mxu0 0
    %1441 = vmatpush.bf16.msra.mxu0 0
    %1442 = vmatpush.bf16.msra.mxu0 %v1435
    %1443 = vmatpush.bf16.msra.mxu0 %v1404
    %1444 = vmatpush.bf16.msra.mxu0 %v1403
    %1445 = vmatmul.bf16.gmra.mxu0 %v1410
    %v1446 = vpop.f32.mrf.mxu0
    %v1447 = vadd.f32 %v1392, %v1446
    %v1448 = vpop.f32.mrf.mxu0
    %v1449 = vadd.f32 %v1392, %v1448
    %1450 = vmatmul.bf16.gmra.mxu0 %v1413
    %v1451 = vpop.f32.mrf.mxu0
    %v1452 = vadd.f32 %v1392, %v1451
    %v1453 = vpop.f32.mrf.mxu0
    %v1454 = vadd.f32 %v1392, %v1453
    %1455 = vmatmul.bf16.gmra.mxu0 %v1416
    %v1456 = vpop.f32.mrf.mxu0
    %v1457 = vadd.f32 %v1392, %v1456
    %v1458 = vpop.f32.mrf.mxu0
    %v1459 = vadd.f32 %v1392, %v1458
    %1460 = vmatmul.bf16.gmra.mxu0 %v1419
    %v1461 = vpop.f32.mrf.mxu0
    %v1462 = vadd.f32 %v1392, %v1461
    %v1463 = vpop.f32.mrf.mxu0
    %v1464 = vadd.f32 %v1392, %v1463
    %1465 = vmatmul.bf16.gmra.mxu0 %v1422
    %v1466 = vpop.f32.mrf.mxu0
    %v1467 = vadd.f32 %v1392, %v1466
    %v1468 = vpop.f32.mrf.mxu0
    %v1469 = vadd.f32 %v1392, %v1468
    %1470 = vmatmul.bf16.gmra.mxu0 %v1425
    %v1471 = vpop.f32.mrf.mxu0
    %v1472 = vadd.f32 %v1392, %v1471
    %v1473 = vpop.f32.mrf.mxu0
    %v1474 = vadd.f32 %v1392, %v1473
    %1475 = vmatmul.bf16.gmra.mxu0 %v1428
    %v1476 = vpop.f32.mrf.mxu0
    %v1477 = vadd.f32 %v1392, %v1476
    %v1478 = vpop.f32.mrf.mxu0
    %v1479 = vadd.f32 %v1392, %v1478
    %1480 = vmatmul.bf16.gmra.mxu0 %v1431
    %v1481 = vpop.f32.mrf.mxu0
    %v1482 = vadd.f32 %v1392, %v1481
    %v1483 = vpop.f32.mrf.mxu0
    %v1484 = vadd.f32 %v1392, %v1483
    %1485 = vdwg.mxu0
    %v1486 = vsel %vm313, %v1447, 0.0
    %v1487 = vsel %vm313, %v1449, 0.0
    %v1488 = vadd.f32 %v1486, %v1487
    %v1489 = vsel %vm313, %v1452, 0.0
    %v1490 = vadd.f32 %v1488, %v1489
    %v1491 = vsel %vm313, %v1454, 0.0
    %v1492 = vadd.f32 %v1490, %v1491
    %v1493 = vsel %vm313, %v1457, 0.0
    %v1494 = vadd.f32 %v1492, %v1493
    %v1495 = vsel %vm313, %v1459, 0.0
    %v1496 = vadd.f32 %v1494, %v1495
    %v1497 = vsel %vm313, %v1462, 0.0
    %v1498 = vadd.f32 %v1496, %v1497
    %v1499 = vsel %vm313, %v1464, 0.0
    %v1500 = vadd.f32 %v1498, %v1499
    %v1501 = vsel %vm313, %v1467, 0.0
    %v1502 = vadd.f32 %v1500, %v1501
    %v1503 = vsel %vm313, %v1469, 0.0
    %v1504 = vadd.f32 %v1502, %v1503
    %v1505 = vsel %vm313, %v1472, 0.0
    %v1506 = vadd.f32 %v1504, %v1505
    %v1507 = vsel %vm313, %v1474, 0.0
    %v1508 = vadd.f32 %v1506, %v1507
    %v1509 = vsel %vm313, %v1477, 0.0
    %v1510 = vadd.f32 %v1508, %v1509
    %v1511 = vsel %vm313, %v1479, 0.0
    %v1512 = vadd.f32 %v1510, %v1511
    %v1513 = vsel %vm313, %v1482, 0.0
    %v1514 = vadd.f32 %v1512, %v1513
    %v1515 = vsel %vm313, %v1484, 0.0
    %v1516 = vadd.f32 %v1514, %v1515
    %v1517 = vrot.slane %v1516, 4
    %v1518 = vadd.f32 %v1516, %v1517
    %v1519 = vrot.slane %v1518, 2
    %v1520 = vadd.f32 %v1518, %v1519
    %v1521 = vrot.slane %v1520, 1
    %v1522 = vadd.f32 %v1520, %v1521
    %v1523 = vmul.f32 %v1522, 0.0078125
    %v1524 = vsub.f32 %v1447, %v1523
    %v1525 = vsub.f32 %v1449, %v1523
    %v1526 = vsub.f32 %v1452, %v1523
    %v1527 = vsub.f32 %v1454, %v1523
    %v1528 = vsub.f32 %v1457, %v1523
    %v1529 = vsub.f32 %v1459, %v1523
    %v1530 = vsub.f32 %v1462, %v1523
    %v1531 = vsub.f32 %v1464, %v1523
    %v1532 = vsub.f32 %v1467, %v1523
    %v1533 = vsub.f32 %v1469, %v1523
    %v1534 = vsub.f32 %v1472, %v1523
    %v1535 = vsub.f32 %v1474, %v1523
    %v1536 = vsub.f32 %v1477, %v1523
    %v1537 = vsub.f32 %v1479, %v1523
    %v1538 = vsub.f32 %v1482, %v1523
    %v1539 = vsub.f32 %v1484, %v1523
    %v1540 = vmul.f32 %v1524, %v1524
    %v1541 = vmul.f32 %v1525, %v1525
    %v1542 = vmul.f32 %v1526, %v1526
    %v1543 = vmul.f32 %v1527, %v1527
    %v1544 = vmul.f32 %v1528, %v1528
    %v1545 = vmul.f32 %v1529, %v1529
    %v1546 = vmul.f32 %v1530, %v1530
    %v1547 = vmul.f32 %v1531, %v1531
    %v1548 = vmul.f32 %v1532, %v1532
    %v1549 = vmul.f32 %v1533, %v1533
    %v1550 = vmul.f32 %v1534, %v1534
    %v1551 = vmul.f32 %v1535, %v1535
    %v1552 = vmul.f32 %v1536, %v1536
    %v1553 = vmul.f32 %v1537, %v1537
    %v1554 = vmul.f32 %v1538, %v1538
    %v1555 = vmul.f32 %v1539, %v1539
    %v1556 = vsel %vm313, %v1540, 0.0
    %v1557 = vsel %vm313, %v1541, 0.0
    %v1558 = vadd.f32 %v1556, %v1557
    %v1559 = vsel %vm313, %v1542, 0.0
    %v1560 = vadd.f32 %v1558, %v1559
    %v1561 = vsel %vm313, %v1543, 0.0
    %v1562 = vadd.f32 %v1560, %v1561
    %v1563 = vsel %vm313, %v1544, 0.0
    %v1564 = vadd.f32 %v1562, %v1563
    %v1565 = vsel %vm313, %v1545, 0.0
    %v1566 = vadd.f32 %v1564, %v1565
    %v1567 = vsel %vm313, %v1546, 0.0
    %v1568 = vadd.f32 %v1566, %v1567
    %v1569 = vsel %vm313, %v1547, 0.0
    %v1570 = vadd.f32 %v1568, %v1569
    %v1571 = vsel %vm313, %v1548, 0.0
    %v1572 = vadd.f32 %v1570, %v1571
    %v1573 = vsel %vm313, %v1549, 0.0
    %v1574 = vadd.f32 %v1572, %v1573
    %v1575 = vsel %vm313, %v1550, 0.0
    %v1576 = vadd.f32 %v1574, %v1575
    %v1577 = vsel %vm313, %v1551, 0.0
    %v1578 = vadd.f32 %v1576, %v1577
    %v1579 = vsel %vm313, %v1552, 0.0
    %v1580 = vadd.f32 %v1578, %v1579
    %v1581 = vsel %vm313, %v1553, 0.0
    %v1582 = vadd.f32 %v1580, %v1581
    %v1583 = vsel %vm313, %v1554, 0.0
    %v1584 = vadd.f32 %v1582, %v1583
    %v1585 = vsel %vm313, %v1555, 0.0
    %v1586 = vadd.f32 %v1584, %v1585
    %v1587 = vrot.slane %v1586, 4
    %v1588 = vadd.f32 %v1586, %v1587
    %v1589 = vrot.slane %v1588, 2
    %v1590 = vadd.f32 %v1588, %v1589
    %v1591 = vrot.slane %v1590, 1
    %v1592 = vadd.f32 %v1590, %v1591
    %v1593 = vmul.f32 %v1592, 0.0078125
    %v1594 = vadd.f32 %v1593, 1e-05
    %v1595 = vrsqrt.pop %v1594
    %v1596 = vmul.f32 %v1595, %v1594
    %v1597 = vmul.f32 %v1596, %v1595
    %v1598 = vmul.f32 0.5, %v1597
    %v1599 = vsub.f32 1.5, %v1598
    %v1600 = vmul.f32 %v1595, %v1599
    %vm1601 = vweird.f32 %v1594
    %vm1602 = vweird.f32 %v1595
    %vm1603 = vmor %vm1601, %vm1602
    %v1604 = vsel %vm1603, %v1595, %v1600
    %v1605 = vmul.f32 %v1524, %v1604
    %v1606 = vmul.f32 %v1525, %v1604
    %v1607 = vmul.f32 %v1526, %v1604
    %v1608 = vmul.f32 %v1527, %v1604
    %v1609 = vmul.f32 %v1528, %v1604
    %v1610 = vmul.f32 %v1529, %v1604
    %v1611 = vmul.f32 %v1530, %v1604
    %v1612 = vmul.f32 %v1531, %v1604
    %v1613 = vmul.f32 %v1532, %v1604
    %v1614 = vmul.f32 %v1533, %v1604
    %v1615 = vmul.f32 %v1534, %v1604
    %v1616 = vmul.f32 %v1535, %v1604
    %v1617 = vmul.f32 %v1536, %v1604
    %v1618 = vmul.f32 %v1537, %v1604
    %v1619 = vmul.f32 %v1538, %v1604
    %v1620 = vmul.f32 %v1539, %v1604
    %v1621 = vperm.slane %v39, 6
    %v1622 = vmul.f32 %v1605, %v1621
    %v1623 = vmul.f32 %v1606, %v1621
    %v1624 = vmul.f32 %v1607, %v1621
    %v1625 = vmul.f32 %v1608, %v1621
    %v1626 = vmul.f32 %v1609, %v1621
    %v1627 = vmul.f32 %v1610, %v1621
    %v1628 = vmul.f32 %v1611, %v1621
    %v1629 = vmul.f32 %v1612, %v1621
    %v1630 = vmul.f32 %v1613, %v1621
    %v1631 = vmul.f32 %v1614, %v1621
    %v1632 = vmul.f32 %v1615, %v1621
    %v1633 = vmul.f32 %v1616, %v1621
    %v1634 = vmul.f32 %v1617, %v1621
    %v1635 = vmul.f32 %v1618, %v1621
    %v1636 = vmul.f32 %v1619, %v1621
    %v1637 = vmul.f32 %v1620, %v1621
    %v1638 = vperm.slane %v39, 7
    %v1639 = vadd.f32 %v1622, %v1638
    %v1640 = vadd.f32 %v1623, %v1638
    %v1641 = vadd.f32 %v1624, %v1638
    %v1642 = vadd.f32 %v1625, %v1638
    %v1643 = vadd.f32 %v1626, %v1638
    %v1644 = vadd.f32 %v1627, %v1638
    %v1645 = vadd.f32 %v1628, %v1638
    %v1646 = vadd.f32 %v1629, %v1638
    %v1647 = vadd.f32 %v1630, %v1638
    %v1648 = vadd.f32 %v1631, %v1638
    %v1649 = vadd.f32 %v1632, %v1638
    %v1650 = vadd.f32 %v1633, %v1638
    %v1651 = vadd.f32 %v1634, %v1638
    %v1652 = vadd.f32 %v1635, %v1638
    %v1653 = vadd.f32 %v1636, %v1638
    %v1654 = vadd.f32 %v1637, %v1638
    %v1655 = vmax.f32 %v1639, 0.0
    %v1656 = vmax.f32 %v1640, 0.0
    %v1657 = vmax.f32 %v1641, 0.0
    %v1658 = vmax.f32 %v1642, 0.0
    %v1659 = vmax.f32 %v1643, 0.0
    %v1660 = vmax.f32 %v1644, 0.0
    %v1661 = vmax.f32 %v1645, 0.0
    %v1662 = vmax.f32 %v1646, 0.0
    %v1663 = vmax.f32 %v1647, 0.0
    %v1664 = vmax.f32 %v1648, 0.0
    %v1665 = vmax.f32 %v1649, 0.0
    %v1666 = vmax.f32 %v1650, 0.0
    %v1667 = vmax.f32 %v1651, 0.0
    %v1668 = vmax.f32 %v1652, 0.0
    %v1669 = vmax.f32 %v1653, 0.0
    %v1670 = vmax.f32 %v1654, 0.0
    %v1671 = vpack.c.bf16 %v1656, %v1655
    %v1672 = vpack.c.bf16 %v1658, %v1657
    %v1673 = vpack.c.bf16 %v1660, %v1659
    %v1674 = vpack.c.bf16 %v1662, %v1661
    %v1675 = vpack.c.bf16 %v1664, %v1663
    %v1676 = vpack.c.bf16 %v1666, %v1665
    %v1677 = vpack.c.bf16 %v1668, %v1667
    %v1678 = vpack.c.bf16 %v1670, %v1669
    %v1679 = vperm.slane %v40, 0
    %v1681 = vsel %vm313, %v1671, 0
    %v1684 = vsel %vm313, %v1672, 0
    %v1687 = vsel %vm313, %v1673, 0
    %v1690 = vsel %vm313, %v1674, 0
    %v1693 = vsel %vm313, %v1675, 0
    %v1696 = vsel %vm313, %v1676, 0
    %v1699 = vsel %vm313, %v1677, 0
    %v1702 = vsel %vm313, %v1678, 0
    %v1705 = vsel %vm1433, %v38, 0
    %1707 = vmatpush.bf16.msra.mxu0 0
    %1708 = vmatpush.bf16.msra.mxu0 0
    %1709 = vmatpush.bf16.msra.mxu0 0
    %1710 = vmatpush.bf16.msra.mxu0 0
    %1711 = vmatpush.bf16.msra.mxu0 0
    %1712 = vmatpush.bf16.msra.mxu0 0
    %1713 = vmatpush.bf16.msra.mxu0 0
    %1714 = vmatpush.bf16.msra.mxu0 %v1705
    %1715 = vmatmul.bf16.gmra.mxu0 %v1681
    %v1716 = vpop.f32.mrf.mxu0
    %v1717 = vadd.f32 %v1679, %v1716
    %v1718 = vpop.f32.mrf.mxu0
    %v1719 = vadd.f32 %v1679, %v1718
    %1720 = vmatmul.bf16.gmra.mxu0 %v1684
    %v1721 = vpop.f32.mrf.mxu0
    %v1722 = vadd.f32 %v1679, %v1721
    %v1723 = vpop.f32.mrf.mxu0
    %v1724 = vadd.f32 %v1679, %v1723
    %1725 = vmatmul.bf16.gmra.mxu0 %v1687
    %v1726 = vpop.f32.mrf.mxu0
    %v1727 = vadd.f32 %v1679, %v1726
    %v1728 = vpop.f32.mrf.mxu0
    %v1729 = vadd.f32 %v1679, %v1728
    %1730 = vmatmul.bf16.gmra.mxu0 %v1690
    %v1731 = vpop.f32.mrf.mxu0
    %v1732 = vadd.f32 %v1679, %v1731
    %v1733 = vpop.f32.mrf.mxu0
    %v1734 = vadd.f32 %v1679, %v1733
    %1735 = vmatmul.bf16.gmra.mxu0 %v1693
    %v1736 = vpop.f32.mrf.mxu0
    %v1737 = vadd.f32 %v1679, %v1736
    %v1738 = vpop.f32.mrf.mxu0
    %v1739 = vadd.f32 %v1679, %v1738
    %1740 = vmatmul.bf16.gmra.mxu0 %v1696
    %v1741 = vpop.f32.mrf.mxu0
    %v1742 = vadd.f32 %v1679, %v1741
    %v1743 = vpop.f32.mrf.mxu0
    %v1744 = vadd.f32 %v1679, %v1743
    %1745 = vmatmul.bf16.gmra.mxu0 %v1699
    %v1746 = vpop.f32.mrf.mxu0
    %v1747 = vadd.f32 %v1679, %v1746
    %v1748 = vpop.f32.mrf.mxu0
    %v1749 = vadd.f32 %v1679, %v1748
    %1750 = vmatmul.bf16.gmra.mxu0 %v1702
    %v1751 = vpop.f32.mrf.mxu0
    %v1752 = vadd.f32 %v1679, %v1751
    %v1753 = vpop.f32.mrf.mxu0
    %v1754 = vadd.f32 %v1679, %v1753
    %1755 = vdwg.mxu0
    %v1756 = vadd.f32 %v1717, %v16
    %v1757 = vadd.f32 %v1719, %v17
    %v1758 = vadd.f32 %v1722, %v18
    %v1759 = vadd.f32 %v1724, %v19
    %v1760 = vadd.f32 %v1727, %v20
    %v1761 = vadd.f32 %v1729, %v21
    %v1762 = vadd.f32 %v1732, %v22
    %v1763 = vadd.f32 %v1734, %v23
    %v1764 = vadd.f32 %v1737, %v24
    %v1765 = vadd.f32 %v1739, %v25
    %v1766 = vadd.f32 %v1742, %v26
    %v1767 = vadd.f32 %v1744, %v27
    %v1768 = vadd.f32 %v1747, %v28
    %v1769 = vadd.f32 %v1749, %v29
    %v1770 = vadd.f32 %v1752, %v30
    %v1771 = vadd.f32 %v1754, %v31
    %1772 = vst.msk [vmem:[#allocation4] sm:$0xff] %vm41, %v1756
    %1773 = vst.msk [vmem:[#allocation4 + $0x8] sm:$0xff] %vm41, %v1757
    %1774 = vst.msk [vmem:[#allocation4 + $0x10] sm:$0xff] %vm41, %v1758
    %1775 = vst.msk [vmem:[#allocation4 + $0x18] sm:$0xff] %vm41, %v1759
    %1776 = vst.msk [vmem:[#allocation4 + $0x20] sm:$0xff] %vm41, %v1760
    %1777 = vst.msk [vmem:[#allocation4 + $0x28] sm:$0xff] %vm41, %v1761
    %1778 = vst.msk [vmem:[#allocation4 + $0x30] sm:$0xff] %vm41, %v1762
    %1779 = vst.msk [vmem:[#allocation4 + $0x38] sm:$0xff] %vm41, %v1763
    %1780 = vst.msk [vmem:[#allocation4 + $0x40] sm:$0xff] %vm41, %v1764
    %1781 = vst.msk [vmem:[#allocation4 + $0x48] sm:$0xff] %vm41, %v1765
    %1782 = vst.msk [vmem:[#allocation4 + $0x50] sm:$0xff] %vm41, %v1766
    %1783 = vst.msk [vmem:[#allocation4 + $0x58] sm:$0xff] %vm41, %v1767
    %1784 = vst.msk [vmem:[#allocation4 + $0x60] sm:$0xff] %vm41, %v1768
    %1785 = vst.msk [vmem:[#allocation4 + $0x68] sm:$0xff] %vm41, %v1769
    %1786 = vst.msk [vmem:[#allocation4 + $0x70] sm:$0xff] %vm41, %v1770
    %1787 = vst.msk [vmem:[#allocation4 + $0x78] sm:$0xff] %vm41, %v1771
    // Predicated region
    $region14: #{_lambda_.3} parent=1 // pred_check
      _
    $region15: #{_lambda_.3} parent=1 // pred_check_branch
      %1789 = sbr.rel (0) target = $region17
    $region16: #{_lambda_.3} parent=1 // pred_region
      %1791 = vsyncadd [#allocation5], 0
      %s1792 = sshll.u32 [#allocation4], 4
      %s1793 = int_to_ptr.vmem [resolvable:$true] %s1792
      %s1794 = sshll.u32 %s3, 4
      %s1795 = int_to_ptr.hbm [resolvable:$true] %s1794
      %1800 = dma.vmem_to_hbm [thread:$0]  %s1793, 2048, %s1795, [#allocation5], 128, 128, 8
    $region17: #{_lambda_.3} parent=1 // pred_fallthru
      _
    // Predicated region
    $region18: #{_lambda_.3} parent=1 // pred_check
      _
    $region19: #{_lambda_.3} parent=1 // pred_check_branch
      %1802 = sbr.rel (0) target = $region21
    $region20: #{_lambda_.3} parent=1 // pred_region
      %1804 = dma.done [#allocation5], 2048
    $region21: #{_lambda_.3} parent=1 // pred_fallthru
      _
    %1805 = vsyncpa [#allocation5], 1

// kernel: _lambda_.2
$region0: #{_lambda_.2}
  #allocation0 [shape = 'u32[]', space=smem, size = 0x4, offset = 0x4, fixed_abs, tag = 'smem constant byte address 0x4 - core index']
  #allocation1 [shape = 'u32[72,128]{1,0:T(1,128)}', space=vmem, size = 0x9000, scoped, tag = 'internal scratch']
  #allocation2 [shape = 'f32[8,9,9,4]{3,2,1,0:T(8,128)}', space=vmem, size = 0x90000, scoped, tag = 'scratch operand']
  #allocation3 [shape = 'f32[128,36]{1,0:T(8,128)}', space=vmem, size = 0x10000, scoped, tag = 'scratch operand']
  %s0 = inlined_call_operand.vmem [shape: f32[512,4], index: 0, kind: input, shape index: {}]
  %s1 = inlined_call_operand.vmem [shape: bf16[84,8], index: 1, kind: input, shape index: {}]
  %s2 = inlined_call_operand.vmem [shape: f32[10,8], index: 2, kind: input, shape index: {}]
  %s3 = inlined_call_operand.vmem [shape: f32[128,8], index: 3, kind: output, shape index: {}]
  %s4 = sld [smem:[#allocation0]]
  $region22: #{_lambda_.2} parent=0
    _
  %s6 = ssub.s32 1, %s4
  %s7 = scalar_select 0, %s6, %s4
  // Predicated region
  $region2: #{_lambda_.2} parent=0 // pred_check
    _
  $region3: #{_lambda_.2} parent=0 // pred_check_branch
    %9 = sbr.rel (0) target = $region5
  $region4: #{_lambda_.2} parent=0 // pred_region
    _
  $region5: #{_lambda_.2} parent=0 // pred_fallthru
    _
  // Predicated region
  $region6: #{_lambda_.2} parent=0 // pred_check
    _
  $region7: #{_lambda_.2} parent=0 // pred_check_branch
    %11 = sbr.rel (0) target = $region9
  $region8: #{_lambda_.2} parent=0 // pred_region
    _
  $region9: #{_lambda_.2} parent=0 // pred_fallthru
    _
  // Predicated region
  $region10: #{_lambda_.2} parent=0 // pred_check
    _
  $region11: #{_lambda_.2} parent=0 // pred_check_branch
    %13 = sbr.rel (0) target = $region13
  $region12: #{_lambda_.2} parent=0 // pred_region
    _
  $region13: #{_lambda_.2} parent=0 // pred_fallthru
    _
  %v15 = vld [vmem:[%s0] sm:$0xff]
  %v16 = vld [vmem:[%s0 + $0x8] sm:$0xff]
  %v17 = vld [vmem:[%s0 + $0x10] sm:$0xff]
  %v18 = vld [vmem:[%s0 + $0x18] sm:$0xff]
  %v19 = vld [vmem:[%s0 + $0x20] sm:$0xff]
  %v20 = vld [vmem:[%s0 + $0x28] sm:$0xff]
  %v21 = vld [vmem:[%s0 + $0x30] sm:$0xff]
  %v22 = vld [vmem:[%s0 + $0x38] sm:$0xff]
  %v23 = vld [vmem:[%s0 + $0x40] sm:$0xff]
  %v24 = vld [vmem:[%s0 + $0x48] sm:$0xff]
  %v25 = vld [vmem:[%s0 + $0x50] sm:$0xff]
  %v26 = vld [vmem:[%s0 + $0x58] sm:$0xff]
  %v27 = vld [vmem:[%s0 + $0x60] sm:$0xff]
  %v28 = vld [vmem:[%s0 + $0x68] sm:$0xff]
  %v29 = vld [vmem:[%s0 + $0x70] sm:$0xff]
  %v30 = vld [vmem:[%s0 + $0x78] sm:$0xff]
  %v31 = vld [vmem:[%s0 + $0x80] sm:$0xff]
  %v32 = vld [vmem:[%s0 + $0x88] sm:$0xff]
  %v33 = vld [vmem:[%s0 + $0x90] sm:$0xff]
  %v34 = vld [vmem:[%s0 + $0x98] sm:$0xff]
  %v35 = vld [vmem:[%s0 + $0xa0] sm:$0xff]
  %v36 = vld [vmem:[%s0 + $0xa8] sm:$0xff]
  %v37 = vld [vmem:[%s0 + $0xb0] sm:$0xff]
  %v38 = vld [vmem:[%s0 + $0xb8] sm:$0xff]
  %v39 = vld [vmem:[%s0 + $0xc0] sm:$0xff]
  %v40 = vld [vmem:[%s0 + $0xc8] sm:$0xff]
  %v41 = vld [vmem:[%s0 + $0xd0] sm:$0xff]
  %v42 = vld [vmem:[%s0 + $0xd8] sm:$0xff]
  %v43 = vld [vmem:[%s0 + $0xe0] sm:$0xff]
  %v44 = vld [vmem:[%s0 + $0xe8] sm:$0xff]
  %v45 = vld [vmem:[%s0 + $0xf0] sm:$0xff]
  %v46 = vld [vmem:[%s0 + $0xf8] sm:$0xff]
  %v47 = vld [vmem:[%s0 + $0x100] sm:$0xff]
  %v48 = vld [vmem:[%s0 + $0x108] sm:$0xff]
  %v49 = vld [vmem:[%s0 + $0x110] sm:$0xff]
  %v50 = vld [vmem:[%s0 + $0x118] sm:$0xff]
  %v51 = vld [vmem:[%s0 + $0x120] sm:$0xff]
  %v52 = vld [vmem:[%s0 + $0x128] sm:$0xff]
  %v53 = vld [vmem:[%s0 + $0x130] sm:$0xff]
  %v54 = vld [vmem:[%s0 + $0x138] sm:$0xff]
  %v55 = vld [vmem:[%s0 + $0x140] sm:$0xff]
  %v56 = vld [vmem:[%s0 + $0x148] sm:$0xff]
  %v57 = vld [vmem:[%s0 + $0x150] sm:$0xff]
  %v58 = vld [vmem:[%s0 + $0x158] sm:$0xff]
  %v59 = vld [vmem:[%s0 + $0x160] sm:$0xff]
  %v60 = vld [vmem:[%s0 + $0x168] sm:$0xff]
  %v61 = vld [vmem:[%s0 + $0x170] sm:$0xff]
  %v62 = vld [vmem:[%s0 + $0x178] sm:$0xff]
  %v63 = vld [vmem:[%s0 + $0x180] sm:$0xff]
  %v64 = vld [vmem:[%s0 + $0x188] sm:$0xff]
  %v65 = vld [vmem:[%s0 + $0x190] sm:$0xff]
  %v66 = vld [vmem:[%s0 + $0x198] sm:$0xff]
  %v67 = vld [vmem:[%s0 + $0x1a0] sm:$0xff]
  %v68 = vld [vmem:[%s0 + $0x1a8] sm:$0xff]
  %v69 = vld [vmem:[%s0 + $0x1b0] sm:$0xff]
  %v70 = vld [vmem:[%s0 + $0x1b8] sm:$0xff]
  %v71 = vld [vmem:[%s0 + $0x1c0] sm:$0xff]
  %v72 = vld [vmem:[%s0 + $0x1c8] sm:$0xff]
  %v73 = vld [vmem:[%s0 + $0x1d0] sm:$0xff]
  %v74 = vld [vmem:[%s0 + $0x1d8] sm:$0xff]
  %v75 = vld [vmem:[%s0 + $0x1e0] sm:$0xff]
  %v76 = vld [vmem:[%s0 + $0x1e8] sm:$0xff]
  %v77 = vld [vmem:[%s0 + $0x1f0] sm:$0xff]
  %v78 = vld [vmem:[%s0 + $0x1f8] sm:$0xff]
  %v79 = vld [vmem:[%s1] sm:$0xf]
  %v80 = vld [vmem:[%s1 + $0x8] sm:$0xf]
  %v81 = vld [vmem:[%s1 + $0xc] sm:$0xf]
  %v82 = vld [vmem:[%s1 + $0x10] sm:$0xf]
  %v83 = vld [vmem:[%s1 + $0x14] sm:$0xf]
  %v84 = vld [vmem:[%s1 + $0x18] sm:$0xf]
  %v85 = vld [vmem:[%s1 + $0x20] sm:$0xf]
  %v86 = vld [vmem:[%s1 + $0x28] sm:$0x3]
  %v87 = vld [vmem:[%s2] sm:$0xff]
  %v88 = vld [vmem:[%s2 + $0x8] sm:$0x3]
  %vm89 = vcmask 31744
  %v90 = vsel %vm89, %v15, 0.0
  %v91 = vsel %vm89, %v16, 0.0
  %v92 = vadd.f32 %v90, %v91
  %v93 = vsel %vm89, %v17, 0.0
  %v94 = vadd.f32 %v92, %v93
  %v95 = vsel %vm89, %v18, 0.0
  %v96 = vadd.f32 %v94, %v95
  %v97 = vsel %vm89, %v19, 0.0
  %v98 = vadd.f32 %v96, %v97
  %v99 = vsel %vm89, %v20, 0.0
  %v100 = vadd.f32 %v98, %v99
  %v101 = vsel %vm89, %v21, 0.0
  %v102 = vadd.f32 %v100, %v101
  %v103 = vsel %vm89, %v22, 0.0
  %v104 = vadd.f32 %v102, %v103
  %v105 = vsel %vm89, %v23, 0.0
  %v106 = vadd.f32 %v104, %v105
  %v107 = vsel %vm89, %v24, 0.0
  %v108 = vadd.f32 %v106, %v107
  %v109 = vsel %vm89, %v25, 0.0
  %v110 = vadd.f32 %v108, %v109
  %v111 = vsel %vm89, %v26, 0.0
  %v112 = vadd.f32 %v110, %v111
  %v113 = vsel %vm89, %v27, 0.0
  %v114 = vadd.f32 %v112, %v113
  %v115 = vsel %vm89, %v28, 0.0
  %v116 = vadd.f32 %v114, %v115
  %v117 = vsel %vm89, %v29, 0.0
  %v118 = vadd.f32 %v116, %v117
  %v119 = vsel %vm89, %v30, 0.0
  %v120 = vadd.f32 %v118, %v119
  %v121 = vsel %vm89, %v31, 0.0
  %v122 = vadd.f32 %v120, %v121
  %v123 = vsel %vm89, %v32, 0.0
  %v124 = vadd.f32 %v122, %v123
  %v125 = vsel %vm89, %v33, 0.0
  %v126 = vadd.f32 %v124, %v125
  %v127 = vsel %vm89, %v34, 0.0
  %v128 = vadd.f32 %v126, %v127
  %v129 = vsel %vm89, %v35, 0.0
  %v130 = vadd.f32 %v128, %v129
  %v131 = vsel %vm89, %v36, 0.0
  %v132 = vadd.f32 %v130, %v131
  %v133 = vsel %vm89, %v37, 0.0
  %v134 = vadd.f32 %v132, %v133
  %v135 = vsel %vm89, %v38, 0.0
  %v136 = vadd.f32 %v134, %v135
  %v137 = vsel %vm89, %v39, 0.0
  %v138 = vadd.f32 %v136, %v137
  %v139 = vsel %vm89, %v40, 0.0
  %v140 = vadd.f32 %v138, %v139
  %v141 = vsel %vm89, %v41, 0.0
  %v142 = vadd.f32 %v140, %v141
  %v143 = vsel %vm89, %v42, 0.0
  %v144 = vadd.f32 %v142, %v143
  %v145 = vsel %vm89, %v43, 0.0
  %v146 = vadd.f32 %v144, %v145
  %v147 = vsel %vm89, %v44, 0.0
  %v148 = vadd.f32 %v146, %v147
  %v149 = vsel %vm89, %v45, 0.0
  %v150 = vadd.f32 %v148, %v149
  %v151 = vsel %vm89, %v46, 0.0
  %v152 = vadd.f32 %v150, %v151
  %v153 = vsel %vm89, %v47, 0.0
  %v154 = vadd.f32 %v152, %v153
  %v155 = vsel %vm89, %v48, 0.0
  %v156 = vadd.f32 %v154, %v155
  %v157 = vsel %vm89, %v49, 0.0
  %v158 = vadd.f32 %v156, %v157
  %v159 = vsel %vm89, %v50, 0.0
  %v160 = vadd.f32 %v158, %v159
  %v161 = vsel %vm89, %v51, 0.0
  %v162 = vadd.f32 %v160, %v161
  %v163 = vsel %vm89, %v52, 0.0
  %v164 = vadd.f32 %v162, %v163
  %v165 = vsel %vm89, %v53, 0.0
  %v166 = vadd.f32 %v164, %v165
  %v167 = vsel %vm89, %v54, 0.0
  %v168 = vadd.f32 %v166, %v167
  %v169 = vsel %vm89, %v55, 0.0
  %v170 = vadd.f32 %v168, %v169
  %v171 = vsel %vm89, %v56, 0.0
  %v172 = vadd.f32 %v170, %v171
  %v173 = vsel %vm89, %v57, 0.0
  %v174 = vadd.f32 %v172, %v173
  %v175 = vsel %vm89, %v58, 0.0
  %v176 = vadd.f32 %v174, %v175
  %v177 = vsel %vm89, %v59, 0.0
  %v178 = vadd.f32 %v176, %v177
  %v179 = vsel %vm89, %v60, 0.0
  %v180 = vadd.f32 %v178, %v179
  %v181 = vsel %vm89, %v61, 0.0
  %v182 = vadd.f32 %v180, %v181
  %v183 = vsel %vm89, %v62, 0.0
  %v184 = vadd.f32 %v182, %v183
  %v185 = vsel %vm89, %v63, 0.0
  %v186 = vadd.f32 %v184, %v185
  %v187 = vsel %vm89, %v64, 0.0
  %v188 = vadd.f32 %v186, %v187
  %v189 = vsel %vm89, %v65, 0.0
  %v190 = vadd.f32 %v188, %v189
  %v191 = vsel %vm89, %v66, 0.0
  %v192 = vadd.f32 %v190, %v191
  %v193 = vsel %vm89, %v67, 0.0
  %v194 = vadd.f32 %v192, %v193
  %v195 = vsel %vm89, %v68, 0.0
  %v196 = vadd.f32 %v194, %v195
  %v197 = vsel %vm89, %v69, 0.0
  %v198 = vadd.f32 %v196, %v197
  %v199 = vsel %vm89, %v70, 0.0
  %v200 = vadd.f32 %v198, %v199
  %v201 = vsel %vm89, %v71, 0.0
  %v202 = vadd.f32 %v200, %v201
  %v203 = vsel %vm89, %v72, 0.0
  %v204 = vadd.f32 %v202, %v203
  %v205 = vsel %vm89, %v73, 0.0
  %v206 = vadd.f32 %v204, %v205
  %v207 = vsel %vm89, %v74, 0.0
  %v208 = vadd.f32 %v206, %v207
  %v209 = vsel %vm89, %v75, 0.0
  %v210 = vadd.f32 %v208, %v209
  %v211 = vsel %vm89, %v76, 0.0
  %v212 = vadd.f32 %v210, %v211
  %v213 = vsel %vm89, %v77, 0.0
  %v214 = vadd.f32 %v212, %v213
  %v215 = vsel %vm89, %v78, 0.0
  %v216 = vadd.f32 %v214, %v215
  %v217 = vrot.slane %v216, 4
  %v218 = vadd.f32 %v216, %v217
  %v219 = vrot.slane %v218, 2
  %v220 = vadd.f32 %v218, %v219
  %v221 = vrot.slane %v220, 1
  %v222 = vadd.f32 %v220, %v221
  %v223 = vmul.f32 %v222, 0.001953125
  %v224 = vsub.f32 %v15, %v223
  %v225 = vsub.f32 %v16, %v223
  %v226 = vsub.f32 %v17, %v223
  %v227 = vsub.f32 %v18, %v223
  %v228 = vsub.f32 %v19, %v223
  %v229 = vsub.f32 %v20, %v223
  %v230 = vsub.f32 %v21, %v223
  %v231 = vsub.f32 %v22, %v223
  %v232 = vsub.f32 %v23, %v223
  %v233 = vsub.f32 %v24, %v223
  %v234 = vsub.f32 %v25, %v223
  %v235 = vsub.f32 %v26, %v223
  %v236 = vsub.f32 %v27, %v223
  %v237 = vsub.f32 %v28, %v223
  %v238 = vsub.f32 %v29, %v223
  %v239 = vsub.f32 %v30, %v223
  %v240 = vsub.f32 %v31, %v223
  %v241 = vsub.f32 %v32, %v223
  %v242 = vsub.f32 %v33, %v223
  %v243 = vsub.f32 %v34, %v223
  %v244 = vsub.f32 %v35, %v223
  %v245 = vsub.f32 %v36, %v223
  %v246 = vsub.f32 %v37, %v223
  %v247 = vsub.f32 %v38, %v223
  %v248 = vsub.f32 %v39, %v223
  %v249 = vsub.f32 %v40, %v223
  %v250 = vsub.f32 %v41, %v223
  %v251 = vsub.f32 %v42, %v223
  %v252 = vsub.f32 %v43, %v223
  %v253 = vsub.f32 %v44, %v223
  %v254 = vsub.f32 %v45, %v223
  %v255 = vsub.f32 %v46, %v223
  %v256 = vsub.f32 %v47, %v223
  %v257 = vsub.f32 %v48, %v223
  %v258 = vsub.f32 %v49, %v223
  %v259 = vsub.f32 %v50, %v223
  %v260 = vsub.f32 %v51, %v223
  %v261 = vsub.f32 %v52, %v223
  %v262 = vsub.f32 %v53, %v223
  %v263 = vsub.f32 %v54, %v223
  %v264 = vsub.f32 %v55, %v223
  %v265 = vsub.f32 %v56, %v223
  %v266 = vsub.f32 %v57, %v223
  %v267 = vsub.f32 %v58, %v223
  %v268 = vsub.f32 %v59, %v223
  %v269 = vsub.f32 %v60, %v223
  %v270 = vsub.f32 %v61, %v223
  %v271 = vsub.f32 %v62, %v223
  %v272 = vsub.f32 %v63, %v223
  %v273 = vsub.f32 %v64, %v223
  %v274 = vsub.f32 %v65, %v223
  %v275 = vsub.f32 %v66, %v223
  %v276 = vsub.f32 %v67, %v223
  %v277 = vsub.f32 %v68, %v223
  %v278 = vsub.f32 %v69, %v223
  %v279 = vsub.f32 %v70, %v223
  %v280 = vsub.f32 %v71, %v223
  %v281 = vsub.f32 %v72, %v223
  %v282 = vsub.f32 %v73, %v223
  %v283 = vsub.f32 %v74, %v223
  %v284 = vsub.f32 %v75, %v223
  %v285 = vsub.f32 %v76, %v223
  %v286 = vsub.f32 %v77, %v223
  %v287 = vsub.f32 %v78, %v223
  %v288 = vmul.f32 %v224, %v224
  %v289 = vmul.f32 %v225, %v225
  %v290 = vmul.f32 %v226, %v226
  %v291 = vmul.f32 %v227, %v227
  %v292 = vmul.f32 %v228, %v228
  %v293 = vmul.f32 %v229, %v229
  %v294 = vmul.f32 %v230, %v230
  %v295 = vmul.f32 %v231, %v231
  %v296 = vmul.f32 %v232, %v232
  %v297 = vmul.f32 %v233, %v233
  %v298 = vmul.f32 %v234, %v234
  %v299 = vmul.f32 %v235, %v235
  %v300 = vmul.f32 %v236, %v236
  %v301 = vmul.f32 %v237, %v237
  %v302 = vmul.f32 %v238, %v238
  %v303 = vmul.f32 %v239, %v239
  %v304 = vmul.f32 %v240, %v240
  %v305 = vmul.f32 %v241, %v241
  %v306 = vmul.f32 %v242, %v242
  %v307 = vmul.f32 %v243, %v243
  %v308 = vmul.f32 %v244, %v244
  %v309 = vmul.f32 %v245, %v245
  %v310 = vmul.f32 %v246, %v246
  %v311 = vmul.f32 %v247, %v247
  %v312 = vmul.f32 %v248, %v248
  %v313 = vmul.f32 %v249, %v249
  %v314 = vmul.f32 %v250, %v250
  %v315 = vmul.f32 %v251, %v251
  %v316 = vmul.f32 %v252, %v252
  %v317 = vmul.f32 %v253, %v253
  %v318 = vmul.f32 %v254, %v254
  %v319 = vmul.f32 %v255, %v255
  %v320 = vmul.f32 %v256, %v256
  %v321 = vmul.f32 %v257, %v257
  %v322 = vmul.f32 %v258, %v258
  %v323 = vmul.f32 %v259, %v259
  %v324 = vmul.f32 %v260, %v260
  %v325 = vmul.f32 %v261, %v261
  %v326 = vmul.f32 %v262, %v262
  %v327 = vmul.f32 %v263, %v263
  %v328 = vmul.f32 %v264, %v264
  %v329 = vmul.f32 %v265, %v265
  %v330 = vmul.f32 %v266, %v266
  %v331 = vmul.f32 %v267, %v267
  %v332 = vmul.f32 %v268, %v268
  %v333 = vmul.f32 %v269, %v269
  %v334 = vmul.f32 %v270, %v270
  %v335 = vmul.f32 %v271, %v271
  %v336 = vmul.f32 %v272, %v272
  %v337 = vmul.f32 %v273, %v273
  %v338 = vmul.f32 %v274, %v274
  %v339 = vmul.f32 %v275, %v275
  %v340 = vmul.f32 %v276, %v276
  %v341 = vmul.f32 %v277, %v277
  %v342 = vmul.f32 %v278, %v278
  %v343 = vmul.f32 %v279, %v279
  %v344 = vmul.f32 %v280, %v280
  %v345 = vmul.f32 %v281, %v281
  %v346 = vmul.f32 %v282, %v282
  %v347 = vmul.f32 %v283, %v283
  %v348 = vmul.f32 %v284, %v284
  %v349 = vmul.f32 %v285, %v285
  %v350 = vmul.f32 %v286, %v286
  %v351 = vmul.f32 %v287, %v287
  %v352 = vsel %vm89, %v288, 0.0
  %v353 = vsel %vm89, %v289, 0.0
  %v354 = vadd.f32 %v352, %v353
  %v355 = vsel %vm89, %v290, 0.0
  %v356 = vadd.f32 %v354, %v355
  %v357 = vsel %vm89, %v291, 0.0
  %v358 = vadd.f32 %v356, %v357
  %v359 = vsel %vm89, %v292, 0.0
  %v360 = vadd.f32 %v358, %v359
  %v361 = vsel %vm89, %v293, 0.0
  %v362 = vadd.f32 %v360, %v361
  %v363 = vsel %vm89, %v294, 0.0
  %v364 = vadd.f32 %v362, %v363
  %v365 = vsel %vm89, %v295, 0.0
  %v366 = vadd.f32 %v364, %v365
  %v367 = vsel %vm89, %v296, 0.0
  %v368 = vadd.f32 %v366, %v367
  %v369 = vsel %vm89, %v297, 0.0
  %v370 = vadd.f32 %v368, %v369
  %v371 = vsel %vm89, %v298, 0.0
  %v372 = vadd.f32 %v370, %v371
  %v373 = vsel %vm89, %v299, 0.0
  %v374 = vadd.f32 %v372, %v373
  %v375 = vsel %vm89, %v300, 0.0
  %v376 = vadd.f32 %v374, %v375
  %v377 = vsel %vm89, %v301, 0.0
  %v378 = vadd.f32 %v376, %v377
  %v379 = vsel %vm89, %v302, 0.0
  %v380 = vadd.f32 %v378, %v379
  %v381 = vsel %vm89, %v303, 0.0
  %v382 = vadd.f32 %v380, %v381
  %v383 = vsel %vm89, %v304, 0.0
  %v384 = vadd.f32 %v382, %v383
  %v385 = vsel %vm89, %v305, 0.0
  %v386 = vadd.f32 %v384, %v385
  %v387 = vsel %vm89, %v306, 0.0
  %v388 = vadd.f32 %v386, %v387
  %v389 = vsel %vm89, %v307, 0.0
  %v390 = vadd.f32 %v388, %v389
  %v391 = vsel %vm89, %v308, 0.0
  %v392 = vadd.f32 %v390, %v391
  %v393 = vsel %vm89, %v309, 0.0
  %v394 = vadd.f32 %v392, %v393
  %v395 = vsel %vm89, %v310, 0.0
  %v396 = vadd.f32 %v394, %v395
  %v397 = vsel %vm89, %v311, 0.0
  %v398 = vadd.f32 %v396, %v397
  %v399 = vsel %vm89, %v312, 0.0
  %v400 = vadd.f32 %v398, %v399
  %v401 = vsel %vm89, %v313, 0.0
  %v402 = vadd.f32 %v400, %v401
  %v403 = vsel %vm89, %v314, 0.0
  %v404 = vadd.f32 %v402, %v403
  %v405 = vsel %vm89, %v315, 0.0
  %v406 = vadd.f32 %v404, %v405
  %v407 = vsel %vm89, %v316, 0.0
  %v408 = vadd.f32 %v406, %v407
  %v409 = vsel %vm89, %v317, 0.0
  %v410 = vadd.f32 %v408, %v409
  %v411 = vsel %vm89, %v318, 0.0
  %v412 = vadd.f32 %v410, %v411
  %v413 = vsel %vm89, %v319, 0.0
  %v414 = vadd.f32 %v412, %v413
  %v415 = vsel %vm89, %v320, 0.0
  %v416 = vadd.f32 %v414, %v415
  %v417 = vsel %vm89, %v321, 0.0
  %v418 = vadd.f32 %v416, %v417
  %v419 = vsel %vm89, %v322, 0.0
  %v420 = vadd.f32 %v418, %v419
  %v421 = vsel %vm89, %v323, 0.0
  %v422 = vadd.f32 %v420, %v421
  %v423 = vsel %vm89, %v324, 0.0
  %v424 = vadd.f32 %v422, %v423
  %v425 = vsel %vm89, %v325, 0.0
  %v426 = vadd.f32 %v424, %v425
  %v427 = vsel %vm89, %v326, 0.0
  %v428 = vadd.f32 %v426, %v427
  %v429 = vsel %vm89, %v327, 0.0
  %v430 = vadd.f32 %v428, %v429
  %v431 = vsel %vm89, %v328, 0.0
  %v432 = vadd.f32 %v430, %v431
  %v433 = vsel %vm89, %v329, 0.0
  %v434 = vadd.f32 %v432, %v433
  %v435 = vsel %vm89, %v330, 0.0
  %v436 = vadd.f32 %v434, %v435
  %v437 = vsel %vm89, %v331, 0.0
  %v438 = vadd.f32 %v436, %v437
  %v439 = vsel %vm89, %v332, 0.0
  %v440 = vadd.f32 %v438, %v439
  %v441 = vsel %vm89, %v333, 0.0
  %v442 = vadd.f32 %v440, %v441
  %v443 = vsel %vm89, %v334, 0.0
  %v444 = vadd.f32 %v442, %v443
  %v445 = vsel %vm89, %v335, 0.0
  %v446 = vadd.f32 %v444, %v445
  %v447 = vsel %vm89, %v336, 0.0
  %v448 = vadd.f32 %v446, %v447
  %v449 = vsel %vm89, %v337, 0.0
  %v450 = vadd.f32 %v448, %v449
  %v451 = vsel %vm89, %v338, 0.0
  %v452 = vadd.f32 %v450, %v451
  %v453 = vsel %vm89, %v339, 0.0
  %v454 = vadd.f32 %v452, %v453
  %v455 = vsel %vm89, %v340, 0.0
  %v456 = vadd.f32 %v454, %v455
  %v457 = vsel %vm89, %v341, 0.0
  %v458 = vadd.f32 %v456, %v457
  %v459 = vsel %vm89, %v342, 0.0
  %v460 = vadd.f32 %v458, %v459
  %v461 = vsel %vm89, %v343, 0.0
  %v462 = vadd.f32 %v460, %v461
  %v463 = vsel %vm89, %v344, 0.0
  %v464 = vadd.f32 %v462, %v463
  %v465 = vsel %vm89, %v345, 0.0
  %v466 = vadd.f32 %v464, %v465
  %v467 = vsel %vm89, %v346, 0.0
  %v468 = vadd.f32 %v466, %v467
  %v469 = vsel %vm89, %v347, 0.0
  %v470 = vadd.f32 %v468, %v469
  %v471 = vsel %vm89, %v348, 0.0
  %v472 = vadd.f32 %v470, %v471
  %v473 = vsel %vm89, %v349, 0.0
  %v474 = vadd.f32 %v472, %v473
  %v475 = vsel %vm89, %v350, 0.0
  %v476 = vadd.f32 %v474, %v475
  %v477 = vsel %vm89, %v351, 0.0
  %v478 = vadd.f32 %v476, %v477
  %v479 = vrot.slane %v478, 4
  %v480 = vadd.f32 %v478, %v479
  %v481 = vrot.slane %v480, 2
  %v482 = vadd.f32 %v480, %v481
  %v483 = vrot.slane %v482, 1
  %v484 = vadd.f32 %v482, %v483
  %v485 = vmul.f32 %v484, 0.001953125
  %v486 = vadd.f32 %v485, 1e-05
  %v487 = vrsqrt.pop %v486
  %v488 = vmul.f32 %v487, %v486
  %v489 = vmul.f32 %v488, %v487
  %v490 = vmul.f32 0.5, %v489
  %v491 = vsub.f32 1.5, %v490
  %v492 = vmul.f32 %v487, %v491
  %vm493 = vweird.f32 %v486
  %vm494 = vweird.f32 %v487
  %vm495 = vmor %vm493, %vm494
  %v496 = vsel %vm495, %v487, %v492
  %v497 = vmul.f32 %v224, %v496
  %v498 = vmul.f32 %v225, %v496
  %v499 = vmul.f32 %v226, %v496
  %v500 = vmul.f32 %v227, %v496
  %v501 = vmul.f32 %v228, %v496
  %v502 = vmul.f32 %v229, %v496
  %v503 = vmul.f32 %v230, %v496
  %v504 = vmul.f32 %v231, %v496
  %v505 = vmul.f32 %v232, %v496
  %v506 = vmul.f32 %v233, %v496
  %v507 = vmul.f32 %v234, %v496
  %v508 = vmul.f32 %v235, %v496
  %v509 = vmul.f32 %v236, %v496
  %v510 = vmul.f32 %v237, %v496
  %v511 = vmul.f32 %v238, %v496
  %v512 = vmul.f32 %v239, %v496
  %v513 = vmul.f32 %v240, %v496
  %v514 = vmul.f32 %v241, %v496
  %v515 = vmul.f32 %v242, %v496
  %v516 = vmul.f32 %v243, %v496
  %v517 = vmul.f32 %v244, %v496
  %v518 = vmul.f32 %v245, %v496
  %v519 = vmul.f32 %v246, %v496
  %v520 = vmul.f32 %v247, %v496
  %v521 = vmul.f32 %v248, %v496
  %v522 = vmul.f32 %v249, %v496
  %v523 = vmul.f32 %v250, %v496
  %v524 = vmul.f32 %v251, %v496
  %v525 = vmul.f32 %v252, %v496
  %v526 = vmul.f32 %v253, %v496
  %v527 = vmul.f32 %v254, %v496
  %v528 = vmul.f32 %v255, %v496
  %v529 = vmul.f32 %v256, %v496
  %v530 = vmul.f32 %v257, %v496
  %v531 = vmul.f32 %v258, %v496
  %v532 = vmul.f32 %v259, %v496
  %v533 = vmul.f32 %v260, %v496
  %v534 = vmul.f32 %v261, %v496
  %v535 = vmul.f32 %v262, %v496
  %v536 = vmul.f32 %v263, %v496
  %v537 = vmul.f32 %v264, %v496
  %v538 = vmul.f32 %v265, %v496
  %v539 = vmul.f32 %v266, %v496
  %v540 = vmul.f32 %v267, %v496
  %v541 = vmul.f32 %v268, %v496
  %v542 = vmul.f32 %v269, %v496
  %v543 = vmul.f32 %v270, %v496
  %v544 = vmul.f32 %v271, %v496
  %v545 = vmul.f32 %v272, %v496
  %v546 = vmul.f32 %v273, %v496
  %v547 = vmul.f32 %v274, %v496
  %v548 = vmul.f32 %v275, %v496
  %v549 = vmul.f32 %v276, %v496
  %v550 = vmul.f32 %v277, %v496
  %v551 = vmul.f32 %v278, %v496
  %v552 = vmul.f32 %v279, %v496
  %v553 = vmul.f32 %v280, %v496
  %v554 = vmul.f32 %v281, %v496
  %v555 = vmul.f32 %v282, %v496
  %v556 = vmul.f32 %v283, %v496
  %v557 = vmul.f32 %v284, %v496
  %v558 = vmul.f32 %v285, %v496
  %v559 = vmul.f32 %v286, %v496
  %v560 = vmul.f32 %v287, %v496
  %v561 = vperm.slane %v87, 0
  %v562 = vmul.f32 %v497, %v561
  %v563 = vmul.f32 %v498, %v561
  %v564 = vmul.f32 %v499, %v561
  %v565 = vmul.f32 %v500, %v561
  %v566 = vmul.f32 %v501, %v561
  %v567 = vmul.f32 %v502, %v561
  %v568 = vmul.f32 %v503, %v561
  %v569 = vmul.f32 %v504, %v561
  %v570 = vmul.f32 %v505, %v561
  %v571 = vmul.f32 %v506, %v561
  %v572 = vmul.f32 %v507, %v561
  %v573 = vmul.f32 %v508, %v561
  %v574 = vmul.f32 %v509, %v561
  %v575 = vmul.f32 %v510, %v561
  %v576 = vmul.f32 %v511, %v561
  %v577 = vmul.f32 %v512, %v561
  %v578 = vmul.f32 %v513, %v561
  %v579 = vmul.f32 %v514, %v561
  %v580 = vmul.f32 %v515, %v561
  %v581 = vmul.f32 %v516, %v561
  %v582 = vmul.f32 %v517, %v561
  %v583 = vmul.f32 %v518, %v561
  %v584 = vmul.f32 %v519, %v561
  %v585 = vmul.f32 %v520, %v561
  %v586 = vmul.f32 %v521, %v561
  %v587 = vmul.f32 %v522, %v561
  %v588 = vmul.f32 %v523, %v561
  %v589 = vmul.f32 %v524, %v561
  %v590 = vmul.f32 %v525, %v561
  %v591 = vmul.f32 %v526, %v561
  %v592 = vmul.f32 %v527, %v561
  %v593 = vmul.f32 %v528, %v561
  %v594 = vmul.f32 %v529, %v561
  %v595 = vmul.f32 %v530, %v561
  %v596 = vmul.f32 %v531, %v561
  %v597 = vmul.f32 %v532, %v561
  %v598 = vmul.f32 %v533, %v561
  %v599 = vmul.f32 %v534, %v561
  %v600 = vmul.f32 %v535, %v561
  %v601 = vmul.f32 %v536, %v561
  %v602 = vmul.f32 %v537, %v561
  %v603 = vmul.f32 %v538, %v561
  %v604 = vmul.f32 %v539, %v561
  %v605 = vmul.f32 %v540, %v561
  %v606 = vmul.f32 %v541, %v561
  %v607 = vmul.f32 %v542, %v561
  %v608 = vmul.f32 %v543, %v561
  %v609 = vmul.f32 %v544, %v561
  %v610 = vmul.f32 %v545, %v561
  %v611 = vmul.f32 %v546, %v561
  %v612 = vmul.f32 %v547, %v561
  %v613 = vmul.f32 %v548, %v561
  %v614 = vmul.f32 %v549, %v561
  %v615 = vmul.f32 %v550, %v561
  %v616 = vmul.f32 %v551, %v561
  %v617 = vmul.f32 %v552, %v561
  %v618 = vmul.f32 %v553, %v561
  %v619 = vmul.f32 %v554, %v561
  %v620 = vmul.f32 %v555, %v561
  %v621 = vmul.f32 %v556, %v561
  %v622 = vmul.f32 %v557, %v561
  %v623 = vmul.f32 %v558, %v561
  %v624 = vmul.f32 %v559, %v561
  %v625 = vmul.f32 %v560, %v561
  %v626 = vperm.slane %v87, 1
  %v627 = vadd.f32 %v562, %v626
  %v628 = vadd.f32 %v563, %v626
  %v629 = vadd.f32 %v564, %v626
  %v630 = vadd.f32 %v565, %v626
  %v631 = vadd.f32 %v566, %v626
  %v632 = vadd.f32 %v567, %v626
  %v633 = vadd.f32 %v568, %v626
  %v634 = vadd.f32 %v569, %v626
  %v635 = vadd.f32 %v570, %v626
  %v636 = vadd.f32 %v571, %v626
  %v637 = vadd.f32 %v572, %v626
  %v638 = vadd.f32 %v573, %v626
  %v639 = vadd.f32 %v574, %v626
  %v640 = vadd.f32 %v575, %v626
  %v641 = vadd.f32 %v576, %v626
  %v642 = vadd.f32 %v577, %v626
  %v643 = vadd.f32 %v578, %v626
  %v644 = vadd.f32 %v579, %v626
  %v645 = vadd.f32 %v580, %v626
  %v646 = vadd.f32 %v581, %v626
  %v647 = vadd.f32 %v582, %v626
  %v648 = vadd.f32 %v583, %v626
  %v649 = vadd.f32 %v584, %v626
  %v650 = vadd.f32 %v585, %v626
  %v651 = vadd.f32 %v586, %v626
  %v652 = vadd.f32 %v587, %v626
  %v653 = vadd.f32 %v588, %v626
  %v654 = vadd.f32 %v589, %v626
  %v655 = vadd.f32 %v590, %v626
  %v656 = vadd.f32 %v591, %v626
  %v657 = vadd.f32 %v592, %v626
  %v658 = vadd.f32 %v593, %v626
  %v659 = vadd.f32 %v594, %v626
  %v660 = vadd.f32 %v595, %v626
  %v661 = vadd.f32 %v596, %v626
  %v662 = vadd.f32 %v597, %v626
  %v663 = vadd.f32 %v598, %v626
  %v664 = vadd.f32 %v599, %v626
  %v665 = vadd.f32 %v600, %v626
  %v666 = vadd.f32 %v601, %v626
  %v667 = vadd.f32 %v602, %v626
  %v668 = vadd.f32 %v603, %v626
  %v669 = vadd.f32 %v604, %v626
  %v670 = vadd.f32 %v605, %v626
  %v671 = vadd.f32 %v606, %v626
  %v672 = vadd.f32 %v607, %v626
  %v673 = vadd.f32 %v608, %v626
  %v674 = vadd.f32 %v609, %v626
  %v675 = vadd.f32 %v610, %v626
  %v676 = vadd.f32 %v611, %v626
  %v677 = vadd.f32 %v612, %v626
  %v678 = vadd.f32 %v613, %v626
  %v679 = vadd.f32 %v614, %v626
  %v680 = vadd.f32 %v615, %v626
  %v681 = vadd.f32 %v616, %v626
  %v682 = vadd.f32 %v617, %v626
  %v683 = vadd.f32 %v618, %v626
  %v684 = vadd.f32 %v619, %v626
  %v685 = vadd.f32 %v620, %v626
  %v686 = vadd.f32 %v621, %v626
  %v687 = vadd.f32 %v622, %v626
  %v688 = vadd.f32 %v623, %v626
  %v689 = vadd.f32 %v624, %v626
  %v690 = vadd.f32 %v625, %v626
  %v691 = vmax.f32 %v627, 0.0
  %v692 = vmax.f32 %v628, 0.0
  %v693 = vmax.f32 %v629, 0.0
  %v694 = vmax.f32 %v630, 0.0
  %v695 = vmax.f32 %v631, 0.0
  %v696 = vmax.f32 %v632, 0.0
  %v697 = vmax.f32 %v633, 0.0
  %v698 = vmax.f32 %v634, 0.0
  %v699 = vmax.f32 %v635, 0.0
  %v700 = vmax.f32 %v636, 0.0
  %v701 = vmax.f32 %v637, 0.0
  %v702 = vmax.f32 %v638, 0.0
  %v703 = vmax.f32 %v639, 0.0
  %v704 = vmax.f32 %v640, 0.0
  %v705 = vmax.f32 %v641, 0.0
  %v706 = vmax.f32 %v642, 0.0
  %v707 = vmax.f32 %v643, 0.0
  %v708 = vmax.f32 %v644, 0.0
  %v709 = vmax.f32 %v645, 0.0
  %v710 = vmax.f32 %v646, 0.0
  %v711 = vmax.f32 %v647, 0.0
  %v712 = vmax.f32 %v648, 0.0
  %v713 = vmax.f32 %v649, 0.0
  %v714 = vmax.f32 %v650, 0.0
  %v715 = vmax.f32 %v651, 0.0
  %v716 = vmax.f32 %v652, 0.0
  %v717 = vmax.f32 %v653, 0.0
  %v718 = vmax.f32 %v654, 0.0
  %v719 = vmax.f32 %v655, 0.0
  %v720 = vmax.f32 %v656, 0.0
  %v721 = vmax.f32 %v657, 0.0
  %v722 = vmax.f32 %v658, 0.0
  %v723 = vmax.f32 %v659, 0.0
  %v724 = vmax.f32 %v660, 0.0
  %v725 = vmax.f32 %v661, 0.0
  %v726 = vmax.f32 %v662, 0.0
  %v727 = vmax.f32 %v663, 0.0
  %v728 = vmax.f32 %v664, 0.0
  %v729 = vmax.f32 %v665, 0.0
  %v730 = vmax.f32 %v666, 0.0
  %v731 = vmax.f32 %v667, 0.0
  %v732 = vmax.f32 %v668, 0.0
  %v733 = vmax.f32 %v669, 0.0
  %v734 = vmax.f32 %v670, 0.0
  %v735 = vmax.f32 %v671, 0.0
  %v736 = vmax.f32 %v672, 0.0
  %v737 = vmax.f32 %v673, 0.0
  %v738 = vmax.f32 %v674, 0.0
  %v739 = vmax.f32 %v675, 0.0
  %v740 = vmax.f32 %v676, 0.0
  %v741 = vmax.f32 %v677, 0.0
  %v742 = vmax.f32 %v678, 0.0
  %v743 = vmax.f32 %v679, 0.0
  %v744 = vmax.f32 %v680, 0.0
  %v745 = vmax.f32 %v681, 0.0
  %v746 = vmax.f32 %v682, 0.0
  %v747 = vmax.f32 %v683, 0.0
  %v748 = vmax.f32 %v684, 0.0
  %v749 = vmax.f32 %v685, 0.0
  %v750 = vmax.f32 %v686, 0.0
  %v751 = vmax.f32 %v687, 0.0
  %v752 = vmax.f32 %v688, 0.0
  %v753 = vmax.f32 %v689, 0.0
  %v754 = vmax.f32 %v690, 0.0
  %v755 = vpack.c.bf16 %v692, %v691
  %v756 = vpack.c.bf16 %v694, %v693
  %v757 = vpack.c.bf16 %v696, %v695
  %v758 = vpack.c.bf16 %v698, %v697
  %v759 = vpack.c.bf16 %v700, %v699
  %v760 = vpack.c.bf16 %v702, %v701
  %v761 = vpack.c.bf16 %v704, %v703
  %v762 = vpack.c.bf16 %v706, %v705
  %v763 = vpack.c.bf16 %v708, %v707
  %v764 = vpack.c.bf16 %v710, %v709
  %v765 = vpack.c.bf16 %v712, %v711
  %v766 = vpack.c.bf16 %v714, %v713
  %v767 = vpack.c.bf16 %v716, %v715
  %v768 = vpack.c.bf16 %v718, %v717
  %v769 = vpack.c.bf16 %v720, %v719
  %v770 = vpack.c.bf16 %v722, %v721
  %v771 = vpack.c.bf16 %v724, %v723
  %v772 = vpack.c.bf16 %v726, %v725
  %v773 = vpack.c.bf16 %v728, %v727
  %v774 = vpack.c.bf16 %v730, %v729
  %v775 = vpack.c.bf16 %v732, %v731
  %v776 = vpack.c.bf16 %v734, %v733
  %v777 = vpack.c.bf16 %v736, %v735
  %v778 = vpack.c.bf16 %v738, %v737
  %v779 = vpack.c.bf16 %v740, %v739
  %v780 = vpack.c.bf16 %v742, %v741
  %v781 = vpack.c.bf16 %v744, %v743
  %v782 = vpack.c.bf16 %v746, %v745
  %v783 = vpack.c.bf16 %v748, %v747
  %v784 = vpack.c.bf16 %v750, %v749
  %v785 = vpack.c.bf16 %v752, %v751
  %v786 = vpack.c.bf16 %v754, %v753
  %v787 = vperm.slane %v87, 2
  %v789 = vsel %vm89, %v755, 0
  %v792 = vsel %vm89, %v756, 0
  %v795 = vsel %vm89, %v757, 0
  %v798 = vsel %vm89, %v758, 0
  %v801 = vsel %vm89, %v759, 0
  %v804 = vsel %vm89, %v760, 0
  %v807 = vsel %vm89, %v761, 0
  %v810 = vsel %vm89, %v762, 0
  %v813 = vsel %vm89, %v763, 0
  %v816 = vsel %vm89, %v764, 0
  %v819 = vsel %vm89, %v765, 0
  %v822 = vsel %vm89, %v766, 0
  %v825 = vsel %vm89, %v767, 0
  %v828 = vsel %vm89, %v768, 0
  %v831 = vsel %vm89, %v769, 0
  %v834 = vsel %vm89, %v770, 0
  %v837 = vsel %vm89, %v771, 0
  %v840 = vsel %vm89, %v772, 0
  %v843 = vsel %vm89, %v773, 0
  %v846 = vsel %vm89, %v774, 0
  %v849 = vsel %vm89, %v775, 0
  %v852 = vsel %vm89, %v776, 0
  %v855 = vsel %vm89, %v777, 0
  %v858 = vsel %vm89, %v778, 0
  %v861 = vsel %vm89, %v779, 0
  %v864 = vsel %vm89, %v780, 0
  %v867 = vsel %vm89, %v781, 0
  %v870 = vsel %vm89, %v782, 0
  %v873 = vsel %vm89, %v783, 0
  %v876 = vsel %vm89, %v784, 0
  %v879 = vsel %vm89, %v785, 0
  %v882 = vsel %vm89, %v786, 0
  %vm884 = vcmask 1041408
  %v886 = vsel %vm884, %v79, 0
  %888 = vmatpush.bf16.msra.mxu0 0
  %889 = vmatpush.bf16.msra.mxu0 0
  %890 = vmatpush.bf16.msra.mxu0 0
  %891 = vmatpush.bf16.msra.mxu0 0
  %892 = vmatpush.bf16.msra.mxu0 0
  %893 = vmatpush.bf16.msra.mxu0 0
  %894 = vmatpush.bf16.msra.mxu0 0
  %895 = vmatpush.bf16.msra.mxu0 %v886
  %896 = vmatmul.bf16.gmra.mxu0 %v789
  %v897 = vpop.f32.mrf.mxu0
  %v898 = vadd.f32 %v787, %v897
  %v899 = vpop.f32.mrf.mxu0
  %v900 = vadd.f32 %v787, %v899
  %901 = vmatmul.bf16.gmra.mxu0 %v792
  %v902 = vpop.f32.mrf.mxu0
  %v903 = vadd.f32 %v787, %v902
  %v904 = vpop.f32.mrf.mxu0
  %v905 = vadd.f32 %v787, %v904
  %906 = vmatmul.bf16.gmra.mxu0 %v795
  %v907 = vpop.f32.mrf.mxu0
  %v908 = vadd.f32 %v787, %v907
  %v909 = vpop.f32.mrf.mxu0
  %v910 = vadd.f32 %v787, %v909
  %911 = vmatmul.bf16.gmra.mxu0 %v798
  %v912 = vpop.f32.mrf.mxu0
  %v913 = vadd.f32 %v787, %v912
  %v914 = vpop.f32.mrf.mxu0
  %v915 = vadd.f32 %v787, %v914
  %916 = vmatmul.bf16.gmra.mxu0 %v801
  %v917 = vpop.f32.mrf.mxu0
  %v918 = vadd.f32 %v787, %v917
  %v919 = vpop.f32.mrf.mxu0
  %v920 = vadd.f32 %v787, %v919
  %921 = vmatmul.bf16.gmra.mxu0 %v804
  %v922 = vpop.f32.mrf.mxu0
  %v923 = vadd.f32 %v787, %v922
  %v924 = vpop.f32.mrf.mxu0
  %v925 = vadd.f32 %v787, %v924
  %926 = vmatmul.bf16.gmra.mxu0 %v807
  %v927 = vpop.f32.mrf.mxu0
  %v928 = vadd.f32 %v787, %v927
  %v929 = vpop.f32.mrf.mxu0
  %v930 = vadd.f32 %v787, %v929
  %931 = vmatmul.bf16.gmra.mxu0 %v810
  %v932 = vpop.f32.mrf.mxu0
  %v933 = vadd.f32 %v787, %v932
  %v934 = vpop.f32.mrf.mxu0
  %v935 = vadd.f32 %v787, %v934
  %936 = vmatmul.bf16.gmra.mxu0 %v813
  %v937 = vpop.f32.mrf.mxu0
  %v938 = vadd.f32 %v787, %v937
  %v939 = vpop.f32.mrf.mxu0
  %v940 = vadd.f32 %v787, %v939
  %941 = vmatmul.bf16.gmra.mxu0 %v816
  %v942 = vpop.f32.mrf.mxu0
  %v943 = vadd.f32 %v787, %v942
  %v944 = vpop.f32.mrf.mxu0
  %v945 = vadd.f32 %v787, %v944
  %946 = vmatmul.bf16.gmra.mxu0 %v819
  %v947 = vpop.f32.mrf.mxu0
  %v948 = vadd.f32 %v787, %v947
  %v949 = vpop.f32.mrf.mxu0
  %v950 = vadd.f32 %v787, %v949
  %951 = vmatmul.bf16.gmra.mxu0 %v822
  %v952 = vpop.f32.mrf.mxu0
  %v953 = vadd.f32 %v787, %v952
  %v954 = vpop.f32.mrf.mxu0
  %v955 = vadd.f32 %v787, %v954
  %956 = vmatmul.bf16.gmra.mxu0 %v825
  %v957 = vpop.f32.mrf.mxu0
  %v958 = vadd.f32 %v787, %v957
  %v959 = vpop.f32.mrf.mxu0
  %v960 = vadd.f32 %v787, %v959
  %961 = vmatmul.bf16.gmra.mxu0 %v828
  %v962 = vpop.f32.mrf.mxu0
  %v963 = vadd.f32 %v787, %v962
  %v964 = vpop.f32.mrf.mxu0
  %v965 = vadd.f32 %v787, %v964
  %966 = vmatmul.bf16.gmra.mxu0 %v831
  %v967 = vpop.f32.mrf.mxu0
  %v968 = vadd.f32 %v787, %v967
  %v969 = vpop.f32.mrf.mxu0
  %v970 = vadd.f32 %v787, %v969
  %971 = vmatmul.bf16.gmra.mxu0 %v834
  %v972 = vpop.f32.mrf.mxu0
  %v973 = vadd.f32 %v787, %v972
  %v974 = vpop.f32.mrf.mxu0
  %v975 = vadd.f32 %v787, %v974
  %976 = vmatmul.bf16.gmra.mxu0 %v837
  %v977 = vpop.f32.mrf.mxu0
  %v978 = vadd.f32 %v787, %v977
  %v979 = vpop.f32.mrf.mxu0
  %v980 = vadd.f32 %v787, %v979
  %981 = vmatmul.bf16.gmra.mxu0 %v840
  %v982 = vpop.f32.mrf.mxu0
  %v983 = vadd.f32 %v787, %v982
  %v984 = vpop.f32.mrf.mxu0
  %v985 = vadd.f32 %v787, %v984
  %986 = vmatmul.bf16.gmra.mxu0 %v843
  %v987 = vpop.f32.mrf.mxu0
  %v988 = vadd.f32 %v787, %v987
  %v989 = vpop.f32.mrf.mxu0
  %v990 = vadd.f32 %v787, %v989
  %991 = vmatmul.bf16.gmra.mxu0 %v846
  %v992 = vpop.f32.mrf.mxu0
  %v993 = vadd.f32 %v787, %v992
  %v994 = vpop.f32.mrf.mxu0
  %v995 = vadd.f32 %v787, %v994
  %996 = vmatmul.bf16.gmra.mxu0 %v849
  %v997 = vpop.f32.mrf.mxu0
  %v998 = vadd.f32 %v787, %v997
  %v999 = vpop.f32.mrf.mxu0
  %v1000 = vadd.f32 %v787, %v999
  %1001 = vmatmul.bf16.gmra.mxu0 %v852
  %v1002 = vpop.f32.mrf.mxu0
  %v1003 = vadd.f32 %v787, %v1002
  %v1004 = vpop.f32.mrf.mxu0
  %v1005 = vadd.f32 %v787, %v1004
  %1006 = vmatmul.bf16.gmra.mxu0 %v855
  %v1007 = vpop.f32.mrf.mxu0
  %v1008 = vadd.f32 %v787, %v1007
  %v1009 = vpop.f32.mrf.mxu0
  %v1010 = vadd.f32 %v787, %v1009
  %1011 = vmatmul.bf16.gmra.mxu0 %v858
  %v1012 = vpop.f32.mrf.mxu0
  %v1013 = vadd.f32 %v787, %v1012
  %v1014 = vpop.f32.mrf.mxu0
  %v1015 = vadd.f32 %v787, %v1014
  %1016 = vmatmul.bf16.gmra.mxu0 %v861
  %v1017 = vpop.f32.mrf.mxu0
  %v1018 = vadd.f32 %v787, %v1017
  %v1019 = vpop.f32.mrf.mxu0
  %v1020 = vadd.f32 %v787, %v1019
  %1021 = vmatmul.bf16.gmra.mxu0 %v864
  %v1022 = vpop.f32.mrf.mxu0
  %v1023 = vadd.f32 %v787, %v1022
  %v1024 = vpop.f32.mrf.mxu0
  %v1025 = vadd.f32 %v787, %v1024
  %1026 = vmatmul.bf16.gmra.mxu0 %v867
  %v1027 = vpop.f32.mrf.mxu0
  %v1028 = vadd.f32 %v787, %v1027
  %v1029 = vpop.f32.mrf.mxu0
  %v1030 = vadd.f32 %v787, %v1029
  %1031 = vmatmul.bf16.gmra.mxu0 %v870
  %v1032 = vpop.f32.mrf.mxu0
  %v1033 = vadd.f32 %v787, %v1032
  %v1034 = vpop.f32.mrf.mxu0
  %v1035 = vadd.f32 %v787, %v1034
  %1036 = vmatmul.bf16.gmra.mxu0 %v873
  %v1037 = vpop.f32.mrf.mxu0
  %v1038 = vadd.f32 %v787, %v1037
  %v1039 = vpop.f32.mrf.mxu0
  %v1040 = vadd.f32 %v787, %v1039
  %1041 = vmatmul.bf16.gmra.mxu0 %v876
  %v1042 = vpop.f32.mrf.mxu0
  %v1043 = vadd.f32 %v787, %v1042
  %v1044 = vpop.f32.mrf.mxu0
  %v1045 = vadd.f32 %v787, %v1044
  %1046 = vmatmul.bf16.gmra.mxu0 %v879
  %v1047 = vpop.f32.mrf.mxu0
  %v1048 = vadd.f32 %v787, %v1047
  %v1049 = vpop.f32.mrf.mxu0
  %v1050 = vadd.f32 %v787, %v1049
  %1051 = vmatmul.bf16.gmra.mxu0 %v882
  %v1052 = vpop.f32.mrf.mxu0
  %v1053 = vadd.f32 %v787, %v1052
  %v1054 = vpop.f32.mrf.mxu0
  %v1055 = vadd.f32 %v787, %v1054
  %1056 = vdwg.mxu0
  %v1057 = vsel %vm89, %v898, 0.0
  %v1058 = vsel %vm89, %v900, 0.0
  %v1059 = vadd.f32 %v1057, %v1058
  %v1060 = vsel %vm89, %v903, 0.0
  %v1061 = vadd.f32 %v1059, %v1060
  %v1062 = vsel %vm89, %v905, 0.0
  %v1063 = vadd.f32 %v1061, %v1062
  %v1064 = vsel %vm89, %v908, 0.0
  %v1065 = vadd.f32 %v1063, %v1064
  %v1066 = vsel %vm89, %v910, 0.0
  %v1067 = vadd.f32 %v1065, %v1066
  %v1068 = vsel %vm89, %v913, 0.0
  %v1069 = vadd.f32 %v1067, %v1068
  %v1070 = vsel %vm89, %v915, 0.0
  %v1071 = vadd.f32 %v1069, %v1070
  %v1072 = vsel %vm89, %v918, 0.0
  %v1073 = vadd.f32 %v1071, %v1072
  %v1074 = vsel %vm89, %v920, 0.0
  %v1075 = vadd.f32 %v1073, %v1074
  %v1076 = vsel %vm89, %v923, 0.0
  %v1077 = vadd.f32 %v1075, %v1076
  %v1078 = vsel %vm89, %v925, 0.0
  %v1079 = vadd.f32 %v1077, %v1078
  %v1080 = vsel %vm89, %v928, 0.0
  %v1081 = vadd.f32 %v1079, %v1080
  %v1082 = vsel %vm89, %v930, 0.0
  %v1083 = vadd.f32 %v1081, %v1082
  %v1084 = vsel %vm89, %v933, 0.0
  %v1085 = vadd.f32 %v1083, %v1084
  %v1086 = vsel %vm89, %v935, 0.0
  %v1087 = vadd.f32 %v1085, %v1086
  %v1088 = vsel %vm89, %v938, 0.0
  %v1089 = vadd.f32 %v1087, %v1088
  %v1090 = vsel %vm89, %v940, 0.0
  %v1091 = vadd.f32 %v1089, %v1090
  %v1092 = vsel %vm89, %v943, 0.0
  %v1093 = vadd.f32 %v1091, %v1092
  %v1094 = vsel %vm89, %v945, 0.0
  %v1095 = vadd.f32 %v1093, %v1094
  %v1096 = vsel %vm89, %v948, 0.0
  %v1097 = vadd.f32 %v1095, %v1096
  %v1098 = vsel %vm89, %v950, 0.0
  %v1099 = vadd.f32 %v1097, %v1098
  %v1100 = vsel %vm89, %v953, 0.0
  %v1101 = vadd.f32 %v1099, %v1100
  %v1102 = vsel %vm89, %v955, 0.0
  %v1103 = vadd.f32 %v1101, %v1102
  %v1104 = vsel %vm89, %v958, 0.0
  %v1105 = vadd.f32 %v1103, %v1104
  %v1106 = vsel %vm89, %v960, 0.0
  %v1107 = vadd.f32 %v1105, %v1106
  %v1108 = vsel %vm89, %v963, 0.0
  %v1109 = vadd.f32 %v1107, %v1108
  %v1110 = vsel %vm89, %v965, 0.0
  %v1111 = vadd.f32 %v1109, %v1110
  %v1112 = vsel %vm89, %v968, 0.0
  %v1113 = vadd.f32 %v1111, %v1112
  %v1114 = vsel %vm89, %v970, 0.0
  %v1115 = vadd.f32 %v1113, %v1114
  %v1116 = vsel %vm89, %v973, 0.0
  %v1117 = vadd.f32 %v1115, %v1116
  %v1118 = vsel %vm89, %v975, 0.0
  %v1119 = vadd.f32 %v1117, %v1118
  %v1120 = vsel %vm89, %v978, 0.0
  %v1121 = vadd.f32 %v1119, %v1120
  %v1122 = vsel %vm89, %v980, 0.0
  %v1123 = vadd.f32 %v1121, %v1122
  %v1124 = vsel %vm89, %v983, 0.0
  %v1125 = vadd.f32 %v1123, %v1124
  %v1126 = vsel %vm89, %v985, 0.0
  %v1127 = vadd.f32 %v1125, %v1126
  %v1128 = vsel %vm89, %v988, 0.0
  %v1129 = vadd.f32 %v1127, %v1128
  %v1130 = vsel %vm89, %v990, 0.0
  %v1131 = vadd.f32 %v1129, %v1130
  %v1132 = vsel %vm89, %v993, 0.0
  %v1133 = vadd.f32 %v1131, %v1132
  %v1134 = vsel %vm89, %v995, 0.0
  %v1135 = vadd.f32 %v1133, %v1134
  %v1136 = vsel %vm89, %v998, 0.0
  %v1137 = vadd.f32 %v1135, %v1136
  %v1138 = vsel %vm89, %v1000, 0.0
  %v1139 = vadd.f32 %v1137, %v1138
  %v1140 = vsel %vm89, %v1003, 0.0
  %v1141 = vadd.f32 %v1139, %v1140
  %v1142 = vsel %vm89, %v1005, 0.0
  %v1143 = vadd.f32 %v1141, %v1142
  %v1144 = vsel %vm89, %v1008, 0.0
  %v1145 = vadd.f32 %v1143, %v1144
  %v1146 = vsel %vm89, %v1010, 0.0
  %v1147 = vadd.f32 %v1145, %v1146
  %v1148 = vsel %vm89, %v1013, 0.0
  %v1149 = vadd.f32 %v1147, %v1148
  %v1150 = vsel %vm89, %v1015, 0.0
  %v1151 = vadd.f32 %v1149, %v1150
  %v1152 = vsel %vm89, %v1018, 0.0
  %v1153 = vadd.f32 %v1151, %v1152
  %v1154 = vsel %vm89, %v1020, 0.0
  %v1155 = vadd.f32 %v1153, %v1154
  %v1156 = vsel %vm89, %v1023, 0.0
  %v1157 = vadd.f32 %v1155, %v1156
  %v1158 = vsel %vm89, %v1025, 0.0
  %v1159 = vadd.f32 %v1157, %v1158
  %v1160 = vsel %vm89, %v1028, 0.0
  %v1161 = vadd.f32 %v1159, %v1160
  %v1162 = vsel %vm89, %v1030, 0.0
  %v1163 = vadd.f32 %v1161, %v1162
  %v1164 = vsel %vm89, %v1033, 0.0
  %v1165 = vadd.f32 %v1163, %v1164
  %v1166 = vsel %vm89, %v1035, 0.0
  %v1167 = vadd.f32 %v1165, %v1166
  %v1168 = vsel %vm89, %v1038, 0.0
  %v1169 = vadd.f32 %v1167, %v1168
  %v1170 = vsel %vm89, %v1040, 0.0
  %v1171 = vadd.f32 %v1169, %v1170
  %v1172 = vsel %vm89, %v1043, 0.0
  %v1173 = vadd.f32 %v1171, %v1172
  %v1174 = vsel %vm89, %v1045, 0.0
  %v1175 = vadd.f32 %v1173, %v1174
  %v1176 = vsel %vm89, %v1048, 0.0
  %v1177 = vadd.f32 %v1175, %v1176
  %v1178 = vsel %vm89, %v1050, 0.0
  %v1179 = vadd.f32 %v1177, %v1178
  %v1180 = vsel %vm89, %v1053, 0.0
  %v1181 = vadd.f32 %v1179, %v1180
  %v1182 = vsel %vm89, %v1055, 0.0
  %v1183 = vadd.f32 %v1181, %v1182
  %v1184 = vrot.slane %v1183, 4
  %v1185 = vadd.f32 %v1183, %v1184
  %v1186 = vrot.slane %v1185, 2
  %v1187 = vadd.f32 %v1185, %v1186
  %v1188 = vrot.slane %v1187, 1
  %v1189 = vadd.f32 %v1187, %v1188
  %v1190 = vmul.f32 %v1189, 0.001953125
  %v1191 = vsub.f32 %v898, %v1190
  %v1192 = vsub.f32 %v900, %v1190
  %v1193 = vsub.f32 %v903, %v1190
  %v1194 = vsub.f32 %v905, %v1190
  %v1195 = vsub.f32 %v908, %v1190
  %v1196 = vsub.f32 %v910, %v1190
  %v1197 = vsub.f32 %v913, %v1190
  %v1198 = vsub.f32 %v915, %v1190
  %v1199 = vsub.f32 %v918, %v1190
  %v1200 = vsub.f32 %v920, %v1190
  %v1201 = vsub.f32 %v923, %v1190
  %v1202 = vsub.f32 %v925, %v1190
  %v1203 = vsub.f32 %v928, %v1190
  %v1204 = vsub.f32 %v930, %v1190
  %v1205 = vsub.f32 %v933, %v1190
  %v1206 = vsub.f32 %v935, %v1190
  %v1207 = vsub.f32 %v938, %v1190
  %v1208 = vsub.f32 %v940, %v1190
  %v1209 = vsub.f32 %v943, %v1190
  %v1210 = vsub.f32 %v945, %v1190
  %v1211 = vsub.f32 %v948, %v1190
  %v1212 = vsub.f32 %v950, %v1190
  %v1213 = vsub.f32 %v953, %v1190
  %v1214 = vsub.f32 %v955, %v1190
  %v1215 = vsub.f32 %v958, %v1190
  %v1216 = vsub.f32 %v960, %v1190
  %v1217 = vsub.f32 %v963, %v1190
  %v1218 = vsub.f32 %v965, %v1190
  %v1219 = vsub.f32 %v968, %v1190
  %v1220 = vsub.f32 %v970, %v1190
  %v1221 = vsub.f32 %v973, %v1190
  %v1222 = vsub.f32 %v975, %v1190
  %v1223 = vsub.f32 %v978, %v1190
  %v1224 = vsub.f32 %v980, %v1190
  %v1225 = vsub.f32 %v983, %v1190
  %v1226 = vsub.f32 %v985, %v1190
  %v1227 = vsub.f32 %v988, %v1190
  %v1228 = vsub.f32 %v990, %v1190
  %v1229 = vsub.f32 %v993, %v1190
  %v1230 = vsub.f32 %v995, %v1190
  %v1231 = vsub.f32 %v998, %v1190
  %v1232 = vsub.f32 %v1000, %v1190
  %v1233 = vsub.f32 %v1003, %v1190
  %v1234 = vsub.f32 %v1005, %v1190
  %v1235 = vsub.f32 %v1008, %v1190
  %v1236 = vsub.f32 %v1010, %v1190
  %v1237 = vsub.f32 %v1013, %v1190
  %v1238 = vsub.f32 %v1015, %v1190
  %v1239 = vsub.f32 %v1018, %v1190
  %v1240 = vsub.f32 %v1020, %v1190
  %v1241 = vsub.f32 %v1023, %v1190
  %v1242 = vsub.f32 %v1025, %v1190
  %v1243 = vsub.f32 %v1028, %v1190
  %v1244 = vsub.f32 %v1030, %v1190
  %v1245 = vsub.f32 %v1033, %v1190
  %v1246 = vsub.f32 %v1035, %v1190
  %v1247 = vsub.f32 %v1038, %v1190
  %v1248 = vsub.f32 %v1040, %v1190
  %v1249 = vsub.f32 %v1043, %v1190
  %v1250 = vsub.f32 %v1045, %v1190
  %v1251 = vsub.f32 %v1048, %v1190
  %v1252 = vsub.f32 %v1050, %v1190
  %v1253 = vsub.f32 %v1053, %v1190
  %v1254 = vsub.f32 %v1055, %v1190
  %v1255 = vmul.f32 %v1191, %v1191
  %v1256 = vmul.f32 %v1192, %v1192
  %v1257 = vmul.f32 %v1193, %v1193
  %v1258 = vmul.f32 %v1194, %v1194
  %v1259 = vmul.f32 %v1195, %v1195
  %v1260 = vmul.f32 %v1196, %v1196
  %v1261 = vmul.f32 %v1197, %v1197
  %v1262 = vmul.f32 %v1198, %v1198
  %v1263 = vmul.f32 %v1199, %v1199
  %v1264 = vmul.f32 %v1200, %v1200
  %v1265 = vmul.f32 %v1201, %v1201
  %v1266 = vmul.f32 %v1202, %v1202
  %v1267 = vmul.f32 %v1203, %v1203
  %v1268 = vmul.f32 %v1204, %v1204
  %v1269 = vmul.f32 %v1205, %v1205
  %v1270 = vmul.f32 %v1206, %v1206
  %v1271 = vmul.f32 %v1207, %v1207
  %v1272 = vmul.f32 %v1208, %v1208
  %v1273 = vmul.f32 %v1209, %v1209
  %v1274 = vmul.f32 %v1210, %v1210
  %v1275 = vmul.f32 %v1211, %v1211
  %v1276 = vmul.f32 %v1212, %v1212
  %v1277 = vmul.f32 %v1213, %v1213
  %v1278 = vmul.f32 %v1214, %v1214
  %v1279 = vmul.f32 %v1215, %v1215
  %v1280 = vmul.f32 %v1216, %v1216
  %v1281 = vmul.f32 %v1217, %v1217
  %v1282 = vmul.f32 %v1218, %v1218
  %v1283 = vmul.f32 %v1219, %v1219
  %v1284 = vmul.f32 %v1220, %v1220
  %v1285 = vmul.f32 %v1221, %v1221
  %v1286 = vmul.f32 %v1222, %v1222
  %v1287 = vmul.f32 %v1223, %v1223
  %v1288 = vmul.f32 %v1224, %v1224
  %v1289 = vmul.f32 %v1225, %v1225
  %v1290 = vmul.f32 %v1226, %v1226
  %v1291 = vmul.f32 %v1227, %v1227
  %v1292 = vmul.f32 %v1228, %v1228
  %v1293 = vmul.f32 %v1229, %v1229
  %v1294 = vmul.f32 %v1230, %v1230
  %v1295 = vmul.f32 %v1231, %v1231
  %v1296 = vmul.f32 %v1232, %v1232
  %v1297 = vmul.f32 %v1233, %v1233
  %v1298 = vmul.f32 %v1234, %v1234
  %v1299 = vmul.f32 %v1235, %v1235
  %v1300 = vmul.f32 %v1236, %v1236
  %v1301 = vmul.f32 %v1237, %v1237
  %v1302 = vmul.f32 %v1238, %v1238
  %v1303 = vmul.f32 %v1239, %v1239
  %v1304 = vmul.f32 %v1240, %v1240
  %v1305 = vmul.f32 %v1241, %v1241
  %v1306 = vmul.f32 %v1242, %v1242
  %v1307 = vmul.f32 %v1243, %v1243
  %v1308 = vmul.f32 %v1244, %v1244
  %v1309 = vmul.f32 %v1245, %v1245
  %v1310 = vmul.f32 %v1246, %v1246
  %v1311 = vmul.f32 %v1247, %v1247
  %v1312 = vmul.f32 %v1248, %v1248
  %v1313 = vmul.f32 %v1249, %v1249
  %v1314 = vmul.f32 %v1250, %v1250
  %v1315 = vmul.f32 %v1251, %v1251
  %v1316 = vmul.f32 %v1252, %v1252
  %v1317 = vmul.f32 %v1253, %v1253
  %v1318 = vmul.f32 %v1254, %v1254
  %v1319 = vsel %vm89, %v1255, 0.0
  %v1320 = vsel %vm89, %v1256, 0.0
  %v1321 = vadd.f32 %v1319, %v1320
  %v1322 = vsel %vm89, %v1257, 0.0
  %v1323 = vadd.f32 %v1321, %v1322
  %v1324 = vsel %vm89, %v1258, 0.0
  %v1325 = vadd.f32 %v1323, %v1324
  %v1326 = vsel %vm89, %v1259, 0.0
  %v1327 = vadd.f32 %v1325, %v1326
  %v1328 = vsel %vm89, %v1260, 0.0
  %v1329 = vadd.f32 %v1327, %v1328
  %v1330 = vsel %vm89, %v1261, 0.0
  %v1331 = vadd.f32 %v1329, %v1330
  %v1332 = vsel %vm89, %v1262, 0.0
  %v1333 = vadd.f32 %v1331, %v1332
  %v1334 = vsel %vm89, %v1263, 0.0
  %v1335 = vadd.f32 %v1333, %v1334
  %v1336 = vsel %vm89, %v1264, 0.0
  %v1337 = vadd.f32 %v1335, %v1336
  %v1338 = vsel %vm89, %v1265, 0.0
  %v1339 = vadd.f32 %v1337, %v1338
  %v1340 = vsel %vm89, %v1266, 0.0
  %v1341 = vadd.f32 %v1339, %v1340
  %v1342 = vsel %vm89, %v1267, 0.0
  %v1343 = vadd.f32 %v1341, %v1342
  %v1344 = vsel %vm89, %v1268, 0.0
  %v1345 = vadd.f32 %v1343, %v1344
  %v1346 = vsel %vm89, %v1269, 0.0
  %v1347 = vadd.f32 %v1345, %v1346
  %v1348 = vsel %vm89, %v1270, 0.0
  %v1349 = vadd.f32 %v1347, %v1348
  %v1350 = vsel %vm89, %v1271, 0.0
  %v1351 = vadd.f32 %v1349, %v1350
  %v1352 = vsel %vm89, %v1272, 0.0
  %v1353 = vadd.f32 %v1351, %v1352
  %v1354 = vsel %vm89, %v1273, 0.0
  %v1355 = vadd.f32 %v1353, %v1354
  %v1356 = vsel %vm89, %v1274, 0.0
  %v1357 = vadd.f32 %v1355, %v1356
  %v1358 = vsel %vm89, %v1275, 0.0
  %v1359 = vadd.f32 %v1357, %v1358
  %v1360 = vsel %vm89, %v1276, 0.0
  %v1361 = vadd.f32 %v1359, %v1360
  %v1362 = vsel %vm89, %v1277, 0.0
  %v1363 = vadd.f32 %v1361, %v1362
  %v1364 = vsel %vm89, %v1278, 0.0
  %v1365 = vadd.f32 %v1363, %v1364
  %v1366 = vsel %vm89, %v1279, 0.0
  %v1367 = vadd.f32 %v1365, %v1366
  %v1368 = vsel %vm89, %v1280, 0.0
  %v1369 = vadd.f32 %v1367, %v1368
  %v1370 = vsel %vm89, %v1281, 0.0
  %v1371 = vadd.f32 %v1369, %v1370
  %v1372 = vsel %vm89, %v1282, 0.0
  %v1373 = vadd.f32 %v1371, %v1372
  %v1374 = vsel %vm89, %v1283, 0.0
  %v1375 = vadd.f32 %v1373, %v1374
  %v1376 = vsel %vm89, %v1284, 0.0
  %v1377 = vadd.f32 %v1375, %v1376
  %v1378 = vsel %vm89, %v1285, 0.0
  %v1379 = vadd.f32 %v1377, %v1378
  %v1380 = vsel %vm89, %v1286, 0.0
  %v1381 = vadd.f32 %v1379, %v1380
  %v1382 = vsel %vm89, %v1287, 0.0
  %v1383 = vadd.f32 %v1381, %v1382
  %v1384 = vsel %vm89, %v1288, 0.0
  %v1385 = vadd.f32 %v1383, %v1384
  %v1386 = vsel %vm89, %v1289, 0.0
  %v1387 = vadd.f32 %v1385, %v1386
  %v1388 = vsel %vm89, %v1290, 0.0
  %v1389 = vadd.f32 %v1387, %v1388
  %v1390 = vsel %vm89, %v1291, 0.0
  %v1391 = vadd.f32 %v1389, %v1390
  %v1392 = vsel %vm89, %v1292, 0.0
  %v1393 = vadd.f32 %v1391, %v1392
  %v1394 = vsel %vm89, %v1293, 0.0
  %v1395 = vadd.f32 %v1393, %v1394
  %v1396 = vsel %vm89, %v1294, 0.0
  %v1397 = vadd.f32 %v1395, %v1396
  %v1398 = vsel %vm89, %v1295, 0.0
  %v1399 = vadd.f32 %v1397, %v1398
  %v1400 = vsel %vm89, %v1296, 0.0
  %v1401 = vadd.f32 %v1399, %v1400
  %v1402 = vsel %vm89, %v1297, 0.0
  %v1403 = vadd.f32 %v1401, %v1402
  %v1404 = vsel %vm89, %v1298, 0.0
  %v1405 = vadd.f32 %v1403, %v1404
  %v1406 = vsel %vm89, %v1299, 0.0
  %v1407 = vadd.f32 %v1405, %v1406
  %v1408 = vsel %vm89, %v1300, 0.0
  %v1409 = vadd.f32 %v1407, %v1408
  %v1410 = vsel %vm89, %v1301, 0.0
  %v1411 = vadd.f32 %v1409, %v1410
  %v1412 = vsel %vm89, %v1302, 0.0
  %v1413 = vadd.f32 %v1411, %v1412
  %v1414 = vsel %vm89, %v1303, 0.0
  %v1415 = vadd.f32 %v1413, %v1414
  %v1416 = vsel %vm89, %v1304, 0.0
  %v1417 = vadd.f32 %v1415, %v1416
  %v1418 = vsel %vm89, %v1305, 0.0
  %v1419 = vadd.f32 %v1417, %v1418
  %v1420 = vsel %vm89, %v1306, 0.0
  %v1421 = vadd.f32 %v1419, %v1420
  %v1422 = vsel %vm89, %v1307, 0.0
  %v1423 = vadd.f32 %v1421, %v1422
  %v1424 = vsel %vm89, %v1308, 0.0
  %v1425 = vadd.f32 %v1423, %v1424
  %v1426 = vsel %vm89, %v1309, 0.0
  %v1427 = vadd.f32 %v1425, %v1426
  %v1428 = vsel %vm89, %v1310, 0.0
  %v1429 = vadd.f32 %v1427, %v1428
  %v1430 = vsel %vm89, %v1311, 0.0
  %v1431 = vadd.f32 %v1429, %v1430
  %v1432 = vsel %vm89, %v1312, 0.0
  %v1433 = vadd.f32 %v1431, %v1432
  %v1434 = vsel %vm89, %v1313, 0.0
  %v1435 = vadd.f32 %v1433, %v1434
  %v1436 = vsel %vm89, %v1314, 0.0
  %v1437 = vadd.f32 %v1435, %v1436
  %v1438 = vsel %vm89, %v1315, 0.0
  %v1439 = vadd.f32 %v1437, %v1438
  %v1440 = vsel %vm89, %v1316, 0.0
  %v1441 = vadd.f32 %v1439, %v1440
  %v1442 = vsel %vm89, %v1317, 0.0
  %v1443 = vadd.f32 %v1441, %v1442
  %v1444 = vsel %vm89, %v1318, 0.0
  %v1445 = vadd.f32 %v1443, %v1444
  %v1446 = vrot.slane %v1445, 4
  %v1447 = vadd.f32 %v1445, %v1446
  %v1448 = vrot.slane %v1447, 2
  %v1449 = vadd.f32 %v1447, %v1448
  %v1450 = vrot.slane %v1449, 1
  %v1451 = vadd.f32 %v1449, %v1450
  %v1452 = vmul.f32 %v1451, 0.001953125
  %v1453 = vadd.f32 %v1452, 1e-05
  %v1454 = vrsqrt.pop %v1453
  %v1455 = vmul.f32 %v1454, %v1453
  %v1456 = vmul.f32 %v1455, %v1454
  %v1457 = vmul.f32 0.5, %v1456
  %v1458 = vsub.f32 1.5, %v1457
  %v1459 = vmul.f32 %v1454, %v1458
  %vm1460 = vweird.f32 %v1453
  %vm1461 = vweird.f32 %v1454
  %vm1462 = vmor %vm1460, %vm1461
  %v1463 = vsel %vm1462, %v1454, %v1459
  %v1464 = vmul.f32 %v1191, %v1463
  %v1465 = vmul.f32 %v1192, %v1463
  %v1466 = vmul.f32 %v1193, %v1463
  %v1467 = vmul.f32 %v1194, %v1463
  %v1468 = vmul.f32 %v1195, %v1463
  %v1469 = vmul.f32 %v1196, %v1463
  %v1470 = vmul.f32 %v1197, %v1463
  %v1471 = vmul.f32 %v1198, %v1463
  %v1472 = vmul.f32 %v1199, %v1463
  %v1473 = vmul.f32 %v1200, %v1463
  %v1474 = vmul.f32 %v1201, %v1463
  %v1475 = vmul.f32 %v1202, %v1463
  %v1476 = vmul.f32 %v1203, %v1463
  %v1477 = vmul.f32 %v1204, %v1463
  %v1478 = vmul.f32 %v1205, %v1463
  %v1479 = vmul.f32 %v1206, %v1463
  %v1480 = vmul.f32 %v1207, %v1463
  %v1481 = vmul.f32 %v1208, %v1463
  %v1482 = vmul.f32 %v1209, %v1463
  %v1483 = vmul.f32 %v1210, %v1463
  %v1484 = vmul.f32 %v1211, %v1463
  %v1485 = vmul.f32 %v1212, %v1463
  %v1486 = vmul.f32 %v1213, %v1463
  %v1487 = vmul.f32 %v1214, %v1463
  %v1488 = vmul.f32 %v1215, %v1463
  %v1489 = vmul.f32 %v1216, %v1463
  %v1490 = vmul.f32 %v1217, %v1463
  %v1491 = vmul.f32 %v1218, %v1463
  %v1492 = vmul.f32 %v1219, %v1463
  %v1493 = vmul.f32 %v1220, %v1463
  %v1494 = vmul.f32 %v1221, %v1463
  %v1495 = vmul.f32 %v1222, %v1463
  %v1496 = vmul.f32 %v1223, %v1463
  %v1497 = vmul.f32 %v1224, %v1463
  %v1498 = vmul.f32 %v1225, %v1463
  %v1499 = vmul.f32 %v1226, %v1463
  %v1500 = vmul.f32 %v1227, %v1463
  %v1501 = vmul.f32 %v1228, %v1463
  %v1502 = vmul.f32 %v1229, %v1463
  %v1503 = vmul.f32 %v1230, %v1463
  %v1504 = vmul.f32 %v1231, %v1463
  %v1505 = vmul.f32 %v1232, %v1463
  %v1506 = vmul.f32 %v1233, %v1463
  %v1507 = vmul.f32 %v1234, %v1463
  %v1508 = vmul.f32 %v1235, %v1463
  %v1509 = vmul.f32 %v1236, %v1463
  %v1510 = vmul.f32 %v1237, %v1463
  %v1511 = vmul.f32 %v1238, %v1463
  %v1512 = vmul.f32 %v1239, %v1463
  %v1513 = vmul.f32 %v1240, %v1463
  %v1514 = vmul.f32 %v1241, %v1463
  %v1515 = vmul.f32 %v1242, %v1463
  %v1516 = vmul.f32 %v1243, %v1463
  %v1517 = vmul.f32 %v1244, %v1463
  %v1518 = vmul.f32 %v1245, %v1463
  %v1519 = vmul.f32 %v1246, %v1463
  %v1520 = vmul.f32 %v1247, %v1463
  %v1521 = vmul.f32 %v1248, %v1463
  %v1522 = vmul.f32 %v1249, %v1463
  %v1523 = vmul.f32 %v1250, %v1463
  %v1524 = vmul.f32 %v1251, %v1463
  %v1525 = vmul.f32 %v1252, %v1463
  %v1526 = vmul.f32 %v1253, %v1463
  %v1527 = vmul.f32 %v1254, %v1463
  %v1528 = vperm.slane %v87, 3
  %v1529 = vmul.f32 %v1464, %v1528
  %v1530 = vmul.f32 %v1465, %v1528
  %v1531 = vmul.f32 %v1466, %v1528
  %v1532 = vmul.f32 %v1467, %v1528
  %v1533 = vmul.f32 %v1468, %v1528
  %v1534 = vmul.f32 %v1469, %v1528
  %v1535 = vmul.f32 %v1470, %v1528
  %v1536 = vmul.f32 %v1471, %v1528
  %v1537 = vmul.f32 %v1472, %v1528
  %v1538 = vmul.f32 %v1473, %v1528
  %v1539 = vmul.f32 %v1474, %v1528
  %v1540 = vmul.f32 %v1475, %v1528
  %v1541 = vmul.f32 %v1476, %v1528
  %v1542 = vmul.f32 %v1477, %v1528
  %v1543 = vmul.f32 %v1478, %v1528
  %v1544 = vmul.f32 %v1479, %v1528
  %v1545 = vmul.f32 %v1480, %v1528
  %v1546 = vmul.f32 %v1481, %v1528
  %v1547 = vmul.f32 %v1482, %v1528
  %v1548 = vmul.f32 %v1483, %v1528
  %v1549 = vmul.f32 %v1484, %v1528
  %v1550 = vmul.f32 %v1485, %v1528
  %v1551 = vmul.f32 %v1486, %v1528
  %v1552 = vmul.f32 %v1487, %v1528
  %v1553 = vmul.f32 %v1488, %v1528
  %v1554 = vmul.f32 %v1489, %v1528
  %v1555 = vmul.f32 %v1490, %v1528
  %v1556 = vmul.f32 %v1491, %v1528
  %v1557 = vmul.f32 %v1492, %v1528
  %v1558 = vmul.f32 %v1493, %v1528
  %v1559 = vmul.f32 %v1494, %v1528
  %v1560 = vmul.f32 %v1495, %v1528
  %v1561 = vmul.f32 %v1496, %v1528
  %v1562 = vmul.f32 %v1497, %v1528
  %v1563 = vmul.f32 %v1498, %v1528
  %v1564 = vmul.f32 %v1499, %v1528
  %v1565 = vmul.f32 %v1500, %v1528
  %v1566 = vmul.f32 %v1501, %v1528
  %v1567 = vmul.f32 %v1502, %v1528
  %v1568 = vmul.f32 %v1503, %v1528
  %v1569 = vmul.f32 %v1504, %v1528
  %v1570 = vmul.f32 %v1505, %v1528
  %v1571 = vmul.f32 %v1506, %v1528
  %v1572 = vmul.f32 %v1507, %v1528
  %v1573 = vmul.f32 %v1508, %v1528
  %v1574 = vmul.f32 %v1509, %v1528
  %v1575 = vmul.f32 %v1510, %v1528
  %v1576 = vmul.f32 %v1511, %v1528
  %v1577 = vmul.f32 %v1512, %v1528
  %v1578 = vmul.f32 %v1513, %v1528
  %v1579 = vmul.f32 %v1514, %v1528
  %v1580 = vmul.f32 %v1515, %v1528
  %v1581 = vmul.f32 %v1516, %v1528
  %v1582 = vmul.f32 %v1517, %v1528
  %v1583 = vmul.f32 %v1518, %v1528
  %v1584 = vmul.f32 %v1519, %v1528
  %v1585 = vmul.f32 %v1520, %v1528
  %v1586 = vmul.f32 %v1521, %v1528
  %v1587 = vmul.f32 %v1522, %v1528
  %v1588 = vmul.f32 %v1523, %v1528
  %v1589 = vmul.f32 %v1524, %v1528
  %v1590 = vmul.f32 %v1525, %v1528
  %v1591 = vmul.f32 %v1526, %v1528
  %v1592 = vmul.f32 %v1527, %v1528
  %v1593 = vperm.slane %v87, 4
  %v1594 = vadd.f32 %v1529, %v1593
  %v1595 = vadd.f32 %v1530, %v1593
  %v1596 = vadd.f32 %v1531, %v1593
  %v1597 = vadd.f32 %v1532, %v1593
  %v1598 = vadd.f32 %v1533, %v1593
  %v1599 = vadd.f32 %v1534, %v1593
  %v1600 = vadd.f32 %v1535, %v1593
  %v1601 = vadd.f32 %v1536, %v1593
  %v1602 = vadd.f32 %v1537, %v1593
  %v1603 = vadd.f32 %v1538, %v1593
  %v1604 = vadd.f32 %v1539, %v1593
  %v1605 = vadd.f32 %v1540, %v1593
  %v1606 = vadd.f32 %v1541, %v1593
  %v1607 = vadd.f32 %v1542, %v1593
  %v1608 = vadd.f32 %v1543, %v1593
  %v1609 = vadd.f32 %v1544, %v1593
  %v1610 = vadd.f32 %v1545, %v1593
  %v1611 = vadd.f32 %v1546, %v1593
  %v1612 = vadd.f32 %v1547, %v1593
  %v1613 = vadd.f32 %v1548, %v1593
  %v1614 = vadd.f32 %v1549, %v1593
  %v1615 = vadd.f32 %v1550, %v1593
  %v1616 = vadd.f32 %v1551, %v1593
  %v1617 = vadd.f32 %v1552, %v1593
  %v1618 = vadd.f32 %v1553, %v1593
  %v1619 = vadd.f32 %v1554, %v1593
  %v1620 = vadd.f32 %v1555, %v1593
  %v1621 = vadd.f32 %v1556, %v1593
  %v1622 = vadd.f32 %v1557, %v1593
  %v1623 = vadd.f32 %v1558, %v1593
  %v1624 = vadd.f32 %v1559, %v1593
  %v1625 = vadd.f32 %v1560, %v1593
  %v1626 = vadd.f32 %v1561, %v1593
  %v1627 = vadd.f32 %v1562, %v1593
  %v1628 = vadd.f32 %v1563, %v1593
  %v1629 = vadd.f32 %v1564, %v1593
  %v1630 = vadd.f32 %v1565, %v1593
  %v1631 = vadd.f32 %v1566, %v1593
  %v1632 = vadd.f32 %v1567, %v1593
  %v1633 = vadd.f32 %v1568, %v1593
  %v1634 = vadd.f32 %v1569, %v1593
  %v1635 = vadd.f32 %v1570, %v1593
  %v1636 = vadd.f32 %v1571, %v1593
  %v1637 = vadd.f32 %v1572, %v1593
  %v1638 = vadd.f32 %v1573, %v1593
  %v1639 = vadd.f32 %v1574, %v1593
  %v1640 = vadd.f32 %v1575, %v1593
  %v1641 = vadd.f32 %v1576, %v1593
  %v1642 = vadd.f32 %v1577, %v1593
  %v1643 = vadd.f32 %v1578, %v1593
  %v1644 = vadd.f32 %v1579, %v1593
  %v1645 = vadd.f32 %v1580, %v1593
  %v1646 = vadd.f32 %v1581, %v1593
  %v1647 = vadd.f32 %v1582, %v1593
  %v1648 = vadd.f32 %v1583, %v1593
  %v1649 = vadd.f32 %v1584, %v1593
  %v1650 = vadd.f32 %v1585, %v1593
  %v1651 = vadd.f32 %v1586, %v1593
  %v1652 = vadd.f32 %v1587, %v1593
  %v1653 = vadd.f32 %v1588, %v1593
  %v1654 = vadd.f32 %v1589, %v1593
  %v1655 = vadd.f32 %v1590, %v1593
  %v1656 = vadd.f32 %v1591, %v1593
  %v1657 = vadd.f32 %v1592, %v1593
  %v1658 = vmax.f32 %v1594, 0.0
  %v1659 = vmax.f32 %v1595, 0.0
  %v1660 = vmax.f32 %v1596, 0.0
  %v1661 = vmax.f32 %v1597, 0.0
  %v1662 = vmax.f32 %v1598, 0.0
  %v1663 = vmax.f32 %v1599, 0.0
  %v1664 = vmax.f32 %v1600, 0.0
  %v1665 = vmax.f32 %v1601, 0.0
  %v1666 = vmax.f32 %v1602, 0.0
  %v1667 = vmax.f32 %v1603, 0.0
  %v1668 = vmax.f32 %v1604, 0.0
  %v1669 = vmax.f32 %v1605, 0.0
  %v1670 = vmax.f32 %v1606, 0.0
  %v1671 = vmax.f32 %v1607, 0.0
  %v1672 = vmax.f32 %v1608, 0.0
  %v1673 = vmax.f32 %v1609, 0.0
  %v1674 = vmax.f32 %v1610, 0.0
  %v1675 = vmax.f32 %v1611, 0.0
  %v1676 = vmax.f32 %v1612, 0.0
  %v1677 = vmax.f32 %v1613, 0.0
  %v1678 = vmax.f32 %v1614, 0.0
  %v1679 = vmax.f32 %v1615, 0.0
  %v1680 = vmax.f32 %v1616, 0.0
  %v1681 = vmax.f32 %v1617, 0.0
  %v1682 = vmax.f32 %v1618, 0.0
  %v1683 = vmax.f32 %v1619, 0.0
  %v1684 = vmax.f32 %v1620, 0.0
  %v1685 = vmax.f32 %v1621, 0.0
  %v1686 = vmax.f32 %v1622, 0.0
  %v1687 = vmax.f32 %v1623, 0.0
  %v1688 = vmax.f32 %v1624, 0.0
  %v1689 = vmax.f32 %v1625, 0.0
  %v1690 = vmax.f32 %v1626, 0.0
  %v1691 = vmax.f32 %v1627, 0.0
  %v1692 = vmax.f32 %v1628, 0.0
  %v1693 = vmax.f32 %v1629, 0.0
  %v1694 = vmax.f32 %v1630, 0.0
  %v1695 = vmax.f32 %v1631, 0.0
  %v1696 = vmax.f32 %v1632, 0.0
  %v1697 = vmax.f32 %v1633, 0.0
  %v1698 = vmax.f32 %v1634, 0.0
  %v1699 = vmax.f32 %v1635, 0.0
  %v1700 = vmax.f32 %v1636, 0.0
  %v1701 = vmax.f32 %v1637, 0.0
  %v1702 = vmax.f32 %v1638, 0.0
  %v1703 = vmax.f32 %v1639, 0.0
  %v1704 = vmax.f32 %v1640, 0.0
  %v1705 = vmax.f32 %v1641, 0.0
  %v1706 = vmax.f32 %v1642, 0.0
  %v1707 = vmax.f32 %v1643, 0.0
  %v1708 = vmax.f32 %v1644, 0.0
  %v1709 = vmax.f32 %v1645, 0.0
  %v1710 = vmax.f32 %v1646, 0.0
  %v1711 = vmax.f32 %v1647, 0.0
  %v1712 = vmax.f32 %v1648, 0.0
  %v1713 = vmax.f32 %v1649, 0.0
  %v1714 = vmax.f32 %v1650, 0.0
  %v1715 = vmax.f32 %v1651, 0.0
  %v1716 = vmax.f32 %v1652, 0.0
  %v1717 = vmax.f32 %v1653, 0.0
  %v1718 = vmax.f32 %v1654, 0.0
  %v1719 = vmax.f32 %v1655, 0.0
  %v1720 = vmax.f32 %v1656, 0.0
  %v1721 = vmax.f32 %v1657, 0.0
  %s1722 = scalar_lea.vmem [#allocation2], 128
  %1723 = vst.msk [vmem:[%s1722] sm:$0xff] %vm89, 0.0
  %vm1724 = vcmask 24576
  %1725 = vst.msk [vmem:[%s1722 + $0x8] sm:$0x1] %vm1724, 0.0
  %1726 = vst.msk [vmem:[%s1722 + $0x90] sm:$0xff] %vm89, 0.0
  %1727 = vst.msk [vmem:[%s1722 + $0x98] sm:$0x1] %vm1724, 0.0
  %1728 = vst.msk [vmem:[#allocation2 + $0x8] sm:$0x1] %vm1724, 0.0
  %1729 = vst.msk [vmem:[#allocation2 + $0x18] sm:$0x1] %vm1724, 0.0
  %1730 = vst.msk [vmem:[#allocation2 + $0x28] sm:$0x1] %vm1724, 0.0
  %1731 = vst.msk [vmem:[#allocation2 + $0x38] sm:$0x1] %vm1724, 0.0
  %1732 = vst.msk [vmem:[#allocation2 + $0x48] sm:$0x1] %vm1724, 0.0
  %1733 = vst.msk [vmem:[#allocation2 + $0x58] sm:$0x1] %vm1724, 0.0
  %1734 = vst.msk [vmem:[#allocation2 + $0x68] sm:$0x1] %vm1724, 0.0
  %1735 = vst.msk [vmem:[#allocation2 + $0x78] sm:$0x1] %vm1724, 0.0
  %1736 = vst.msk [vmem:[#allocation2 + $0x98] sm:$0x1] %vm1724, 0.0
  %1737 = vst.msk [vmem:[#allocation2 + $0xa8] sm:$0x1] %vm1724, 0.0
  %1738 = vst.msk [vmem:[#allocation2 + $0xb8] sm:$0x1] %vm1724, 0.0
  %1739 = vst.msk [vmem:[#allocation2 + $0xc8] sm:$0x1] %vm1724, 0.0
  %1740 = vst.msk [vmem:[#allocation2 + $0xd8] sm:$0x1] %vm1724, 0.0
  %1741 = vst.msk [vmem:[#allocation2 + $0xe8] sm:$0x1] %vm1724, 0.0
  %1742 = vst.msk [vmem:[#allocation2 + $0xf8] sm:$0x1] %vm1724, 0.0
  %1743 = vst.msk [vmem:[#allocation2 + $0x108] sm:$0x1] %vm1724, 0.0
  %1744 = vst.msk [vmem:[#allocation2] sm:$0xff] %vm89, %v1658
  %1745 = vst.msk [vmem:[#allocation2 + $0x10] sm:$0xff] %vm89, %v1659
  %1746 = vst.msk [vmem:[#allocation2 + $0x20] sm:$0xff] %vm89, %v1660
  %1747 = vst.msk [vmem:[#allocation2 + $0x30] sm:$0xff] %vm89, %v1661
  %1748 = vst.msk [vmem:[#allocation2 + $0x40] sm:$0xff] %vm89, %v1662
  %1749 = vst.msk [vmem:[#allocation2 + $0x50] sm:$0xff] %vm89, %v1663
  %1750 = vst.msk [vmem:[#allocation2 + $0x60] sm:$0xff] %vm89, %v1664
  %1751 = vst.msk [vmem:[#allocation2 + $0x70] sm:$0xff] %vm89, %v1665
  %1752 = vst.msk [vmem:[#allocation2 + $0x90] sm:$0xff] %vm89, %v1666
  %1753 = vst.msk [vmem:[#allocation2 + $0xa0] sm:$0xff] %vm89, %v1667
  %1754 = vst.msk [vmem:[#allocation2 + $0xb0] sm:$0xff] %vm89, %v1668
  %1755 = vst.msk [vmem:[#allocation2 + $0xc0] sm:$0xff] %vm89, %v1669
  %1756 = vst.msk [vmem:[#allocation2 + $0xd0] sm:$0xff] %vm89, %v1670
  %1757 = vst.msk [vmem:[#allocation2 + $0xe0] sm:$0xff] %vm89, %v1671
  %1758 = vst.msk [vmem:[#allocation2 + $0xf0] sm:$0xff] %vm89, %v1672
  %1759 = vst.msk [vmem:[#allocation2 + $0x100] sm:$0xff] %vm89, %v1673
  %s1760 = scalar_lea.vmem [#allocation2], 416
  %1761 = vst.msk [vmem:[%s1760] sm:$0xff] %vm89, 0.0
  %1762 = vst.msk [vmem:[%s1760 + $0x8] sm:$0x1] %vm1724, 0.0
  %1763 = vst.msk [vmem:[%s1760 + $0x90] sm:$0xff] %vm89, 0.0
  %1764 = vst.msk [vmem:[%s1760 + $0x98] sm:$0x1] %vm1724, 0.0
  %s1765 = scalar_lea.vmem [#allocation2], 288
  %1766 = vst.msk [vmem:[%s1765] sm:$0x1] %vm1724, 0.0
  %1767 = vst.msk [vmem:[%s1765 + $0x10] sm:$0x1] %vm1724, 0.0
  %1768 = vst.msk [vmem:[%s1765 + $0x20] sm:$0x1] %vm1724, 0.0
  %1769 = vst.msk [vmem:[%s1765 + $0x30] sm:$0x1] %vm1724, 0.0
  %1770 = vst.msk [vmem:[%s1765 + $0x40] sm:$0x1] %vm1724, 0.0
  %1771 = vst.msk [vmem:[%s1765 + $0x50] sm:$0x1] %vm1724, 0.0
  %1772 = vst.msk [vmem:[%s1765 + $0x60] sm:$0x1] %vm1724, 0.0
  %1773 = vst.msk [vmem:[%s1765 + $0x70] sm:$0x1] %vm1724, 0.0
  %1774 = vst.msk [vmem:[%s1765 + $0x90] sm:$0x1] %vm1724, 0.0
  %1775 = vst.msk [vmem:[%s1765 + $0xa0] sm:$0x1] %vm1724, 0.0
  %1776 = vst.msk [vmem:[%s1765 + $0xb0] sm:$0x1] %vm1724, 0.0
  %1777 = vst.msk [vmem:[%s1765 + $0xc0] sm:$0x1] %vm1724, 0.0
  %1778 = vst.msk [vmem:[%s1765 + $0xd0] sm:$0x1] %vm1724, 0.0
  %1779 = vst.msk [vmem:[%s1765 + $0xe0] sm:$0x1] %vm1724, 0.0
  %1780 = vst.msk [vmem:[%s1765 + $0xf0] sm:$0x1] %vm1724, 0.0
  %1781 = vst.msk [vmem:[%s1765 + $0x100] sm:$0x1] %vm1724, 0.0
  %1782 = vst.msk [vmem:[%s1765 + $0x1] sm:$0xff] %vm89, %v1674
  %1783 = vst.msk [vmem:[%s1765 + $0x11] sm:$0xff] %vm89, %v1675
  %1784 = vst.msk [vmem:[%s1765 + $0x21] sm:$0xff] %vm89, %v1676
  %1785 = vst.msk [vmem:[%s1765 + $0x31] sm:$0xff] %vm89, %v1677
  %1786 = vst.msk [vmem:[%s1765 + $0x41] sm:$0xff] %vm89, %v1678
  %1787 = vst.msk [vmem:[%s1765 + $0x51] sm:$0xff] %vm89, %v1679
  %1788 = vst.msk [vmem:[%s1765 + $0x61] sm:$0xff] %vm89, %v1680
  %1789 = vst.msk [vmem:[%s1765 + $0x71] sm:$0xff] %vm89, %v1681
  %1790 = vst.msk [vmem:[%s1765 + $0x91] sm:$0xff] %vm89, %v1682
  %1791 = vst.msk [vmem:[%s1765 + $0xa1] sm:$0xff] %vm89, %v1683
  %1792 = vst.msk [vmem:[%s1765 + $0xb1] sm:$0xff] %vm89, %v1684
  %1793 = vst.msk [vmem:[%s1765 + $0xc1] sm:$0xff] %vm89, %v1685
  %1794 = vst.msk [vmem:[%s1765 + $0xd1] sm:$0xff] %vm89, %v1686
  %1795 = vst.msk [vmem:[%s1765 + $0xe1] sm:$0xff] %vm89, %v1687
  %1796 = vst.msk [vmem:[%s1765 + $0xf1] sm:$0xff] %vm89, %v1688
  %1797 = vst.msk [vmem:[%s1765 + $0x101] sm:$0xff] %vm89, %v1689
  %s1798 = scalar_lea.vmem [#allocation2], 576
  %1799 = vst.msk [vmem:[%s1798] sm:$0xff] %vm89, 0.0
  %1800 = vst.msk [vmem:[%s1798 + $0x8] sm:$0x1] %vm1724, 0.0
  %1801 = vst.msk [vmem:[%s1798 + $0x90] sm:$0xff] %vm89, 0.0
  %1802 = vst.msk [vmem:[%s1798 + $0x98] sm:$0x1] %vm1724, 0.0
  %s1803 = scalar_lea.vmem [#allocation2], 592
  %1804 = vst.msk [vmem:[%s1803 + $0x8] sm:$0x1] %vm1724, 0.0
  %1805 = vst.msk [vmem:[%s1803 + $0x18] sm:$0x1] %vm1724, 0.0
  %1806 = vst.msk [vmem:[%s1803 + $0x28] sm:$0x1] %vm1724, 0.0
  %1807 = vst.msk [vmem:[%s1803 + $0x38] sm:$0x1] %vm1724, 0.0
  %1808 = vst.msk [vmem:[%s1803 + $0x48] sm:$0x1] %vm1724, 0.0
  %1809 = vst.msk [vmem:[%s1803 + $0x58] sm:$0x1] %vm1724, 0.0
  %1810 = vst.msk [vmem:[%s1803 + $0x68] sm:$0x1] %vm1724, 0.0
  %1811 = vst.msk [vmem:[%s1803 + $0x78] sm:$0x1] %vm1724, 0.0
  %1812 = vst.msk [vmem:[%s1803 + $0x98] sm:$0x1] %vm1724, 0.0
  %1813 = vst.msk [vmem:[%s1803 + $0xa8] sm:$0x1] %vm1724, 0.0
  %1814 = vst.msk [vmem:[%s1803 + $0xb8] sm:$0x1] %vm1724, 0.0
  %1815 = vst.msk [vmem:[%s1803 + $0xc8] sm:$0x1] %vm1724, 0.0
  %1816 = vst.msk [vmem:[%s1803 + $0xd8] sm:$0x1] %vm1724, 0.0
  %1817 = vst.msk [vmem:[%s1803 + $0xe8] sm:$0x1] %vm1724, 0.0
  %1818 = vst.msk [vmem:[%s1803 + $0xf8] sm:$0x1] %vm1724, 0.0
  %1819 = vst.msk [vmem:[%s1803 + $0x108] sm:$0x1] %vm1724, 0.0
  %1820 = vst.msk [vmem:[%s1803] sm:$0xff] %vm89, %v1690
  %1821 = vst.msk [vmem:[%s1803 + $0x10] sm:$0xff] %vm89, %v1691
  %1822 = vst.msk [vmem:[%s1803 + $0x20] sm:$0xff] %vm89, %v1692
  %1823 = vst.msk [vmem:[%s1803 + $0x30] sm:$0xff] %vm89, %v1693
  %1824 = vst.msk [vmem:[%s1803 + $0x40] sm:$0xff] %vm89, %v1694
  %1825 = vst.msk [vmem:[%s1803 + $0x50] sm:$0xff] %vm89, %v1695
  %1826 = vst.msk [vmem:[%s1803 + $0x60] sm:$0xff] %vm89, %v1696
  %1827 = vst.msk [vmem:[%s1803 + $0x70] sm:$0xff] %vm89, %v1697
  %1828 = vst.msk [vmem:[%s1803 + $0x90] sm:$0xff] %vm89, %v1698
  %1829 = vst.msk [vmem:[%s1803 + $0xa0] sm:$0xff] %vm89, %v1699
  %1830 = vst.msk [vmem:[%s1803 + $0xb0] sm:$0xff] %vm89, %v1700
  %1831 = vst.msk [vmem:[%s1803 + $0xc0] sm:$0xff] %vm89, %v1701
  %1832 = vst.msk [vmem:[%s1803 + $0xd0] sm:$0xff] %vm89, %v1702
  %1833 = vst.msk [vmem:[%s1803 + $0xe0] sm:$0xff] %vm89, %v1703
  %1834 = vst.msk [vmem:[%s1803 + $0xf0] sm:$0xff] %vm89, %v1704
  %1835 = vst.msk [vmem:[%s1803 + $0x100] sm:$0xff] %vm89, %v1705
  %s1836 = scalar_lea.vmem [#allocation2], 864
  %1837 = vst.msk [vmem:[%s1836] sm:$0xff] %vm89, 0.0
  %1838 = vst.msk [vmem:[%s1836 + $0x8] sm:$0x1] %vm1724, 0.0
  %1839 = vst.msk [vmem:[%s1836 + $0x90] sm:$0xff] %vm89, 0.0
  %1840 = vst.msk [vmem:[%s1836 + $0x98] sm:$0x1] %vm1724, 0.0
  %s1841 = scalar_lea.vmem [#allocation2], 880
  %1842 = vst.msk [vmem:[%s1841] sm:$0x1] %vm1724, 0.0
  %1843 = vst.msk [vmem:[%s1841 + $0x10] sm:$0x1] %vm1724, 0.0
  %1844 = vst.msk [vmem:[%s1841 + $0x20] sm:$0x1] %vm1724, 0.0
  %1845 = vst.msk [vmem:[%s1841 + $0x30] sm:$0x1] %vm1724, 0.0
  %1846 = vst.msk [vmem:[%s1841 + $0x40] sm:$0x1] %vm1724, 0.0
  %1847 = vst.msk [vmem:[%s1841 + $0x50] sm:$0x1] %vm1724, 0.0
  %1848 = vst.msk [vmem:[%s1841 + $0x60] sm:$0x1] %vm1724, 0.0
  %1849 = vst.msk [vmem:[%s1841 + $0x70] sm:$0x1] %vm1724, 0.0
  %1850 = vst.msk [vmem:[%s1841 + $0x90] sm:$0x1] %vm1724, 0.0
  %1851 = vst.msk [vmem:[%s1841 + $0xa0] sm:$0x1] %vm1724, 0.0
  %1852 = vst.msk [vmem:[%s1841 + $0xb0] sm:$0x1] %vm1724, 0.0
  %1853 = vst.msk [vmem:[%s1841 + $0xc0] sm:$0x1] %vm1724, 0.0
  %1854 = vst.msk [vmem:[%s1841 + $0xd0] sm:$0x1] %vm1724, 0.0
  %1855 = vst.msk [vmem:[%s1841 + $0xe0] sm:$0x1] %vm1724, 0.0
  %1856 = vst.msk [vmem:[%s1841 + $0xf0] sm:$0x1] %vm1724, 0.0
  %1857 = vst.msk [vmem:[%s1841 + $0x100] sm:$0x1] %vm1724, 0.0
  %1858 = vst.msk [vmem:[%s1841 + $0x1] sm:$0xff] %vm89, %v1706
  %1859 = vst.msk [vmem:[%s1841 + $0x11] sm:$0xff] %vm89, %v1707
  %1860 = vst.msk [vmem:[%s1841 + $0x21] sm:$0xff] %vm89, %v1708
  %1861 = vst.msk [vmem:[%s1841 + $0x31] sm:$0xff] %vm89, %v1709
  %1862 = vst.msk [vmem:[%s1841 + $0x41] sm:$0xff] %vm89, %v1710
  %1863 = vst.msk [vmem:[%s1841 + $0x51] sm:$0xff] %vm89, %v1711
  %1864 = vst.msk [vmem:[%s1841 + $0x61] sm:$0xff] %vm89, %v1712
  %1865 = vst.msk [vmem:[%s1841 + $0x71] sm:$0xff] %vm89, %v1713
  %1866 = vst.msk [vmem:[%s1841 + $0x91] sm:$0xff] %vm89, %v1714
  %1867 = vst.msk [vmem:[%s1841 + $0xa1] sm:$0xff] %vm89, %v1715
  %1868 = vst.msk [vmem:[%s1841 + $0xb1] sm:$0xff] %vm89, %v1716
  %1869 = vst.msk [vmem:[%s1841 + $0xc1] sm:$0xff] %vm89, %v1717
  %1870 = vst.msk [vmem:[%s1841 + $0xd1] sm:$0xff] %vm89, %v1718
  %1871 = vst.msk [vmem:[%s1841 + $0xe1] sm:$0xff] %vm89, %v1719
  %1872 = vst.msk [vmem:[%s1841 + $0xf1] sm:$0xff] %vm89, %v1720
  %1873 = vst.msk [vmem:[%s1841 + $0x101] sm:$0xff] %vm89, %v1721
  %v1874 = vld [vmem:[%s1836] sm:$0xff]
  %v1875 = vld [vmem:[%s1836 + $0x10] sm:$0xff]
  %v1876 = vld [vmem:[%s1836 + $0x20] sm:$0xff]
  %v1877 = vld [vmem:[%s1836 + $0x30] sm:$0xff]
  %v1878 = vld [vmem:[%s1836 + $0x40] sm:$0xff]
  %v1879 = vld [vmem:[%s1836 + $0x50] sm:$0xff]
  %v1880 = vld [vmem:[%s1836 + $0x60] sm:$0xff]
  %v1881 = vld [vmem:[%s1836 + $0x70] sm:$0xff]
  %v1882 = vld [vmem:[%s1836 + $0x90] sm:$0xff]
  %v1883 = vld [vmem:[%s1836 + $0xa0] sm:$0xff]
  %v1884 = vld [vmem:[%s1836 + $0xb0] sm:$0xff]
  %v1885 = vld [vmem:[%s1836 + $0xc0] sm:$0xff]
  %v1886 = vld [vmem:[%s1836 + $0xd0] sm:$0xff]
  %v1887 = vld [vmem:[%s1836 + $0xe0] sm:$0xff]
  %v1888 = vld [vmem:[%s1836 + $0xf0] sm:$0xff]
  %v1889 = vld [vmem:[%s1836 + $0x100] sm:$0xff]
  %1890 = vst.msk [vmem:[#allocation3] sm:$0xff] %vm89, %v1874
  %1891 = vst.msk [vmem:[#allocation3 + $0x8] sm:$0xff] %vm89, %v1875
  %1892 = vst.msk [vmem:[#allocation3 + $0x10] sm:$0xff] %vm89, %v1876
  %1893 = vst.msk [vmem:[#allocation3 + $0x18] sm:$0xff] %vm89, %v1877
  %1894 = vst.msk [vmem:[#allocation3 + $0x20] sm:$0xff] %vm89, %v1878
  %1895 = vst.msk [vmem:[#allocation3 + $0x28] sm:$0xff] %vm89, %v1879
  %1896 = vst.msk [vmem:[#allocation3 + $0x30] sm:$0xff] %vm89, %v1880
  %1897 = vst.msk [vmem:[#allocation3 + $0x38] sm:$0xff] %vm89, %v1881
  %1898 = vst.msk [vmem:[#allocation3 + $0x40] sm:$0xff] %vm89, %v1882
  %1899 = vst.msk [vmem:[#allocation3 + $0x48] sm:$0xff] %vm89, %v1883
  %1900 = vst.msk [vmem:[#allocation3 + $0x50] sm:$0xff] %vm89, %v1884
  %1901 = vst.msk [vmem:[#allocation3 + $0x58] sm:$0xff] %vm89, %v1885
  %1902 = vst.msk [vmem:[#allocation3 + $0x60] sm:$0xff] %vm89, %v1886
  %1903 = vst.msk [vmem:[#allocation3 + $0x68] sm:$0xff] %vm89, %v1887
  %1904 = vst.msk [vmem:[#allocation3 + $0x70] sm:$0xff] %vm89, %v1888
  %1905 = vst.msk [vmem:[#allocation3 + $0x78] sm:$0xff] %vm89, %v1889
  %v1906 = vld [vmem:[%s1798] sm:$0xff]
  %v1907 = vld [vmem:[%s1798 + $0x10] sm:$0xff]
  %v1908 = vld [vmem:[%s1798 + $0x20] sm:$0xff]
  %v1909 = vld [vmem:[%s1798 + $0x30] sm:$0xff]
  %v1910 = vld [vmem:[%s1798 + $0x40] sm:$0xff]
  %v1911 = vld [vmem:[%s1798 + $0x50] sm:$0xff]
  %v1912 = vld [vmem:[%s1798 + $0x60] sm:$0xff]
  %v1913 = vld [vmem:[%s1798 + $0x70] sm:$0xff]
  %v1914 = vld [vmem:[%s1798 + $0x90] sm:$0xff]
  %v1915 = vld [vmem:[%s1798 + $0xa0] sm:$0xff]
  %v1916 = vld [vmem:[%s1798 + $0xb0] sm:$0xff]
  %v1917 = vld [vmem:[%s1798 + $0xc0] sm:$0xff]
  %v1918 = vld [vmem:[%s1798 + $0xd0] sm:$0xff]
  %v1919 = vld [vmem:[%s1798 + $0xe0] sm:$0xff]
  %v1920 = vld [vmem:[%s1798 + $0xf0] sm:$0xff]
  %v1921 = vld [vmem:[%s1798 + $0x100] sm:$0xff]
  %1938 = vrot.lane.b32.xlu0 %v1906, 4
  %v1939 = vpop.permute.xlu0 %1938
  %1940 = vrot.lane.b32.xlu0 %v1907, 4
  %v1941 = vpop.permute.xlu0 %1940
  %1942 = vrot.lane.b32.xlu0 %v1908, 4
  %v1943 = vpop.permute.xlu0 %1942
  %1944 = vrot.lane.b32.xlu0 %v1909, 4
  %v1945 = vpop.permute.xlu0 %1944
  %1946 = vrot.lane.b32.xlu0 %v1910, 4
  %v1947 = vpop.permute.xlu0 %1946
  %1948 = vrot.lane.b32.xlu0 %v1911, 4
  %v1949 = vpop.permute.xlu0 %1948
  %1950 = vrot.lane.b32.xlu0 %v1912, 4
  %v1951 = vpop.permute.xlu0 %1950
  %1952 = vrot.lane.b32.xlu0 %v1913, 4
  %v1953 = vpop.permute.xlu0 %1952
  %1954 = vrot.lane.b32.xlu0 %v1914, 4
  %v1955 = vpop.permute.xlu0 %1954
  %1956 = vrot.lane.b32.xlu0 %v1915, 4
  %v1957 = vpop.permute.xlu0 %1956
  %1958 = vrot.lane.b32.xlu0 %v1916, 4
  %v1959 = vpop.permute.xlu0 %1958
  %1960 = vrot.lane.b32.xlu0 %v1917, 4
  %v1961 = vpop.permute.xlu0 %1960
  %1962 = vrot.lane.b32.xlu0 %v1918, 4
  %v1963 = vpop.permute.xlu0 %1962
  %1964 = vrot.lane.b32.xlu0 %v1919, 4
  %v1965 = vpop.permute.xlu0 %1964
  %1966 = vrot.lane.b32.xlu0 %v1920, 4
  %v1967 = vpop.permute.xlu0 %1966
  %1968 = vrot.lane.b32.xlu0 %v1921, 4
  %v1969 = vpop.permute.xlu0 %1968
  %vm1986 = vcmask 64544
  %1987 = vst.msk [vmem:[#allocation3] sm:$0xff] %vm1986, %v1939
  %1988 = vst.msk [vmem:[#allocation3 + $0x8] sm:$0xff] %vm1986, %v1941
  %1989 = vst.msk [vmem:[#allocation3 + $0x10] sm:$0xff] %vm1986, %v1943
  %1990 = vst.msk [vmem:[#allocation3 + $0x18] sm:$0xff] %vm1986, %v1945
  %1991 = vst.msk [vmem:[#allocation3 + $0x20] sm:$0xff] %vm1986, %v1947
  %1992 = vst.msk [vmem:[#allocation3 + $0x28] sm:$0xff] %vm1986, %v1949
  %1993 = vst.msk [vmem:[#allocation3 + $0x30] sm:$0xff] %vm1986, %v1951
  %1994 = vst.msk [vmem:[#allocation3 + $0x38] sm:$0xff] %vm1986, %v1953
  %1995 = vst.msk [vmem:[#allocation3 + $0x40] sm:$0xff] %vm1986, %v1955
  %1996 = vst.msk [vmem:[#allocation3 + $0x48] sm:$0xff] %vm1986, %v1957
  %1997 = vst.msk [vmem:[#allocation3 + $0x50] sm:$0xff] %vm1986, %v1959
  %1998 = vst.msk [vmem:[#allocation3 + $0x58] sm:$0xff] %vm1986, %v1961
  %1999 = vst.msk [vmem:[#allocation3 + $0x60] sm:$0xff] %vm1986, %v1963
  %2000 = vst.msk [vmem:[#allocation3 + $0x68] sm:$0xff] %vm1986, %v1965
  %2001 = vst.msk [vmem:[#allocation3 + $0x70] sm:$0xff] %vm1986, %v1967
  %2002 = vst.msk [vmem:[#allocation3 + $0x78] sm:$0xff] %vm1986, %v1969
  %v2003 = vld [vmem:[%s1836 + $0x1] sm:$0xff]
  %v2004 = vld [vmem:[%s1836 + $0x11] sm:$0xff]
  %v2005 = vld [vmem:[%s1836 + $0x21] sm:$0xff]
  %v2006 = vld [vmem:[%s1836 + $0x31] sm:$0xff]
  %v2007 = vld [vmem:[%s1836 + $0x41] sm:$0xff]
  %v2008 = vld [vmem:[%s1836 + $0x51] sm:$0xff]
  %v2009 = vld [vmem:[%s1836 + $0x61] sm:$0xff]
  %v2010 = vld [vmem:[%s1836 + $0x71] sm:$0xff]
  %v2011 = vld [vmem:[%s1836 + $0x91] sm:$0xff]
  %v2012 = vld [vmem:[%s1836 + $0xa1] sm:$0xff]
  %v2013 = vld [vmem:[%s1836 + $0xb1] sm:$0xff]
  %v2014 = vld [vmem:[%s1836 + $0xc1] sm:$0xff]
  %v2015 = vld [vmem:[%s1836 + $0xd1] sm:$0xff]
  %v2016 = vld [vmem:[%s1836 + $0xe1] sm:$0xff]
  %v2017 = vld [vmem:[%s1836 + $0xf1] sm:$0xff]
  %v2018 = vld [vmem:[%s1836 + $0x101] sm:$0xff]
  %2035 = vrot.lane.b32.xlu0 %v2003, 8
  %v2036 = vpop.permute.xlu0 %2035
  %2037 = vrot.lane.b32.xlu0 %v2004, 8
  %v2038 = vpop.permute.xlu0 %2037
  %2039 = vrot.lane.b32.xlu0 %v2005, 8
  %v2040 = vpop.permute.xlu0 %2039
  %2041 = vrot.lane.b32.xlu0 %v2006, 8
  %v2042 = vpop.permute.xlu0 %2041
  %2043 = vrot.lane.b32.xlu0 %v2007, 8
  %v2044 = vpop.permute.xlu0 %2043
  %2045 = vrot.lane.b32.xlu0 %v2008, 8
  %v2046 = vpop.permute.xlu0 %2045
  %2047 = vrot.lane.b32.xlu0 %v2009, 8
  %v2048 = vpop.permute.xlu0 %2047
  %2049 = vrot.lane.b32.xlu0 %v2010, 8
  %v2050 = vpop.permute.xlu0 %2049
  %2051 = vrot.lane.b32.xlu0 %v2011, 8
  %v2052 = vpop.permute.xlu0 %2051
  %2053 = vrot.lane.b32.xlu0 %v2012, 8
  %v2054 = vpop.permute.xlu0 %2053
  %2055 = vrot.lane.b32.xlu0 %v2013, 8
  %v2056 = vpop.permute.xlu0 %2055
  %2057 = vrot.lane.b32.xlu0 %v2014, 8
  %v2058 = vpop.permute.xlu0 %2057
  %2059 = vrot.lane.b32.xlu0 %v2015, 8
  %v2060 = vpop.permute.xlu0 %2059
  %2061 = vrot.lane.b32.xlu0 %v2016, 8
  %v2062 = vpop.permute.xlu0 %2061
  %2063 = vrot.lane.b32.xlu0 %v2017, 8
  %v2064 = vpop.permute.xlu0 %2063
  %2065 = vrot.lane.b32.xlu0 %v2018, 8
  %v2066 = vpop.permute.xlu0 %2065
  %vm2083 = vcmask 97344
  %2084 = vst.msk [vmem:[#allocation3] sm:$0xff] %vm2083, %v2036
  %2085 = vst.msk [vmem:[#allocation3 + $0x8] sm:$0xff] %vm2083, %v2038
  %2086 = vst.msk [vmem:[#allocation3 + $0x10] sm:$0xff] %vm2083, %v2040
  %2087 = vst.msk [vmem:[#allocation3 + $0x18] sm:$0xff] %vm2083, %v2042
  %2088 = vst.msk [vmem:[#allocation3 + $0x20] sm:$0xff] %vm2083, %v2044
  %2089 = vst.msk [vmem:[#allocation3 + $0x28] sm:$0xff] %vm2083, %v2046
  %2090 = vst.msk [vmem:[#allocation3 + $0x30] sm:$0xff] %vm2083, %v2048
  %2091 = vst.msk [vmem:[#allocation3 + $0x38] sm:$0xff] %vm2083, %v2050
  %2092 = vst.msk [vmem:[#allocation3 + $0x40] sm:$0xff] %vm2083, %v2052
  %2093 = vst.msk [vmem:[#allocation3 + $0x48] sm:$0xff] %vm2083, %v2054
  %2094 = vst.msk [vmem:[#allocation3 + $0x50] sm:$0xff] %vm2083, %v2056
  %2095 = vst.msk [vmem:[#allocation3 + $0x58] sm:$0xff] %vm2083, %v2058
  %2096 = vst.msk [vmem:[#allocation3 + $0x60] sm:$0xff] %vm2083, %v2060
  %2097 = vst.msk [vmem:[#allocation3 + $0x68] sm:$0xff] %vm2083, %v2062
  %2098 = vst.msk [vmem:[#allocation3 + $0x70] sm:$0xff] %vm2083, %v2064
  %2099 = vst.msk [vmem:[#allocation3 + $0x78] sm:$0xff] %vm2083, %v2066
  %v2100 = vld [vmem:[%s1765] sm:$0xff]
  %v2101 = vld [vmem:[%s1765 + $0x10] sm:$0xff]
  %v2102 = vld [vmem:[%s1765 + $0x20] sm:$0xff]
  %v2103 = vld [vmem:[%s1765 + $0x30] sm:$0xff]
  %v2104 = vld [vmem:[%s1765 + $0x40] sm:$0xff]
  %v2105 = vld [vmem:[%s1765 + $0x50] sm:$0xff]
  %v2106 = vld [vmem:[%s1765 + $0x60] sm:$0xff]
  %v2107 = vld [vmem:[%s1765 + $0x70] sm:$0xff]
  %v2108 = vld [vmem:[%s1765 + $0x90] sm:$0xff]
  %v2109 = vld [vmem:[%s1765 + $0xa0] sm:$0xff]
  %v2110 = vld [vmem:[%s1765 + $0xb0] sm:$0xff]
  %v2111 = vld [vmem:[%s1765 + $0xc0] sm:$0xff]
  %v2112 = vld [vmem:[%s1765 + $0xd0] sm:$0xff]
  %v2113 = vld [vmem:[%s1765 + $0xe0] sm:$0xff]
  %v2114 = vld [vmem:[%s1765 + $0xf0] sm:$0xff]
  %v2115 = vld [vmem:[%s1765 + $0x100] sm:$0xff]
  %2132 = vrot.lane.b32.xlu0 %v2100, 12
  %v2133 = vpop.permute.xlu0 %2132
  %2134 = vrot.lane.b32.xlu0 %v2101, 12
  %v2135 = vpop.permute.xlu0 %2134
  %2136 = vrot.lane.b32.xlu0 %v2102, 12
  %v2137 = vpop.permute.xlu0 %2136
  %2138 = vrot.lane.b32.xlu0 %v2103, 12
  %v2139 = vpop.permute.xlu0 %2138
  %2140 = vrot.lane.b32.xlu0 %v2104, 12
  %v2141 = vpop.permute.xlu0 %2140
  %2142 = vrot.lane.b32.xlu0 %v2105, 12
  %v2143 = vpop.permute.xlu0 %2142
  %2144 = vrot.lane.b32.xlu0 %v2106, 12
  %v2145 = vpop.permute.xlu0 %2144
  %2146 = vrot.lane.b32.xlu0 %v2107, 12
  %v2147 = vpop.permute.xlu0 %2146
  %2148 = vrot.lane.b32.xlu0 %v2108, 12
  %v2149 = vpop.permute.xlu0 %2148
  %2150 = vrot.lane.b32.xlu0 %v2109, 12
  %v2151 = vpop.permute.xlu0 %2150
  %2152 = vrot.lane.b32.xlu0 %v2110, 12
  %v2153 = vpop.permute.xlu0 %2152
  %2154 = vrot.lane.b32.xlu0 %v2111, 12
  %v2155 = vpop.permute.xlu0 %2154
  %2156 = vrot.lane.b32.xlu0 %v2112, 12
  %v2157 = vpop.permute.xlu0 %2156
  %2158 = vrot.lane.b32.xlu0 %v2113, 12
  %v2159 = vpop.permute.xlu0 %2158
  %2160 = vrot.lane.b32.xlu0 %v2114, 12
  %v2161 = vpop.permute.xlu0 %2160
  %2162 = vrot.lane.b32.xlu0 %v2115, 12
  %v2163 = vpop.permute.xlu0 %2162
  %vm2180 = vcmask 130144
  %2181 = vst.msk [vmem:[#allocation3] sm:$0xff] %vm2180, %v2133
  %2182 = vst.msk [vmem:[#allocation3 + $0x8] sm:$0xff] %vm2180, %v2135
  %2183 = vst.msk [vmem:[#allocation3 + $0x10] sm:$0xff] %vm2180, %v2137
  %2184 = vst.msk [vmem:[#allocation3 + $0x18] sm:$0xff] %vm2180, %v2139
  %2185 = vst.msk [vmem:[#allocation3 + $0x20] sm:$0xff] %vm2180, %v2141
  %2186 = vst.msk [vmem:[#allocation3 + $0x28] sm:$0xff] %vm2180, %v2143
  %2187 = vst.msk [vmem:[#allocation3 + $0x30] sm:$0xff] %vm2180, %v2145
  %2188 = vst.msk [vmem:[#allocation3 + $0x38] sm:$0xff] %vm2180, %v2147
  %2189 = vst.msk [vmem:[#allocation3 + $0x40] sm:$0xff] %vm2180, %v2149
  %2190 = vst.msk [vmem:[#allocation3 + $0x48] sm:$0xff] %vm2180, %v2151
  %2191 = vst.msk [vmem:[#allocation3 + $0x50] sm:$0xff] %vm2180, %v2153
  %2192 = vst.msk [vmem:[#allocation3 + $0x58] sm:$0xff] %vm2180, %v2155
  %2193 = vst.msk [vmem:[#allocation3 + $0x60] sm:$0xff] %vm2180, %v2157
  %2194 = vst.msk [vmem:[#allocation3 + $0x68] sm:$0xff] %vm2180, %v2159
  %2195 = vst.msk [vmem:[#allocation3 + $0x70] sm:$0xff] %vm2180, %v2161
  %2196 = vst.msk [vmem:[#allocation3 + $0x78] sm:$0xff] %vm2180, %v2163
  %v2197 = vld [vmem:[#allocation2] sm:$0xff]
  %v2198 = vld [vmem:[#allocation2 + $0x10] sm:$0xff]
  %v2199 = vld [vmem:[#allocation2 + $0x20] sm:$0xff]
  %v2200 = vld [vmem:[#allocation2 + $0x30] sm:$0xff]
  %v2201 = vld [vmem:[#allocation2 + $0x40] sm:$0xff]
  %v2202 = vld [vmem:[#allocation2 + $0x50] sm:$0xff]
  %v2203 = vld [vmem:[#allocation2 + $0x60] sm:$0xff]
  %v2204 = vld [vmem:[#allocation2 + $0x70] sm:$0xff]
  %v2205 = vld [vmem:[#allocation2 + $0x90] sm:$0xff]
  %v2206 = vld [vmem:[#allocation2 + $0xa0] sm:$0xff]
  %v2207 = vld [vmem:[#allocation2 + $0xb0] sm:$0xff]
  %v2208 = vld [vmem:[#allocation2 + $0xc0] sm:$0xff]
  %v2209 = vld [vmem:[#allocation2 + $0xd0] sm:$0xff]
  %v2210 = vld [vmem:[#allocation2 + $0xe0] sm:$0xff]
  %v2211 = vld [vmem:[#allocation2 + $0xf0] sm:$0xff]
  %v2212 = vld [vmem:[#allocation2 + $0x100] sm:$0xff]
  %2229 = vrot.lane.b32.xlu0 %v2197, 16
  %v2230 = vpop.permute.xlu0 %2229
  %2231 = vrot.lane.b32.xlu0 %v2198, 16
  %v2232 = vpop.permute.xlu0 %2231
  %2233 = vrot.lane.b32.xlu0 %v2199, 16
  %v2234 = vpop.permute.xlu0 %2233
  %2235 = vrot.lane.b32.xlu0 %v2200, 16
  %v2236 = vpop.permute.xlu0 %2235
  %2237 = vrot.lane.b32.xlu0 %v2201, 16
  %v2238 = vpop.permute.xlu0 %2237
  %2239 = vrot.lane.b32.xlu0 %v2202, 16
  %v2240 = vpop.permute.xlu0 %2239
  %2241 = vrot.lane.b32.xlu0 %v2203, 16
  %v2242 = vpop.permute.xlu0 %2241
  %2243 = vrot.lane.b32.xlu0 %v2204, 16
  %v2244 = vpop.permute.xlu0 %2243
  %2245 = vrot.lane.b32.xlu0 %v2205, 16
  %v2246 = vpop.permute.xlu0 %2245
  %2247 = vrot.lane.b32.xlu0 %v2206, 16
  %v2248 = vpop.permute.xlu0 %2247
  %2249 = vrot.lane.b32.xlu0 %v2207, 16
  %v2250 = vpop.permute.xlu0 %2249
  %2251 = vrot.lane.b32.xlu0 %v2208, 16
  %v2252 = vpop.permute.xlu0 %2251
  %2253 = vrot.lane.b32.xlu0 %v2209, 16
  %v2254 = vpop.permute.xlu0 %2253
  %2255 = vrot.lane.b32.xlu0 %v2210, 16
  %v2256 = vpop.permute.xlu0 %2255
  %2257 = vrot.lane.b32.xlu0 %v2211, 16
  %v2258 = vpop.permute.xlu0 %2257
  %2259 = vrot.lane.b32.xlu0 %v2212, 16
  %v2260 = vpop.permute.xlu0 %2259
  %vm2277 = vcmask 162944
  %2278 = vst.msk [vmem:[#allocation3] sm:$0xff] %vm2277, %v2230
  %2279 = vst.msk [vmem:[#allocation3 + $0x8] sm:$0xff] %vm2277, %v2232
  %2280 = vst.msk [vmem:[#allocation3 + $0x10] sm:$0xff] %vm2277, %v2234
  %2281 = vst.msk [vmem:[#allocation3 + $0x18] sm:$0xff] %vm2277, %v2236
  %2282 = vst.msk [vmem:[#allocation3 + $0x20] sm:$0xff] %vm2277, %v2238
  %2283 = vst.msk [vmem:[#allocation3 + $0x28] sm:$0xff] %vm2277, %v2240
  %2284 = vst.msk [vmem:[#allocation3 + $0x30] sm:$0xff] %vm2277, %v2242
  %2285 = vst.msk [vmem:[#allocation3 + $0x38] sm:$0xff] %vm2277, %v2244
  %2286 = vst.msk [vmem:[#allocation3 + $0x40] sm:$0xff] %vm2277, %v2246
  %2287 = vst.msk [vmem:[#allocation3 + $0x48] sm:$0xff] %vm2277, %v2248
  %2288 = vst.msk [vmem:[#allocation3 + $0x50] sm:$0xff] %vm2277, %v2250
  %2289 = vst.msk [vmem:[#allocation3 + $0x58] sm:$0xff] %vm2277, %v2252
  %2290 = vst.msk [vmem:[#allocation3 + $0x60] sm:$0xff] %vm2277, %v2254
  %2291 = vst.msk [vmem:[#allocation3 + $0x68] sm:$0xff] %vm2277, %v2256
  %2292 = vst.msk [vmem:[#allocation3 + $0x70] sm:$0xff] %vm2277, %v2258
  %2293 = vst.msk [vmem:[#allocation3 + $0x78] sm:$0xff] %vm2277, %v2260
  %v2294 = vld [vmem:[%s1765 + $0x1] sm:$0xff]
  %v2295 = vld [vmem:[%s1765 + $0x11] sm:$0xff]
  %v2296 = vld [vmem:[%s1765 + $0x21] sm:$0xff]
  %v2297 = vld [vmem:[%s1765 + $0x31] sm:$0xff]
  %v2298 = vld [vmem:[%s1765 + $0x41] sm:$0xff]
  %v2299 = vld [vmem:[%s1765 + $0x51] sm:$0xff]
  %v2300 = vld [vmem:[%s1765 + $0x61] sm:$0xff]
  %v2301 = vld [vmem:[%s1765 + $0x71] sm:$0xff]
  %v2302 = vld [vmem:[%s1765 + $0x91] sm:$0xff]
  %v2303 = vld [vmem:[%s1765 + $0xa1] sm:$0xff]
  %v2304 = vld [vmem:[%s1765 + $0xb1] sm:$0xff]
  %v2305 = vld [vmem:[%s1765 + $0xc1] sm:$0xff]
  %v2306 = vld [vmem:[%s1765 + $0xd1] sm:$0xff]
  %v2307 = vld [vmem:[%s1765 + $0xe1] sm:$0xff]
  %v2308 = vld [vmem:[%s1765 + $0xf1] sm:$0xff]
  %v2309 = vld [vmem:[%s1765 + $0x101] sm:$0xff]
  %2326 = vrot.lane.b32.xlu0 %v2294, 20
  %v2327 = vpop.permute.xlu0 %2326
  %2328 = vrot.lane.b32.xlu0 %v2295, 20
  %v2329 = vpop.permute.xlu0 %2328
  %2330 = vrot.lane.b32.xlu0 %v2296, 20
  %v2331 = vpop.permute.xlu0 %2330
  %2332 = vrot.lane.b32.xlu0 %v2297, 20
  %v2333 = vpop.permute.xlu0 %2332
  %2334 = vrot.lane.b32.xlu0 %v2298, 20
  %v2335 = vpop.permute.xlu0 %2334
  %2336 = vrot.lane.b32.xlu0 %v2299, 20
  %v2337 = vpop.permute.xlu0 %2336
  %2338 = vrot.lane.b32.xlu0 %v2300, 20
  %v2339 = vpop.permute.xlu0 %2338
  %2340 = vrot.lane.b32.xlu0 %v2301, 20
  %v2341 = vpop.permute.xlu0 %2340
  %2342 = vrot.lane.b32.xlu0 %v2302, 20
  %v2343 = vpop.permute.xlu0 %2342
  %2344 = vrot.lane.b32.xlu0 %v2303, 20
  %v2345 = vpop.permute.xlu0 %2344
  %2346 = vrot.lane.b32.xlu0 %v2304, 20
  %v2347 = vpop.permute.xlu0 %2346
  %2348 = vrot.lane.b32.xlu0 %v2305, 20
  %v2349 = vpop.permute.xlu0 %2348
  %2350 = vrot.lane.b32.xlu0 %v2306, 20
  %v2351 = vpop.permute.xlu0 %2350
  %2352 = vrot.lane.b32.xlu0 %v2307, 20
  %v2353 = vpop.permute.xlu0 %2352
  %2354 = vrot.lane.b32.xlu0 %v2308, 20
  %v2355 = vpop.permute.xlu0 %2354
  %2356 = vrot.lane.b32.xlu0 %v2309, 20
  %v2357 = vpop.permute.xlu0 %2356
  %vm2374 = vcmask 195744
  %2375 = vst.msk [vmem:[#allocation3] sm:$0xff] %vm2374, %v2327
  %2376 = vst.msk [vmem:[#allocation3 + $0x8] sm:$0xff] %vm2374, %v2329
  %2377 = vst.msk [vmem:[#allocation3 + $0x10] sm:$0xff] %vm2374, %v2331
  %2378 = vst.msk [vmem:[#allocation3 + $0x18] sm:$0xff] %vm2374, %v2333
  %2379 = vst.msk [vmem:[#allocation3 + $0x20] sm:$0xff] %vm2374, %v2335
  %2380 = vst.msk [vmem:[#allocation3 + $0x28] sm:$0xff] %vm2374, %v2337
  %2381 = vst.msk [vmem:[#allocation3 + $0x30] sm:$0xff] %vm2374, %v2339
  %2382 = vst.msk [vmem:[#allocation3 + $0x38] sm:$0xff] %vm2374, %v2341
  %2383 = vst.msk [vmem:[#allocation3 + $0x40] sm:$0xff] %vm2374, %v2343
  %2384 = vst.msk [vmem:[#allocation3 + $0x48] sm:$0xff] %vm2374, %v2345
  %2385 = vst.msk [vmem:[#allocation3 + $0x50] sm:$0xff] %vm2374, %v2347
  %2386 = vst.msk [vmem:[#allocation3 + $0x58] sm:$0xff] %vm2374, %v2349
  %2387 = vst.msk [vmem:[#allocation3 + $0x60] sm:$0xff] %vm2374, %v2351
  %2388 = vst.msk [vmem:[#allocation3 + $0x68] sm:$0xff] %vm2374, %v2353
  %2389 = vst.msk [vmem:[#allocation3 + $0x70] sm:$0xff] %vm2374, %v2355
  %2390 = vst.msk [vmem:[#allocation3 + $0x78] sm:$0xff] %vm2374, %v2357
  %v2391 = vld [vmem:[%s1841] sm:$0xff]
  %v2392 = vld [vmem:[%s1841 + $0x10] sm:$0xff]
  %v2393 = vld [vmem:[%s1841 + $0x20] sm:$0xff]
  %v2394 = vld [vmem:[%s1841 + $0x30] sm:$0xff]
  %v2395 = vld [vmem:[%s1841 + $0x40] sm:$0xff]
  %v2396 = vld [vmem:[%s1841 + $0x50] sm:$0xff]
  %v2397 = vld [vmem:[%s1841 + $0x60] sm:$0xff]
  %v2398 = vld [vmem:[%s1841 + $0x70] sm:$0xff]
  %v2399 = vld [vmem:[%s1841 + $0x90] sm:$0xff]
  %v2400 = vld [vmem:[%s1841 + $0xa0] sm:$0xff]
  %v2401 = vld [vmem:[%s1841 + $0xb0] sm:$0xff]
  %v2402 = vld [vmem:[%s1841 + $0xc0] sm:$0xff]
  %v2403 = vld [vmem:[%s1841 + $0xd0] sm:$0xff]
  %v2404 = vld [vmem:[%s1841 + $0xe0] sm:$0xff]
  %v2405 = vld [vmem:[%s1841 + $0xf0] sm:$0xff]
  %v2406 = vld [vmem:[%s1841 + $0x100] sm:$0xff]
  %2423 = vrot.lane.b32.xlu0 %v2391, 24
  %v2424 = vpop.permute.xlu0 %2423
  %2425 = vrot.lane.b32.xlu0 %v2392, 24
  %v2426 = vpop.permute.xlu0 %2425
  %2427 = vrot.lane.b32.xlu0 %v2393, 24
  %v2428 = vpop.permute.xlu0 %2427
  %2429 = vrot.lane.b32.xlu0 %v2394, 24
  %v2430 = vpop.permute.xlu0 %2429
  %2431 = vrot.lane.b32.xlu0 %v2395, 24
  %v2432 = vpop.permute.xlu0 %2431
  %2433 = vrot.lane.b32.xlu0 %v2396, 24
  %v2434 = vpop.permute.xlu0 %2433
  %2435 = vrot.lane.b32.xlu0 %v2397, 24
  %v2436 = vpop.permute.xlu0 %2435
  %2437 = vrot.lane.b32.xlu0 %v2398, 24
  %v2438 = vpop.permute.xlu0 %2437
  %2439 = vrot.lane.b32.xlu0 %v2399, 24
  %v2440 = vpop.permute.xlu0 %2439
  %2441 = vrot.lane.b32.xlu0 %v2400, 24
  %v2442 = vpop.permute.xlu0 %2441
  %2443 = vrot.lane.b32.xlu0 %v2401, 24
  %v2444 = vpop.permute.xlu0 %2443
  %2445 = vrot.lane.b32.xlu0 %v2402, 24
  %v2446 = vpop.permute.xlu0 %2445
  %2447 = vrot.lane.b32.xlu0 %v2403, 24
  %v2448 = vpop.permute.xlu0 %2447
  %2449 = vrot.lane.b32.xlu0 %v2404, 24
  %v2450 = vpop.permute.xlu0 %2449
  %2451 = vrot.lane.b32.xlu0 %v2405, 24
  %v2452 = vpop.permute.xlu0 %2451
  %2453 = vrot.lane.b32.xlu0 %v2406, 24
  %v2454 = vpop.permute.xlu0 %2453
  %vm2471 = vcmask 228544
  %2472 = vst.msk [vmem:[#allocation3] sm:$0xff] %vm2471, %v2424
  %2473 = vst.msk [vmem:[#allocation3 + $0x8] sm:$0xff] %vm2471, %v2426
  %2474 = vst.msk [vmem:[#allocation3 + $0x10] sm:$0xff] %vm2471, %v2428
  %2475 = vst.msk [vmem:[#allocation3 + $0x18] sm:$0xff] %vm2471, %v2430
  %2476 = vst.msk [vmem:[#allocation3 + $0x20] sm:$0xff] %vm2471, %v2432
  %2477 = vst.msk [vmem:[#allocation3 + $0x28] sm:$0xff] %vm2471, %v2434
  %2478 = vst.msk [vmem:[#allocation3 + $0x30] sm:$0xff] %vm2471, %v2436
  %2479 = vst.msk [vmem:[#allocation3 + $0x38] sm:$0xff] %vm2471, %v2438
  %2480 = vst.msk [vmem:[#allocation3 + $0x40] sm:$0xff] %vm2471, %v2440
  %2481 = vst.msk [vmem:[#allocation3 + $0x48] sm:$0xff] %vm2471, %v2442
  %2482 = vst.msk [vmem:[#allocation3 + $0x50] sm:$0xff] %vm2471, %v2444
  %2483 = vst.msk [vmem:[#allocation3 + $0x58] sm:$0xff] %vm2471, %v2446
  %2484 = vst.msk [vmem:[#allocation3 + $0x60] sm:$0xff] %vm2471, %v2448
  %2485 = vst.msk [vmem:[#allocation3 + $0x68] sm:$0xff] %vm2471, %v2450
  %2486 = vst.msk [vmem:[#allocation3 + $0x70] sm:$0xff] %vm2471, %v2452
  %2487 = vst.msk [vmem:[#allocation3 + $0x78] sm:$0xff] %vm2471, %v2454
  %v2488 = vld [vmem:[%s1803] sm:$0xff]
  %v2489 = vld [vmem:[%s1803 + $0x10] sm:$0xff]
  %v2490 = vld [vmem:[%s1803 + $0x20] sm:$0xff]
  %v2491 = vld [vmem:[%s1803 + $0x30] sm:$0xff]
  %v2492 = vld [vmem:[%s1803 + $0x40] sm:$0xff]
  %v2493 = vld [vmem:[%s1803 + $0x50] sm:$0xff]
  %v2494 = vld [vmem:[%s1803 + $0x60] sm:$0xff]
  %v2495 = vld [vmem:[%s1803 + $0x70] sm:$0xff]
  %v2496 = vld [vmem:[%s1803 + $0x90] sm:$0xff]
  %v2497 = vld [vmem:[%s1803 + $0xa0] sm:$0xff]
  %v2498 = vld [vmem:[%s1803 + $0xb0] sm:$0xff]
  %v2499 = vld [vmem:[%s1803 + $0xc0] sm:$0xff]
  %v2500 = vld [vmem:[%s1803 + $0xd0] sm:$0xff]
  %v2501 = vld [vmem:[%s1803 + $0xe0] sm:$0xff]
  %v2502 = vld [vmem:[%s1803 + $0xf0] sm:$0xff]
  %v2503 = vld [vmem:[%s1803 + $0x100] sm:$0xff]
  %2520 = vrot.lane.b32.xlu0 %v2488, 28
  %v2521 = vpop.permute.xlu0 %2520
  %2522 = vrot.lane.b32.xlu0 %v2489, 28
  %v2523 = vpop.permute.xlu0 %2522
  %2524 = vrot.lane.b32.xlu0 %v2490, 28
  %v2525 = vpop.permute.xlu0 %2524
  %2526 = vrot.lane.b32.xlu0 %v2491, 28
  %v2527 = vpop.permute.xlu0 %2526
  %2528 = vrot.lane.b32.xlu0 %v2492, 28
  %v2529 = vpop.permute.xlu0 %2528
  %2530 = vrot.lane.b32.xlu0 %v2493, 28
  %v2531 = vpop.permute.xlu0 %2530
  %2532 = vrot.lane.b32.xlu0 %v2494, 28
  %v2533 = vpop.permute.xlu0 %2532
  %2534 = vrot.lane.b32.xlu0 %v2495, 28
  %v2535 = vpop.permute.xlu0 %2534
  %2536 = vrot.lane.b32.xlu0 %v2496, 28
  %v2537 = vpop.permute.xlu0 %2536
  %2538 = vrot.lane.b32.xlu0 %v2497, 28
  %v2539 = vpop.permute.xlu0 %2538
  %2540 = vrot.lane.b32.xlu0 %v2498, 28
  %v2541 = vpop.permute.xlu0 %2540
  %2542 = vrot.lane.b32.xlu0 %v2499, 28
  %v2543 = vpop.permute.xlu0 %2542
  %2544 = vrot.lane.b32.xlu0 %v2500, 28
  %v2545 = vpop.permute.xlu0 %2544
  %2546 = vrot.lane.b32.xlu0 %v2501, 28
  %v2547 = vpop.permute.xlu0 %2546
  %2548 = vrot.lane.b32.xlu0 %v2502, 28
  %v2549 = vpop.permute.xlu0 %2548
  %2550 = vrot.lane.b32.xlu0 %v2503, 28
  %v2551 = vpop.permute.xlu0 %2550
  %vm2568 = vcmask 261344
  %2569 = vst.msk [vmem:[#allocation3] sm:$0xff] %vm2568, %v2521
  %2570 = vst.msk [vmem:[#allocation3 + $0x8] sm:$0xff] %vm2568, %v2523
  %2571 = vst.msk [vmem:[#allocation3 + $0x10] sm:$0xff] %vm2568, %v2525
  %2572 = vst.msk [vmem:[#allocation3 + $0x18] sm:$0xff] %vm2568, %v2527
  %2573 = vst.msk [vmem:[#allocation3 + $0x20] sm:$0xff] %vm2568, %v2529
  %2574 = vst.msk [vmem:[#allocation3 + $0x28] sm:$0xff] %vm2568, %v2531
  %2575 = vst.msk [vmem:[#allocation3 + $0x30] sm:$0xff] %vm2568, %v2533
  %2576 = vst.msk [vmem:[#allocation3 + $0x38] sm:$0xff] %vm2568, %v2535
  %2577 = vst.msk [vmem:[#allocation3 + $0x40] sm:$0xff] %vm2568, %v2537
  %2578 = vst.msk [vmem:[#allocation3 + $0x48] sm:$0xff] %vm2568, %v2539
  %2579 = vst.msk [vmem:[#allocation3 + $0x50] sm:$0xff] %vm2568, %v2541
  %2580 = vst.msk [vmem:[#allocation3 + $0x58] sm:$0xff] %vm2568, %v2543
  %2581 = vst.msk [vmem:[#allocation3 + $0x60] sm:$0xff] %vm2568, %v2545
  %2582 = vst.msk [vmem:[#allocation3 + $0x68] sm:$0xff] %vm2568, %v2547
  %2583 = vst.msk [vmem:[#allocation3 + $0x70] sm:$0xff] %vm2568, %v2549
  %2584 = vst.msk [vmem:[#allocation3 + $0x78] sm:$0xff] %vm2568, %v2551
  %v2585 = vld [vmem:[%s1841 + $0x1] sm:$0xff]
  %v2586 = vld [vmem:[%s1841 + $0x11] sm:$0xff]
  %v2587 = vld [vmem:[%s1841 + $0x21] sm:$0xff]
  %v2588 = vld [vmem:[%s1841 + $0x31] sm:$0xff]
  %v2589 = vld [vmem:[%s1841 + $0x41] sm:$0xff]
  %v2590 = vld [vmem:[%s1841 + $0x51] sm:$0xff]
  %v2591 = vld [vmem:[%s1841 + $0x61] sm:$0xff]
  %v2592 = vld [vmem:[%s1841 + $0x71] sm:$0xff]
  %v2593 = vld [vmem:[%s1841 + $0x91] sm:$0xff]
  %v2594 = vld [vmem:[%s1841 + $0xa1] sm:$0xff]
  %v2595 = vld [vmem:[%s1841 + $0xb1] sm:$0xff]
  %v2596 = vld [vmem:[%s1841 + $0xc1] sm:$0xff]
  %v2597 = vld [vmem:[%s1841 + $0xd1] sm:$0xff]
  %v2598 = vld [vmem:[%s1841 + $0xe1] sm:$0xff]
  %v2599 = vld [vmem:[%s1841 + $0xf1] sm:$0xff]
  %v2600 = vld [vmem:[%s1841 + $0x101] sm:$0xff]
  %2617 = vrot.lane.b32.xlu0 %v2585, 32
  %v2618 = vpop.permute.xlu0 %2617
  %2619 = vrot.lane.b32.xlu0 %v2586, 32
  %v2620 = vpop.permute.xlu0 %2619
  %2621 = vrot.lane.b32.xlu0 %v2587, 32
  %v2622 = vpop.permute.xlu0 %2621
  %2623 = vrot.lane.b32.xlu0 %v2588, 32
  %v2624 = vpop.permute.xlu0 %2623
  %2625 = vrot.lane.b32.xlu0 %v2589, 32
  %v2626 = vpop.permute.xlu0 %2625
  %2627 = vrot.lane.b32.xlu0 %v2590, 32
  %v2628 = vpop.permute.xlu0 %2627
  %2629 = vrot.lane.b32.xlu0 %v2591, 32
  %v2630 = vpop.permute.xlu0 %2629
  %2631 = vrot.lane.b32.xlu0 %v2592, 32
  %v2632 = vpop.permute.xlu0 %2631
  %2633 = vrot.lane.b32.xlu0 %v2593, 32
  %v2634 = vpop.permute.xlu0 %2633
  %2635 = vrot.lane.b32.xlu0 %v2594, 32
  %v2636 = vpop.permute.xlu0 %2635
  %2637 = vrot.lane.b32.xlu0 %v2595, 32
  %v2638 = vpop.permute.xlu0 %2637
  %2639 = vrot.lane.b32.xlu0 %v2596, 32
  %v2640 = vpop.permute.xlu0 %2639
  %2641 = vrot.lane.b32.xlu0 %v2597, 32
  %v2642 = vpop.permute.xlu0 %2641
  %2643 = vrot.lane.b32.xlu0 %v2598, 32
  %v2644 = vpop.permute.xlu0 %2643
  %2645 = vrot.lane.b32.xlu0 %v2599, 32
  %v2646 = vpop.permute.xlu0 %2645
  %2647 = vrot.lane.b32.xlu0 %v2600, 32
  %v2648 = vpop.permute.xlu0 %2647
  %vm2665 = vcmask 294144
  %2666 = vst.msk [vmem:[#allocation3] sm:$0xff] %vm2665, %v2618
  %2667 = vst.msk [vmem:[#allocation3 + $0x8] sm:$0xff] %vm2665, %v2620
  %2668 = vst.msk [vmem:[#allocation3 + $0x10] sm:$0xff] %vm2665, %v2622
  %2669 = vst.msk [vmem:[#allocation3 + $0x18] sm:$0xff] %vm2665, %v2624
  %2670 = vst.msk [vmem:[#allocation3 + $0x20] sm:$0xff] %vm2665, %v2626
  %2671 = vst.msk [vmem:[#allocation3 + $0x28] sm:$0xff] %vm2665, %v2628
  %2672 = vst.msk [vmem:[#allocation3 + $0x30] sm:$0xff] %vm2665, %v2630
  %2673 = vst.msk [vmem:[#allocation3 + $0x38] sm:$0xff] %vm2665, %v2632
  %2674 = vst.msk [vmem:[#allocation3 + $0x40] sm:$0xff] %vm2665, %v2634
  %2675 = vst.msk [vmem:[#allocation3 + $0x48] sm:$0xff] %vm2665, %v2636
  %2676 = vst.msk [vmem:[#allocation3 + $0x50] sm:$0xff] %vm2665, %v2638
  %2677 = vst.msk [vmem:[#allocation3 + $0x58] sm:$0xff] %vm2665, %v2640
  %2678 = vst.msk [vmem:[#allocation3 + $0x60] sm:$0xff] %vm2665, %v2642
  %2679 = vst.msk [vmem:[#allocation3 + $0x68] sm:$0xff] %vm2665, %v2644
  %2680 = vst.msk [vmem:[#allocation3 + $0x70] sm:$0xff] %vm2665, %v2646
  %2681 = vst.msk [vmem:[#allocation3 + $0x78] sm:$0xff] %vm2665, %v2648
  %v2682 = vld [vmem:[#allocation3] sm:$0xff]
  %v2683 = vld [vmem:[#allocation3 + $0x8] sm:$0xff]
  %v2684 = vld [vmem:[#allocation3 + $0x10] sm:$0xff]
  %v2685 = vld [vmem:[#allocation3 + $0x18] sm:$0xff]
  %v2686 = vld [vmem:[#allocation3 + $0x20] sm:$0xff]
  %v2687 = vld [vmem:[#allocation3 + $0x28] sm:$0xff]
  %v2688 = vld [vmem:[#allocation3 + $0x30] sm:$0xff]
  %v2689 = vld [vmem:[#allocation3 + $0x38] sm:$0xff]
  %v2690 = vld [vmem:[#allocation3 + $0x40] sm:$0xff]
  %v2691 = vld [vmem:[#allocation3 + $0x48] sm:$0xff]
  %v2692 = vld [vmem:[#allocation3 + $0x50] sm:$0xff]
  %v2693 = vld [vmem:[#allocation3 + $0x58] sm:$0xff]
  %v2694 = vld [vmem:[#allocation3 + $0x60] sm:$0xff]
  %v2695 = vld [vmem:[#allocation3 + $0x68] sm:$0xff]
  %v2696 = vld [vmem:[#allocation3 + $0x70] sm:$0xff]
  %v2697 = vld [vmem:[#allocation3 + $0x78] sm:$0xff]
  %v2698 = vpack.c.bf16 %v2683, %v2682
  %v2699 = vpack.c.bf16 %v2685, %v2684
  %v2700 = vpack.c.bf16 %v2687, %v2686
  %v2701 = vpack.c.bf16 %v2689, %v2688
  %v2702 = vpack.c.bf16 %v2691, %v2690
  %v2703 = vpack.c.bf16 %v2693, %v2692
  %v2704 = vpack.c.bf16 %v2695, %v2694
  %v2705 = vpack.c.bf16 %v2697, %v2696
  %v2706 = vperm.slane %v87, 5
  %v2712 = vunpack.c.l.b16 %v80
  %v2713 = vunpack.c.l.b16 %v81
  %v2714 = vunpack.c.l.b16 %v82
  %v2715 = vunpack.c.l.b16 %v83
  %v2716 = vunpack.c.l.b16 %v84
  %v2717 = vpack.c.b16 %v2713, %v2712
  %v2718 = vpack.c.b16 %v2715, %v2714
  %v2719 = vpack.c.b16 %v2716, %v2716
  %vm2722 = vcmask 293888
  %v2724 = vsel %vm2722, %v2698, 0
  %v2727 = vsel %vm2722, %v2699, 0
  %v2730 = vsel %vm2722, %v2700, 0
  %v2733 = vsel %vm2722, %v2701, 0
  %v2736 = vsel %vm2722, %v2702, 0
  %v2739 = vsel %vm2722, %v2703, 0
  %v2742 = vsel %vm2722, %v2704, 0
  %v2745 = vsel %vm2722, %v2705, 0
  %v2748 = vsel %vm884, %v2719, 0
  %2750 = vmatpush.bf16.msra.mxu0 0
  %2751 = vmatpush.bf16.msra.mxu0 0
  %2752 = vmatpush.bf16.msra.mxu0 0
  %2753 = vmatpush.bf16.msra.mxu0 0
  %2754 = vmatpush.bf16.msra.mxu0 0
  %2755 = vmatpush.bf16.msra.mxu0 %v2748
  %2756 = vmatpush.bf16.msra.mxu0 %v2718
  %2757 = vmatpush.bf16.msra.mxu0 %v2717
  %2758 = vmatmul.bf16.gmra.mxu0 %v2724
  %v2759 = vpop.f32.mrf.mxu0
  %v2760 = vadd.f32 %v2706, %v2759
  %v2761 = vpop.f32.mrf.mxu0
  %v2762 = vadd.f32 %v2706, %v2761
  %2763 = vmatmul.bf16.gmra.mxu0 %v2727
  %v2764 = vpop.f32.mrf.mxu0
  %v2765 = vadd.f32 %v2706, %v2764
  %v2766 = vpop.f32.mrf.mxu0
  %v2767 = vadd.f32 %v2706, %v2766
  %2768 = vmatmul.bf16.gmra.mxu0 %v2730
  %v2769 = vpop.f32.mrf.mxu0
  %v2770 = vadd.f32 %v2706, %v2769
  %v2771 = vpop.f32.mrf.mxu0
  %v2772 = vadd.f32 %v2706, %v2771
  %2773 = vmatmul.bf16.gmra.mxu0 %v2733
  %v2774 = vpop.f32.mrf.mxu0
  %v2775 = vadd.f32 %v2706, %v2774
  %v2776 = vpop.f32.mrf.mxu0
  %v2777 = vadd.f32 %v2706, %v2776
  %2778 = vmatmul.bf16.gmra.mxu0 %v2736
  %v2779 = vpop.f32.mrf.mxu0
  %v2780 = vadd.f32 %v2706, %v2779
  %v2781 = vpop.f32.mrf.mxu0
  %v2782 = vadd.f32 %v2706, %v2781
  %2783 = vmatmul.bf16.gmra.mxu0 %v2739
  %v2784 = vpop.f32.mrf.mxu0
  %v2785 = vadd.f32 %v2706, %v2784
  %v2786 = vpop.f32.mrf.mxu0
  %v2787 = vadd.f32 %v2706, %v2786
  %2788 = vmatmul.bf16.gmra.mxu0 %v2742
  %v2789 = vpop.f32.mrf.mxu0
  %v2790 = vadd.f32 %v2706, %v2789
  %v2791 = vpop.f32.mrf.mxu0
  %v2792 = vadd.f32 %v2706, %v2791
  %2793 = vmatmul.bf16.gmra.mxu0 %v2745
  %v2794 = vpop.f32.mrf.mxu0
  %v2795 = vadd.f32 %v2706, %v2794
  %v2796 = vpop.f32.mrf.mxu0
  %v2797 = vadd.f32 %v2706, %v2796
  %2798 = vdwg.mxu0
  %v2799 = vsel %vm89, %v2760, 0.0
  %v2800 = vsel %vm89, %v2762, 0.0
  %v2801 = vadd.f32 %v2799, %v2800
  %v2802 = vsel %vm89, %v2765, 0.0
  %v2803 = vadd.f32 %v2801, %v2802
  %v2804 = vsel %vm89, %v2767, 0.0
  %v2805 = vadd.f32 %v2803, %v2804
  %v2806 = vsel %vm89, %v2770, 0.0
  %v2807 = vadd.f32 %v2805, %v2806
  %v2808 = vsel %vm89, %v2772, 0.0
  %v2809 = vadd.f32 %v2807, %v2808
  %v2810 = vsel %vm89, %v2775, 0.0
  %v2811 = vadd.f32 %v2809, %v2810
  %v2812 = vsel %vm89, %v2777, 0.0
  %v2813 = vadd.f32 %v2811, %v2812
  %v2814 = vsel %vm89, %v2780, 0.0
  %v2815 = vadd.f32 %v2813, %v2814
  %v2816 = vsel %vm89, %v2782, 0.0
  %v2817 = vadd.f32 %v2815, %v2816
  %v2818 = vsel %vm89, %v2785, 0.0
  %v2819 = vadd.f32 %v2817, %v2818
  %v2820 = vsel %vm89, %v2787, 0.0
  %v2821 = vadd.f32 %v2819, %v2820
  %v2822 = vsel %vm89, %v2790, 0.0
  %v2823 = vadd.f32 %v2821, %v2822
  %v2824 = vsel %vm89, %v2792, 0.0
  %v2825 = vadd.f32 %v2823, %v2824
  %v2826 = vsel %vm89, %v2795, 0.0
  %v2827 = vadd.f32 %v2825, %v2826
  %v2828 = vsel %vm89, %v2797, 0.0
  %v2829 = vadd.f32 %v2827, %v2828
  %v2830 = vrot.slane %v2829, 4
  %v2831 = vadd.f32 %v2829, %v2830
  %v2832 = vrot.slane %v2831, 2
  %v2833 = vadd.f32 %v2831, %v2832
  %v2834 = vrot.slane %v2833, 1
  %v2835 = vadd.f32 %v2833, %v2834
  %v2836 = vmul.f32 %v2835, 0.0078125
  %v2837 = vsub.f32 %v2760, %v2836
  %v2838 = vsub.f32 %v2762, %v2836
  %v2839 = vsub.f32 %v2765, %v2836
  %v2840 = vsub.f32 %v2767, %v2836
  %v2841 = vsub.f32 %v2770, %v2836
  %v2842 = vsub.f32 %v2772, %v2836
  %v2843 = vsub.f32 %v2775, %v2836
  %v2844 = vsub.f32 %v2777, %v2836
  %v2845 = vsub.f32 %v2780, %v2836
  %v2846 = vsub.f32 %v2782, %v2836
  %v2847 = vsub.f32 %v2785, %v2836
  %v2848 = vsub.f32 %v2787, %v2836
  %v2849 = vsub.f32 %v2790, %v2836
  %v2850 = vsub.f32 %v2792, %v2836
  %v2851 = vsub.f32 %v2795, %v2836
  %v2852 = vsub.f32 %v2797, %v2836
  %v2853 = vmul.f32 %v2837, %v2837
  %v2854 = vmul.f32 %v2838, %v2838
  %v2855 = vmul.f32 %v2839, %v2839
  %v2856 = vmul.f32 %v2840, %v2840
  %v2857 = vmul.f32 %v2841, %v2841
  %v2858 = vmul.f32 %v2842, %v2842
  %v2859 = vmul.f32 %v2843, %v2843
  %v2860 = vmul.f32 %v2844, %v2844
  %v2861 = vmul.f32 %v2845, %v2845
  %v2862 = vmul.f32 %v2846, %v2846
  %v2863 = vmul.f32 %v2847, %v2847
  %v2864 = vmul.f32 %v2848, %v2848
  %v2865 = vmul.f32 %v2849, %v2849
  %v2866 = vmul.f32 %v2850, %v2850
  %v2867 = vmul.f32 %v2851, %v2851
  %v2868 = vmul.f32 %v2852, %v2852
  %v2869 = vsel %vm89, %v2853, 0.0
  %v2870 = vsel %vm89, %v2854, 0.0
  %v2871 = vadd.f32 %v2869, %v2870
  %v2872 = vsel %vm89, %v2855, 0.0
  %v2873 = vadd.f32 %v2871, %v2872
  %v2874 = vsel %vm89, %v2856, 0.0
  %v2875 = vadd.f32 %v2873, %v2874
  %v2876 = vsel %vm89, %v2857, 0.0
  %v2877 = vadd.f32 %v2875, %v2876
  %v2878 = vsel %vm89, %v2858, 0.0
  %v2879 = vadd.f32 %v2877, %v2878
  %v2880 = vsel %vm89, %v2859, 0.0
  %v2881 = vadd.f32 %v2879, %v2880
  %v2882 = vsel %vm89, %v2860, 0.0
  %v2883 = vadd.f32 %v2881, %v2882
  %v2884 = vsel %vm89, %v2861, 0.0
  %v2885 = vadd.f32 %v2883, %v2884
  %v2886 = vsel %vm89, %v2862, 0.0
  %v2887 = vadd.f32 %v2885, %v2886
  %v2888 = vsel %vm89, %v2863, 0.0
  %v2889 = vadd.f32 %v2887, %v2888
  %v2890 = vsel %vm89, %v2864, 0.0
  %v2891 = vadd.f32 %v2889, %v2890
  %v2892 = vsel %vm89, %v2865, 0.0
  %v2893 = vadd.f32 %v2891, %v2892
  %v2894 = vsel %vm89, %v2866, 0.0
  %v2895 = vadd.f32 %v2893, %v2894
  %v2896 = vsel %vm89, %v2867, 0.0
  %v2897 = vadd.f32 %v2895, %v2896
  %v2898 = vsel %vm89, %v2868, 0.0
  %v2899 = vadd.f32 %v2897, %v2898
  %v2900 = vrot.slane %v2899, 4
  %v2901 = vadd.f32 %v2899, %v2900
  %v2902 = vrot.slane %v2901, 2
  %v2903 = vadd.f32 %v2901, %v2902
  %v2904 = vrot.slane %v2903, 1
  %v2905 = vadd.f32 %v2903, %v2904
  %v2906 = vmul.f32 %v2905, 0.0078125
  %v2907 = vadd.f32 %v2906, 1e-05
  %v2908 = vrsqrt.pop %v2907
  %v2909 = vmul.f32 %v2908, %v2907
  %v2910 = vmul.f32 %v2909, %v2908
  %v2911 = vmul.f32 0.5, %v2910
  %v2912 = vsub.f32 1.5, %v2911
  %v2913 = vmul.f32 %v2908, %v2912
  %vm2914 = vweird.f32 %v2907
  %vm2915 = vweird.f32 %v2908
  %vm2916 = vmor %vm2914, %vm2915
  %v2917 = vsel %vm2916, %v2908, %v2913
  %v2918 = vmul.f32 %v2837, %v2917
  %v2919 = vmul.f32 %v2838, %v2917
  %v2920 = vmul.f32 %v2839, %v2917
  %v2921 = vmul.f32 %v2840, %v2917
  %v2922 = vmul.f32 %v2841, %v2917
  %v2923 = vmul.f32 %v2842, %v2917
  %v2924 = vmul.f32 %v2843, %v2917
  %v2925 = vmul.f32 %v2844, %v2917
  %v2926 = vmul.f32 %v2845, %v2917
  %v2927 = vmul.f32 %v2846, %v2917
  %v2928 = vmul.f32 %v2847, %v2917
  %v2929 = vmul.f32 %v2848, %v2917
  %v2930 = vmul.f32 %v2849, %v2917
  %v2931 = vmul.f32 %v2850, %v2917
  %v2932 = vmul.f32 %v2851, %v2917
  %v2933 = vmul.f32 %v2852, %v2917
  %v2934 = vperm.slane %v87, 6
  %v2935 = vmul.f32 %v2918, %v2934
  %v2936 = vmul.f32 %v2919, %v2934
  %v2937 = vmul.f32 %v2920, %v2934
  %v2938 = vmul.f32 %v2921, %v2934
  %v2939 = vmul.f32 %v2922, %v2934
  %v2940 = vmul.f32 %v2923, %v2934
  %v2941 = vmul.f32 %v2924, %v2934
  %v2942 = vmul.f32 %v2925, %v2934
  %v2943 = vmul.f32 %v2926, %v2934
  %v2944 = vmul.f32 %v2927, %v2934
  %v2945 = vmul.f32 %v2928, %v2934
  %v2946 = vmul.f32 %v2929, %v2934
  %v2947 = vmul.f32 %v2930, %v2934
  %v2948 = vmul.f32 %v2931, %v2934
  %v2949 = vmul.f32 %v2932, %v2934
  %v2950 = vmul.f32 %v2933, %v2934
  %v2951 = vperm.slane %v87, 7
  %v2952 = vadd.f32 %v2935, %v2951
  %v2953 = vadd.f32 %v2936, %v2951
  %v2954 = vadd.f32 %v2937, %v2951
  %v2955 = vadd.f32 %v2938, %v2951
  %v2956 = vadd.f32 %v2939, %v2951
  %v2957 = vadd.f32 %v2940, %v2951
  %v2958 = vadd.f32 %v2941, %v2951
  %v2959 = vadd.f32 %v2942, %v2951
  %v2960 = vadd.f32 %v2943, %v2951
  %v2961 = vadd.f32 %v2944, %v2951
  %v2962 = vadd.f32 %v2945, %v2951
  %v2963 = vadd.f32 %v2946, %v2951
  %v2964 = vadd.f32 %v2947, %v2951
  %v2965 = vadd.f32 %v2948, %v2951
  %v2966 = vadd.f32 %v2949, %v2951
  %v2967 = vadd.f32 %v2950, %v2951
  %v2968 = vmax.f32 %v2952, 0.0
  %v2969 = vmax.f32 %v2953, 0.0
  %v2970 = vmax.f32 %v2954, 0.0
  %v2971 = vmax.f32 %v2955, 0.0
  %v2972 = vmax.f32 %v2956, 0.0
  %v2973 = vmax.f32 %v2957, 0.0
  %v2974 = vmax.f32 %v2958, 0.0
  %v2975 = vmax.f32 %v2959, 0.0
  %v2976 = vmax.f32 %v2960, 0.0
  %v2977 = vmax.f32 %v2961, 0.0
  %v2978 = vmax.f32 %v2962, 0.0
  %v2979 = vmax.f32 %v2963, 0.0
  %v2980 = vmax.f32 %v2964, 0.0
  %v2981 = vmax.f32 %v2965, 0.0
  %v2982 = vmax.f32 %v2966, 0.0
  %v2983 = vmax.f32 %v2967, 0.0
  %v2984 = vpack.c.bf16 %v2969, %v2968
  %v2985 = vpack.c.bf16 %v2971, %v2970
  %v2986 = vpack.c.bf16 %v2973, %v2972
  %v2987 = vpack.c.bf16 %v2975, %v2974
  %v2988 = vpack.c.bf16 %v2977, %v2976
  %v2989 = vpack.c.bf16 %v2979, %v2978
  %v2990 = vpack.c.bf16 %v2981, %v2980
  %v2991 = vpack.c.bf16 %v2983, %v2982
  %v2992 = vperm.slane %v88, 0
  %v2994 = vsel %vm89, %v2984, 0
  %v2997 = vsel %vm89, %v2985, 0
  %v3000 = vsel %vm89, %v2986, 0
  %v3003 = vsel %vm89, %v2987, 0
  %v3006 = vsel %vm89, %v2988, 0
  %v3009 = vsel %vm89, %v2989, 0
  %v3012 = vsel %vm89, %v2990, 0
  %v3015 = vsel %vm89, %v2991, 0
  %v3018 = vsel %vm884, %v85, 0
  %3020 = vmatpush.bf16.msra.mxu0 0
  %3021 = vmatpush.bf16.msra.mxu0 0
  %3022 = vmatpush.bf16.msra.mxu0 0
  %3023 = vmatpush.bf16.msra.mxu0 0
  %3024 = vmatpush.bf16.msra.mxu0 0
  %3025 = vmatpush.bf16.msra.mxu0 0
  %3026 = vmatpush.bf16.msra.mxu0 0
  %3027 = vmatpush.bf16.msra.mxu0 %v3018
  %3028 = vmatmul.bf16.gmra.mxu0 %v2994
  %v3029 = vpop.f32.mrf.mxu0
  %v3030 = vadd.f32 %v2992, %v3029
  %v3031 = vpop.f32.mrf.mxu0
  %v3032 = vadd.f32 %v2992, %v3031
  %3033 = vmatmul.bf16.gmra.mxu0 %v2997
  %v3034 = vpop.f32.mrf.mxu0
  %v3035 = vadd.f32 %v2992, %v3034
  %v3036 = vpop.f32.mrf.mxu0
  %v3037 = vadd.f32 %v2992, %v3036
  %3038 = vmatmul.bf16.gmra.mxu0 %v3000
  %v3039 = vpop.f32.mrf.mxu0
  %v3040 = vadd.f32 %v2992, %v3039
  %v3041 = vpop.f32.mrf.mxu0
  %v3042 = vadd.f32 %v2992, %v3041
  %3043 = vmatmul.bf16.gmra.mxu0 %v3003
  %v3044 = vpop.f32.mrf.mxu0
  %v3045 = vadd.f32 %v2992, %v3044
  %v3046 = vpop.f32.mrf.mxu0
  %v3047 = vadd.f32 %v2992, %v3046
  %3048 = vmatmul.bf16.gmra.mxu0 %v3006
  %v3049 = vpop.f32.mrf.mxu0
  %v3050 = vadd.f32 %v2992, %v3049
  %v3051 = vpop.f32.mrf.mxu0
  %v3052 = vadd.f32 %v2992, %v3051
  %3053 = vmatmul.bf16.gmra.mxu0 %v3009
  %v3054 = vpop.f32.mrf.mxu0
  %v3055 = vadd.f32 %v2992, %v3054
  %v3056 = vpop.f32.mrf.mxu0
  %v3057 = vadd.f32 %v2992, %v3056
  %3058 = vmatmul.bf16.gmra.mxu0 %v3012
  %v3059 = vpop.f32.mrf.mxu0
  %v3060 = vadd.f32 %v2992, %v3059
  %v3061 = vpop.f32.mrf.mxu0
  %v3062 = vadd.f32 %v2992, %v3061
  %3063 = vmatmul.bf16.gmra.mxu0 %v3015
  %v3064 = vpop.f32.mrf.mxu0
  %v3065 = vadd.f32 %v2992, %v3064
  %v3066 = vpop.f32.mrf.mxu0
  %v3067 = vadd.f32 %v2992, %v3066
  %3068 = vdwg.mxu0
  %v3069 = vpack.c.bf16 %v16, %v15
  %v3070 = vpack.c.bf16 %v18, %v17
  %v3071 = vpack.c.bf16 %v20, %v19
  %v3072 = vpack.c.bf16 %v22, %v21
  %v3073 = vpack.c.bf16 %v24, %v23
  %v3074 = vpack.c.bf16 %v26, %v25
  %v3075 = vpack.c.bf16 %v28, %v27
  %v3076 = vpack.c.bf16 %v30, %v29
  %v3077 = vperm.slane %v88, 1
  %v3079 = vsel %vm89, %v3069, 0
  %v3082 = vsel %vm89, %v3070, 0
  %v3085 = vsel %vm89, %v3071, 0
  %v3088 = vsel %vm89, %v3072, 0
  %v3091 = vsel %vm89, %v3073, 0
  %v3094 = vsel %vm89, %v3074, 0
  %v3097 = vsel %vm89, %v3075, 0
  %v3100 = vsel %vm89, %v3076, 0
  %v3103 = vsel %vm884, %v86, 0
  %3105 = vmatpush.bf16.msra.mxu0 0
  %3106 = vmatpush.bf16.msra.mxu0 0
  %3107 = vmatpush.bf16.msra.mxu0 0
  %3108 = vmatpush.bf16.msra.mxu0 0
  %3109 = vmatpush.bf16.msra.mxu0 0
  %3110 = vmatpush.bf16.msra.mxu0 0
  %3111 = vmatpush.bf16.msra.mxu0 0
  %3112 = vmatpush.bf16.msra.mxu0 %v3103
  %3113 = vmatmul.bf16.gmra.mxu0 %v3079
  %v3114 = vpop.f32.mrf.mxu0
  %v3115 = vadd.f32 %v3077, %v3114
  %v3116 = vpop.f32.mrf.mxu0
  %v3117 = vadd.f32 %v3077, %v3116
  %3118 = vmatmul.bf16.gmra.mxu0 %v3082
  %v3119 = vpop.f32.mrf.mxu0
  %v3120 = vadd.f32 %v3077, %v3119
  %v3121 = vpop.f32.mrf.mxu0
  %v3122 = vadd.f32 %v3077, %v3121
  %3123 = vmatmul.bf16.gmra.mxu0 %v3085
  %v3124 = vpop.f32.mrf.mxu0
  %v3125 = vadd.f32 %v3077, %v3124
  %v3126 = vpop.f32.mrf.mxu0
  %v3127 = vadd.f32 %v3077, %v3126
  %3128 = vmatmul.bf16.gmra.mxu0 %v3088
  %v3129 = vpop.f32.mrf.mxu0
  %v3130 = vadd.f32 %v3077, %v3129
  %v3131 = vpop.f32.mrf.mxu0
  %v3132 = vadd.f32 %v3077, %v3131
  %3133 = vmatmul.bf16.gmra.mxu0 %v3091
  %v3134 = vpop.f32.mrf.mxu0
  %v3135 = vadd.f32 %v3077, %v3134
  %v3136 = vpop.f32.mrf.mxu0
  %v3137 = vadd.f32 %v3077, %v3136
  %3138 = vmatmul.bf16.gmra.mxu0 %v3094
  %v3139 = vpop.f32.mrf.mxu0
  %v3140 = vadd.f32 %v3077, %v3139
  %v3141 = vpop.f32.mrf.mxu0
  %v3142 = vadd.f32 %v3077, %v3141
  %3143 = vmatmul.bf16.gmra.mxu0 %v3097
  %v3144 = vpop.f32.mrf.mxu0
  %v3145 = vadd.f32 %v3077, %v3144
  %v3146 = vpop.f32.mrf.mxu0
  %v3147 = vadd.f32 %v3077, %v3146
  %3148 = vmatmul.bf16.gmra.mxu0 %v3100
  %v3149 = vpop.f32.mrf.mxu0
  %v3150 = vadd.f32 %v3077, %v3149
  %v3151 = vpop.f32.mrf.mxu0
  %v3152 = vadd.f32 %v3077, %v3151
  %3153 = vdwg.mxu0
  %v3154 = vadd.f32 %v3030, %v3115
  %v3155 = vadd.f32 %v3032, %v3117
  %v3156 = vadd.f32 %v3035, %v3120
  %v3157 = vadd.f32 %v3037, %v3122
  %v3158 = vadd.f32 %v3040, %v3125
  %v3159 = vadd.f32 %v3042, %v3127
  %v3160 = vadd.f32 %v3045, %v3130
  %v3161 = vadd.f32 %v3047, %v3132
  %v3162 = vadd.f32 %v3050, %v3135
  %v3163 = vadd.f32 %v3052, %v3137
  %v3164 = vadd.f32 %v3055, %v3140
  %v3165 = vadd.f32 %v3057, %v3142
  %v3166 = vadd.f32 %v3060, %v3145
  %v3167 = vadd.f32 %v3062, %v3147
  %v3168 = vadd.f32 %v3065, %v3150
  %v3169 = vadd.f32 %v3067, %v3152
  %vm3170 = vcmask 64512
  %3171 = vst.msk [vmem:[%s3] sm:$0xff] %vm3170, %v3154
  %3172 = vst.msk [vmem:[%s3 + $0x8] sm:$0xff] %vm3170, %v3155
  %3173 = vst.msk [vmem:[%s3 + $0x10] sm:$0xff] %vm3170, %v3156
  %3174 = vst.msk [vmem:[%s3 + $0x18] sm:$0xff] %vm3170, %v3157
  %3175 = vst.msk [vmem:[%s3 + $0x20] sm:$0xff] %vm3170, %v3158
  %3176 = vst.msk [vmem:[%s3 + $0x28] sm:$0xff] %vm3170, %v3159
  %3177 = vst.msk [vmem:[%s3 + $0x30] sm:$0xff] %vm3170, %v3160
  %3178 = vst.msk [vmem:[%s3 + $0x38] sm:$0xff] %vm3170, %v3161
  %3179 = vst.msk [vmem:[%s3 + $0x40] sm:$0xff] %vm3170, %v3162
  %3180 = vst.msk [vmem:[%s3 + $0x48] sm:$0xff] %vm3170, %v3163
  %3181 = vst.msk [vmem:[%s3 + $0x50] sm:$0xff] %vm3170, %v3164
  %3182 = vst.msk [vmem:[%s3 + $0x58] sm:$0xff] %vm3170, %v3165
  %3183 = vst.msk [vmem:[%s3 + $0x60] sm:$0xff] %vm3170, %v3166
  %3184 = vst.msk [vmem:[%s3 + $0x68] sm:$0xff] %vm3170, %v3167
  %3185 = vst.msk [vmem:[%s3 + $0x70] sm:$0xff] %vm3170, %v3168
  %3186 = vst.msk [vmem:[%s3 + $0x78] sm:$0xff] %vm3170, %v3169
  // Predicated region
  $region14: #{_lambda_.2} parent=0 // pred_check
    _
  $region15: #{_lambda_.2} parent=0 // pred_check_branch
    %3188 = sbr.rel (0) target = $region17
  $region16: #{_lambda_.2} parent=0 // pred_region
    _
  $region17: #{_lambda_.2} parent=0 // pred_fallthru
    _
  // Predicated region
  $region18: #{_lambda_.2} parent=0 // pred_check
    _
  $region19: #{_lambda_.2} parent=0 // pred_check_branch
    %3190 = sbr.rel (0) target = $region21
  $region20: #{_lambda_.2} parent=0 // pred_region
    _
  $region21: #{_lambda_.2} parent=0 // pred_fallthru
    _

</llo_original>
